<compile_context>
chip_gen: v5e
topology: v5e:2x2
jax: 0.10.0
libtpu: 0.0.40
codegen_flags: <defaults>
</compile_context>

<pallas_src>
import numpy as np
import jax
import jax.numpy as jnp
from jax.experimental import pallas as pl
from jax.experimental.pallas import tpu as pltpu


# ---------------------------------------------------------------------------
# Static module geometry
# ---------------------------------------------------------------------------
C0, C1 = 4, 8                      # real channel counts of the two branches
H0 = W0 = 16                       # branch-0 spatial size
H1 = W1 = 8                        # branch-1 spatial size

CPAD = 8                           # channels padded to one sublane tile
HP0, WP0 = H0 + 2, W0 + 2          # spatially padded (halo) sizes
HP1, WP1 = H1 + 2, W1 + 2
P0, P1 = HP0 * WP0, HP1 * WP1      # 324, 100 padded-flat pixels
P0PAD = ((P0 + 127) // 128) * 128  # 384  (lane-dense)
P1PAD = ((P1 + 127) // 128) * 128  # 128


# ---------------------------------------------------------------------------
# Constant resampling matrices / halo masks (built once, on host)
# ---------------------------------------------------------------------------
def _build_fuse_constants():
    # UP: (P1PAD, P0PAD) -- nearest-neighbour 2x upsample, branch1 -> branch0,
    #     expressed between the two padded-flat layouts (halo columns stay 0).
    up = np.zeros((P1PAD, P0PAD), np.float32)
    for h0 in range(H0):
        for w0 in range(W0):
            q0 = (h0 + 1) * WP0 + (w0 + 1)
            q1 = (h0 // 2 + 1) * WP1 + (w0 // 2 + 1)
            up[q1, q0] = 1.0
    # DS: (P0PAD, P1PAD) -- picks the even output pixels of the dense stride-1
    #     conv, i.e. the stride-2 conv result, into the branch-1 padded layout.
    ds = np.zeros((P0PAD, P1PAD), np.float32)
    for h1 in range(H1):
        for w1 in range(W1):
            q1 = (h1 + 1) * WP1 + (w1 + 1)
            q0 = (2 * h1 + 1) * WP0 + (2 * w1 + 1)
            ds[q0, q1] = 1.0
    # Interior (non-halo, non-lane-pad) masks.
    m0 = np.zeros((1, P0PAD), np.float32)
    for h in range(H0):
        for w in range(W0):
            m0[0, (h + 1) * WP0 + (w + 1)] = 1.0
    m1 = np.zeros((1, P1PAD), np.float32)
    for h in range(H1):
        for w in range(W1):
            m1[0, (h + 1) * WP1 + (w + 1)] = 1.0
    return up, ds, m0, m1


_UP_NP, _DS_NP, _M0_NP, _M1_NP = _build_fuse_constants()


# ---------------------------------------------------------------------------
# Fused Pallas kernel (one batch image per grid step)
# ---------------------------------------------------------------------------
def _conv3x3_flat(x, w_ref, wp, p):
    """3x3 conv on a padded-flat activation.

    x:     (CPAD, p)  padded-flat, zero halo / zero lane-pad.
    w_ref: (9, CPAD, CPAD)  [tap, cout, cin], BN scale already folded in.
    Returns (CPAD, p) accumulated in f32 (no bias).
    """
    acc = None
    t = 0
    for dy in (-1, 0, 1):
        for dx in (-1, 0, 1):
            off = dy * wp + dx
            tap = x if off == 0 else pltpu.roll(x, (-off) % p, axis=1)
            d = jnp.dot(w_ref[t], tap, preferred_element_type=jnp.float32)
            acc = d if acc is None else acc + d
            t += 1
    return acc


def _hr_module_kernel(xp0_ref, xp1_ref,
                      w0a_ref, b0a_ref, w0b_ref, b0b_ref,
                      w1a_ref, b1a_ref, w1b_ref, b1b_ref,
                      w01_ref, b01_ref, w10_ref, b10_ref,
                      up_ref, ds_ref, m0_ref, m1_ref,
                      y0_ref, y1_ref):
    x0_in = xp0_ref[0]          # (8, 384)
    x1_in = xp1_ref[0]          # (8, 128)
    m0 = m0_ref[...]            # (1, 384) interior mask
    m1 = m1_ref[...]            # (1, 128)

    # ---- branch 0: BasicBlock(4 -> 4) ----
    h0 = jnp.maximum(_conv3x3_flat(x0_in, w0a_ref, WP0, P0PAD) + b0a_ref[...], 0.0) * m0
    x0 = jnp.maximum(_conv3x3_flat(h0, w0b_ref, WP0, P0PAD) + b0b_ref[...] + x0_in, 0.0) * m0

    # ---- branch 1: BasicBlock(8 -> 8) ----
    h1 = jnp.maximum(_conv3x3_flat(x1_in, w1a_ref, WP1, P1PAD) + b1a_ref[...], 0.0) * m1
    x1 = jnp.maximum(_conv3x3_flat(h1, w1b_ref, WP1, P1PAD) + b1b_ref[...] + x1_in, 0.0) * m1

    # ---- fuse output 0: relu(x0 + Upsample2x(BN(Conv1x1(x1)))) ----
    f01 = jnp.dot(w01_ref[...], x1, preferred_element_type=jnp.float32) + b01_ref[...]
    f01_up = jnp.dot(f01, up_ref[...], preferred_element_type=jnp.float32)
    y0_ref[0] = jnp.maximum(x0 + f01_up, 0.0)

    # ---- fuse output 1: relu(BN(Conv3x3 stride2(x0)) + x1) ----
    dense = _conv3x3_flat(x0, w10_ref, WP0, P0PAD)               # stride-1, full res
    f10 = jnp.dot(dense, ds_ref[...], preferred_element_type=jnp.float32) + b10_ref[...]
    y1_ref[0] = jnp.maximum(f10 + x1, 0.0)


# ---------------------------------------------------------------------------
# Host-side packing helpers (layout plumbing at the module boundary only)
# ---------------------------------------------------------------------------
def _pack_activation(x_nchw, ppad):
    """NCHW -> (N, CPAD, ppad) padded-flat with zero halo / channel / lane pad."""
    n, c, h, w = x_nchw.shape
    x = jnp.pad(x_nchw, ((0, 0), (0, CPAD - c), (1, 1), (1, 1)))
    x = x.reshape(n, CPAD, (h + 2) * (w + 2))
    return jnp.pad(x, ((0, 0), (0, 0), (0, ppad - (h + 2) * (w + 2))))


def _unpack_output(y, c, h, w):
    """(N, CPAD, PPAD) padded-flat -> NCHW interior."""
    hp, wp = h + 2, w + 2
    y = y[:, :c, : hp * wp].reshape(-1, c, hp, wp)
    return y[:, :, 1:-1, 1:-1]


def _pack_conv3x3(w_hwio, scale, bias):
    """HWIO 3x3 weight + folded BN -> ((9, CPAD, CPAD) weight, (CPAD, 1) bias)."""
    cin, cout = w_hwio.shape[2], w_hwio.shape[3]
    wf = w_hwio * scale[None, None, None, :]                      # fold BN scale
    wt = jnp.transpose(wf, (3, 0, 1, 2)).reshape(cout, 9, cin)    # (cout, tap, cin)
    wt = jnp.pad(wt, ((0, CPAD - cout), (0, 0), (0, CPAD - cin)))
    wt = jnp.transpose(wt, (1, 0, 2))                             # (tap, cout, cin)
    b = jnp.pad(bias, (0, CPAD - cout)).reshape(CPAD, 1)
    return wt, b


def _pack_conv1x1(w_io, scale, bias):
    """(cin, cout) 1x1 weight + folded BN -> ((CPAD, CPAD) weight, (CPAD, 1) bias)."""
    cin, cout = w_io.shape
    wt = (w_io * scale[None, :]).T                                # (cout, cin)
    wt = jnp.pad(wt, ((0, CPAD - cout), (0, CPAD - cin)))
    b = jnp.pad(bias, (0, CPAD - cout)).reshape(CPAD, 1)
    return wt, b


# ---------------------------------------------------------------------------
# Forward: one fused pallas_call for the whole module
# ---------------------------------------------------------------------------
def hr_module_forward(x0_nchw, x1_nchw, params):
    n = x0_nchw.shape[0]

    xp0 = _pack_activation(x0_nchw, P0PAD)
    xp1 = _pack_activation(x1_nchw, P1PAD)

    w0a, b0a = _pack_conv3x3(params['b0_w1'], *params['b0_bn1'])
    w0b, b0b = _pack_conv3x3(params['b0_w2'], *params['b0_bn2'])
    w1a, b1a = _pack_conv3x3(params['b1_w1'], *params['b1_bn1'])
    w1b, b1b = _pack_conv3x3(params['b1_w2'], *params['b1_bn2'])
    w01, b01 = _pack_conv1x1(params['f01_w'], *params['f01_bn'])
    w10, b10 = _pack_conv3x3(params['f10_w'], *params['f10_bn'])

    up = jnp.asarray(_UP_NP)
    ds = jnp.asarray(_DS_NP)
    m0 = jnp.asarray(_M0_NP)
    m1 = jnp.asarray(_M1_NP)

    consts = [w0a, b0a, w0b, b0b, w1a, b1a, w1b, b1b,
              w01, b01, w10, b10, up, ds, m0, m1]

    act0_spec = pl.BlockSpec((1, CPAD, P0PAD), lambda i: (i, 0, 0))
    act1_spec = pl.BlockSpec((1, CPAD, P1PAD), lambda i: (i, 0, 0))

    def bcast_spec(a):
        return pl.BlockSpec(a.shape, lambda i, r=a.ndim: (0,) * r)

    y0p, y1p = pl.pallas_call(
        _hr_module_kernel,
        out_shape=(jax.ShapeDtypeStruct((n, CPAD, P0PAD), jnp.float32),
                   jax.ShapeDtypeStruct((n, CPAD, P1PAD), jnp.float32)),
        grid=(n,),
        in_specs=[act0_spec, act1_spec] + [bcast_spec(a) for a in consts],
        out_specs=(act0_spec, act1_spec),
        compiler_params=pltpu.CompilerParams(dimension_semantics=("parallel",)),
    )(xp0, xp1, *consts)

    y0 = _unpack_output(y0p, C0, H0, W0)
    y1 = _unpack_output(y1p, C1, H1, W1)
    return [y0, y1]


# ---------------------------------------------------------------------------
# Deterministic synthetic parameters (eval-mode BN folded to scale/bias)
# ---------------------------------------------------------------------------
def fold_bn(gamma, beta, mean, var, eps=1e-5):
    scale = gamma / jnp.sqrt(var + eps)
    bias = beta - mean * scale
    return scale, bias


def _bn_params(key, c):
    k1, k2, k3, k4 = jax.random.split(key, 4)
    gamma = 1.0 + 0.1 * jax.random.normal(k1, (c,), jnp.float32)
    beta = 0.1 * jax.random.normal(k2, (c,), jnp.float32)
    mean = 0.1 * jax.random.normal(k3, (c,), jnp.float32)
    var = 1.0 + 0.1 * jnp.abs(jax.random.normal(k4, (c,), jnp.float32))
    return fold_bn(gamma, beta, mean, var)


def init_params(key, c0, c1):
    ks = jax.random.split(key, 12)
    n = lambda k, s: 0.1 * jax.random.normal(k, s, jnp.float32)
    return {
        # branch 0: BasicBlock(c0 -> c0)
        'b0_w1': n(ks[0], (3, 3, c0, c0)), 'b0_bn1': _bn_params(ks[1], c0),
        'b0_w2': n(ks[2], (3, 3, c0, c0)), 'b0_bn2': _bn_params(ks[3], c0),
        # branch 1: BasicBlock(c1 -> c1)
        'b1_w1': n(ks[4], (3, 3, c1, c1)), 'b1_bn1': _bn_params(ks[5], c1),
        'b1_w2': n(ks[6], (3, 3, c1, c1)), 'b1_bn2': _bn_params(ks[7], c1),
        # fuse_layers[0][1]: Conv1x1(c1->c0), BN, Upsample2x (nearest)
        'f01_w': n(ks[8], (c1, c0)), 'f01_bn': _bn_params(ks[9], c0),
        # fuse_layers[1][0]: Conv3x3 stride2 (c0->c1), BN
        'f10_w': n(ks[10], (3, 3, c0, c1)), 'f10_bn': _bn_params(ks[11], c1),
    }


# ---------------------------------------------------------------------------
# Pure-JAX reference (for correctness check), NCHW like the PyTorch module
# ---------------------------------------------------------------------------
def _ref_conv3x3(x, w, scale, bias, stride=1):
    y = jax.lax.conv_general_dilated(
        x, w, window_strides=(stride, stride), padding=((1, 1), (1, 1)),
        dimension_numbers=('NCHW', 'HWIO', 'NCHW'))
    return y * scale[None, :, None, None] + bias[None, :, None, None]


def _ref_conv1x1(x, w, scale, bias):
    y = jax.lax.conv_general_dilated(
        x, w[None, None], window_strides=(1, 1), padding=((0, 0), (0, 0)),
        dimension_numbers=('NCHW', 'HWIO', 'NCHW'))
    return y * scale[None, :, None, None] + bias[None, :, None, None]


def hr_module_reference(x0, x1, p):
    def bb(x, w1, bn1, w2, bn2):
        h = jnp.maximum(_ref_conv3x3(x, w1, *bn1), 0.0)
        return jnp.maximum(_ref_conv3x3(h, w2, *bn2) + x, 0.0)

    b0 = bb(x0, p['b0_w1'], p['b0_bn1'], p['b0_w2'], p['b0_bn2'])
    b1 = bb(x1, p['b1_w1'], p['b1_bn1'], p['b1_w2'], p['b1_bn2'])
    f01 = _ref_conv1x1(b1, p['f01_w'], *p['f01_bn'])
    f01 = jnp.repeat(jnp.repeat(f01, 2, axis=2), 2, axis=3)   # nearest 2x upsample
    y0 = jnp.maximum(b0 + f01, 0.0)
    f10 = _ref_conv3x3(b0, p['f10_w'], *p['f10_bn'], stride=2)
    y1 = jnp.maximum(f10 + b1, 0.0)
    return [y0, y1]


# ---------------------------------------------------------------------------

if __name__ == "__main__":
    key = jax.random.PRNGKey(0)
    kx0, kx1, kp = jax.random.split(key, 3)

    N = 2
    # PyTorch-style NCHW inputs (list of two resolutions, as HRNet expects)
    x0_nchw = jax.random.normal(kx0, (N, C0, H0, W0), jnp.float32)
    x1_nchw = jax.random.normal(kx1, (N, C1, H1, W1), jnp.float32)

    params = init_params(kp, C0, C1)

    fwd = jax.jit(hr_module_forward)
    outs = fwd(x0_nchw, x1_nchw, params)
    outs = [jax.block_until_ready(o) for o in outs]

    refs = hr_module_reference(x0_nchw, x1_nchw, params)
    for o, r in zip(outs, refs):
        err = float(jnp.max(jnp.abs(o - r)))
        assert jnp.allclose(o, r, atol=1e-3, rtol=1e-3), f"max abs err {err}"

    print("KERNEL_OK")
</pallas_src>

<mosaic_0001>
module attributes {stable_mosaic.version = 11 : i64} {
  func.func @_hr_module_kernel(%arg0: i32, %arg1: memref<1x8x384xf32, #tpu.memory_space<vmem>>, %arg2: memref<1x8x128xf32, #tpu.memory_space<vmem>>, %arg3: memref<9x8x8xf32, #tpu.memory_space<vmem>>, %arg4: memref<8x1xf32, #tpu.memory_space<vmem>>, %arg5: memref<9x8x8xf32, #tpu.memory_space<vmem>>, %arg6: memref<8x1xf32, #tpu.memory_space<vmem>>, %arg7: memref<9x8x8xf32, #tpu.memory_space<vmem>>, %arg8: memref<8x1xf32, #tpu.memory_space<vmem>>, %arg9: memref<9x8x8xf32, #tpu.memory_space<vmem>>, %arg10: memref<8x1xf32, #tpu.memory_space<vmem>>, %arg11: memref<8x8xf32, #tpu.memory_space<vmem>>, %arg12: memref<8x1xf32, #tpu.memory_space<vmem>>, %arg13: memref<9x8x8xf32, #tpu.memory_space<vmem>>, %arg14: memref<8x1xf32, #tpu.memory_space<vmem>>, %arg15: memref<128x384xf32, #tpu.memory_space<vmem>>, %arg16: memref<384x128xf32, #tpu.memory_space<vmem>>, %arg17: memref<1x384xf32, #tpu.memory_space<vmem>>, %arg18: memref<1x128xf32, #tpu.memory_space<vmem>>, %arg19: memref<1x8x384xf32, #tpu.memory_space<vmem>>, %arg20: memref<1x8x128xf32, #tpu.memory_space<vmem>>) attributes {dimension_semantics = [#tpu.dimension_semantics<parallel>], iteration_bounds = array<i64: 2>, scalar_prefetch = 0 : i64, scratch_operands = 0 : i64, tpu.core_type = #tpu.core_type<tc>, window_params = [{transform_indices = @transform_0, window_bounds = array<i64: 1, 8, 384>}, {transform_indices = @transform_1, window_bounds = array<i64: 1, 8, 128>}, {pipeline_mode = #tpu.pipeline_mode<synchronous>, transform_indices = @transform_2, window_bounds = array<i64: 9, 8, 8>}, {pipeline_mode = #tpu.pipeline_mode<synchronous>, transform_indices = @transform_3, window_bounds = array<i64: 8, 1>}, {pipeline_mode = #tpu.pipeline_mode<synchronous>, transform_indices = @transform_4, window_bounds = array<i64: 9, 8, 8>}, {pipeline_mode = #tpu.pipeline_mode<synchronous>, transform_indices = @transform_5, window_bounds = array<i64: 8, 1>}, {pipeline_mode = #tpu.pipeline_mode<synchronous>, transform_indices = @transform_6, window_bounds = array<i64: 9, 8, 8>}, {pipeline_mode = #tpu.pipeline_mode<synchronous>, transform_indices = @transform_7, window_bounds = array<i64: 8, 1>}, {pipeline_mode = #tpu.pipeline_mode<synchronous>, transform_indices = @transform_8, window_bounds = array<i64: 9, 8, 8>}, {pipeline_mode = #tpu.pipeline_mode<synchronous>, transform_indices = @transform_9, window_bounds = array<i64: 8, 1>}, {pipeline_mode = #tpu.pipeline_mode<synchronous>, transform_indices = @transform_10, window_bounds = array<i64: 8, 8>}, {pipeline_mode = #tpu.pipeline_mode<synchronous>, transform_indices = @transform_11, window_bounds = array<i64: 8, 1>}, {pipeline_mode = #tpu.pipeline_mode<synchronous>, transform_indices = @transform_12, window_bounds = array<i64: 9, 8, 8>}, {pipeline_mode = #tpu.pipeline_mode<synchronous>, transform_indices = @transform_13, window_bounds = array<i64: 8, 1>}, {pipeline_mode = #tpu.pipeline_mode<synchronous>, transform_indices = @transform_14, window_bounds = array<i64: 128, 384>}, {pipeline_mode = #tpu.pipeline_mode<synchronous>, transform_indices = @transform_15, window_bounds = array<i64: 384, 128>}, {pipeline_mode = #tpu.pipeline_mode<synchronous>, transform_indices = @transform_16, window_bounds = array<i64: 1, 384>}, {pipeline_mode = #tpu.pipeline_mode<synchronous>, transform_indices = @transform_17, window_bounds = array<i64: 1, 128>}, {transform_indices = @transform_18, window_bounds = array<i64: 1, 8, 384>}, {transform_indices = @transform_19, window_bounds = array<i64: 1, 8, 128>}]} {
    %c0 = arith.constant 0 : index
    %c0_0 = arith.constant 0 : index
    %c0_1 = arith.constant 0 : index
    %0 = vector.load %arg1[%c0, %c0_0, %c0_1] : memref<1x8x384xf32, #tpu.memory_space<vmem>>, vector<1x8x384xf32>
    %1 = vector.shape_cast %0 : vector<1x8x384xf32> to vector<8x384xf32>
    %c0_2 = arith.constant 0 : index
    %c0_3 = arith.constant 0 : index
    %c0_4 = arith.constant 0 : index
    %2 = vector.load %arg2[%c0_2, %c0_3, %c0_4] : memref<1x8x128xf32, #tpu.memory_space<vmem>>, vector<1x8x128xf32>
    %3 = vector.shape_cast %2 : vector<1x8x128xf32> to vector<8x128xf32>
    %c0_5 = arith.constant 0 : index
    %c0_6 = arith.constant 0 : index
    %4 = vector.load %arg17[%c0_5, %c0_6] : memref<1x384xf32, #tpu.memory_space<vmem>>, vector<1x384xf32>
    %c0_7 = arith.constant 0 : index
    %c0_8 = arith.constant 0 : index
    %5 = vector.load %arg18[%c0_7, %c0_8] : memref<1x128xf32, #tpu.memory_space<vmem>>, vector<1x128xf32>
    %c19_i32 = arith.constant 19 : i32
    %6 = tpu.dynamic_rotate %1 by %c19_i32 dim 1 : vector<8x384xf32>, i32 -> vector<8x384xf32>
    %c0_9 = arith.constant 0 : index
    %c0_10 = arith.constant 0 : index
    %c0_11 = arith.constant 0 : index
    %7 = vector.load %arg3[%c0_9, %c0_10, %c0_11] : memref<9x8x8xf32, #tpu.memory_space<vmem>>, vector<1x8x8xf32>
    %8 = vector.shape_cast %7 : vector<1x8x8xf32> to vector<8x8xf32>
    %cst = arith.constant dense<0.000000e+00> : vector<8x384xf32>
    %9 = tpu.matmul %8, %6, %cst {dimension_numbers = #tpu.dot_dimension_numbers<[1], [0], [0], [1], [0, 0, 1, 1], [], []>} : vector<8x8xf32>, vector<8x384xf32>, vector<8x384xf32> -> vector<8x384xf32>
    %c18_i32 = arith.constant 18 : i32
    %10 = tpu.dynamic_rotate %1 by %c18_i32 dim 1 : vector<8x384xf32>, i32 -> vector<8x384xf32>
    %c1 = arith.constant 1 : index
    %c0_12 = arith.constant 0 : index
    %c0_13 = arith.constant 0 : index
    %11 = vector.load %arg3[%c1, %c0_12, %c0_13] : memref<9x8x8xf32, #tpu.memory_space<vmem>>, vector<1x8x8xf32>
    %12 = vector.shape_cast %11 : vector<1x8x8xf32> to vector<8x8xf32>
    %cst_14 = arith.constant dense<0.000000e+00> : vector<8x384xf32>
    %13 = tpu.matmul %12, %10, %cst_14 {dimension_numbers = #tpu.dot_dimension_numbers<[1], [0], [0], [1], [0, 0, 1, 1], [], []>} : vector<8x8xf32>, vector<8x384xf32>, vector<8x384xf32> -> vector<8x384xf32>
    %14 = arith.addf %9, %13 : vector<8x384xf32>
    %c17_i32 = arith.constant 17 : i32
    %15 = tpu.dynamic_rotate %1 by %c17_i32 dim 1 : vector<8x384xf32>, i32 -> vector<8x384xf32>
    %c2 = arith.constant 2 : index
    %c0_15 = arith.constant 0 : index
    %c0_16 = arith.constant 0 : index
    %16 = vector.load %arg3[%c2, %c0_15, %c0_16] : memref<9x8x8xf32, #tpu.memory_space<vmem>>, vector<1x8x8xf32>
    %17 = vector.shape_cast %16 : vector<1x8x8xf32> to vector<8x8xf32>
    %cst_17 = arith.constant dense<0.000000e+00> : vector<8x384xf32>
    %18 = tpu.matmul %17, %15, %cst_17 {dimension_numbers = #tpu.dot_dimension_numbers<[1], [0], [0], [1], [0, 0, 1, 1], [], []>} : vector<8x8xf32>, vector<8x384xf32>, vector<8x384xf32> -> vector<8x384xf32>
    %19 = arith.addf %14, %18 : vector<8x384xf32>
    %c1_i32 = arith.constant 1 : i32
    %20 = tpu.dynamic_rotate %1 by %c1_i32 dim 1 : vector<8x384xf32>, i32 -> vector<8x384xf32>
    %c3 = arith.constant 3 : index
    %c0_18 = arith.constant 0 : index
    %c0_19 = arith.constant 0 : index
    %21 = vector.load %arg3[%c3, %c0_18, %c0_19] : memref<9x8x8xf32, #tpu.memory_space<vmem>>, vector<1x8x8xf32>
    %22 = vector.shape_cast %21 : vector<1x8x8xf32> to vector<8x8xf32>
    %cst_20 = arith.constant dense<0.000000e+00> : vector<8x384xf32>
    %23 = tpu.matmul %22, %20, %cst_20 {dimension_numbers = #tpu.dot_dimension_numbers<[1], [0], [0], [1], [0, 0, 1, 1], [], []>} : vector<8x8xf32>, vector<8x384xf32>, vector<8x384xf32> -> vector<8x384xf32>
    %24 = arith.addf %19, %23 : vector<8x384xf32>
    %c4 = arith.constant 4 : index
    %c0_21 = arith.constant 0 : index
    %c0_22 = arith.constant 0 : index
    %25 = vector.load %arg3[%c4, %c0_21, %c0_22] : memref<9x8x8xf32, #tpu.memory_space<vmem>>, vector<1x8x8xf32>
    %26 = vector.shape_cast %25 : vector<1x8x8xf32> to vector<8x8xf32>
    %cst_23 = arith.constant dense<0.000000e+00> : vector<8x384xf32>
    %27 = tpu.matmul %26, %1, %cst_23 {dimension_numbers = #tpu.dot_dimension_numbers<[1], [0], [0], [1], [0, 0, 1, 1], [], []>} : vector<8x8xf32>, vector<8x384xf32>, vector<8x384xf32> -> vector<8x384xf32>
    %28 = arith.addf %24, %27 : vector<8x384xf32>
    %c383_i32 = arith.constant 383 : i32
    %29 = tpu.dynamic_rotate %1 by %c383_i32 dim 1 : vector<8x384xf32>, i32 -> vector<8x384xf32>
    %c5 = arith.constant 5 : index
    %c0_24 = arith.constant 0 : index
    %c0_25 = arith.constant 0 : index
    %30 = vector.load %arg3[%c5, %c0_24, %c0_25] : memref<9x8x8xf32, #tpu.memory_space<vmem>>, vector<1x8x8xf32>
    %31 = vector.shape_cast %30 : vector<1x8x8xf32> to vector<8x8xf32>
    %cst_26 = arith.constant dense<0.000000e+00> : vector<8x384xf32>
    %32 = tpu.matmul %31, %29, %cst_26 {dimension_numbers = #tpu.dot_dimension_numbers<[1], [0], [0], [1], [0, 0, 1, 1], [], []>} : vector<8x8xf32>, vector<8x384xf32>, vector<8x384xf32> -> vector<8x384xf32>
    %33 = arith.addf %28, %32 : vector<8x384xf32>
    %c367_i32 = arith.constant 367 : i32
    %34 = tpu.dynamic_rotate %1 by %c367_i32 dim 1 : vector<8x384xf32>, i32 -> vector<8x384xf32>
    %c6 = arith.constant 6 : index
    %c0_27 = arith.constant 0 : index
    %c0_28 = arith.constant 0 : index
    %35 = vector.load %arg3[%c6, %c0_27, %c0_28] : memref<9x8x8xf32, #tpu.memory_space<vmem>>, vector<1x8x8xf32>
    %36 = vector.shape_cast %35 : vector<1x8x8xf32> to vector<8x8xf32>
    %cst_29 = arith.constant dense<0.000000e+00> : vector<8x384xf32>
    %37 = tpu.matmul %36, %34, %cst_29 {dimension_numbers = #tpu.dot_dimension_numbers<[1], [0], [0], [1], [0, 0, 1, 1], [], []>} : vector<8x8xf32>, vector<8x384xf32>, vector<8x384xf32> -> vector<8x384xf32>
    %38 = arith.addf %33, %37 : vector<8x384xf32>
    %c366_i32 = arith.constant 366 : i32
    %39 = tpu.dynamic_rotate %1 by %c366_i32 dim 1 : vector<8x384xf32>, i32 -> vector<8x384xf32>
    %c7 = arith.constant 7 : index
    %c0_30 = arith.constant 0 : index
    %c0_31 = arith.constant 0 : index
    %40 = vector.load %arg3[%c7, %c0_30, %c0_31] : memref<9x8x8xf32, #tpu.memory_space<vmem>>, vector<1x8x8xf32>
    %41 = vector.shape_cast %40 : vector<1x8x8xf32> to vector<8x8xf32>
    %cst_32 = arith.constant dense<0.000000e+00> : vector<8x384xf32>
    %42 = tpu.matmul %41, %39, %cst_32 {dimension_numbers = #tpu.dot_dimension_numbers<[1], [0], [0], [1], [0, 0, 1, 1], [], []>} : vector<8x8xf32>, vector<8x384xf32>, vector<8x384xf32> -> vector<8x384xf32>
    %43 = arith.addf %38, %42 : vector<8x384xf32>
    %c365_i32 = arith.constant 365 : i32
    %44 = tpu.dynamic_rotate %1 by %c365_i32 dim 1 : vector<8x384xf32>, i32 -> vector<8x384xf32>
    %c8 = arith.constant 8 : index
    %c0_33 = arith.constant 0 : index
    %c0_34 = arith.constant 0 : index
    %45 = vector.load %arg3[%c8, %c0_33, %c0_34] : memref<9x8x8xf32, #tpu.memory_space<vmem>>, vector<1x8x8xf32>
    %46 = vector.shape_cast %45 : vector<1x8x8xf32> to vector<8x8xf32>
    %cst_35 = arith.constant dense<0.000000e+00> : vector<8x384xf32>
    %47 = tpu.matmul %46, %44, %cst_35 {dimension_numbers = #tpu.dot_dimension_numbers<[1], [0], [0], [1], [0, 0, 1, 1], [], []>} : vector<8x8xf32>, vector<8x384xf32>, vector<8x384xf32> -> vector<8x384xf32>
    %48 = arith.addf %43, %47 : vector<8x384xf32>
    %c0_36 = arith.constant 0 : index
    %c0_37 = arith.constant 0 : index
    %49 = vector.load %arg4[%c0_36, %c0_37] : memref<8x1xf32, #tpu.memory_space<vmem>>, vector<8x1xf32>
    %50 = vector.broadcast %49 : vector<8x1xf32> to vector<8x384xf32>
    %51 = arith.addf %48, %50 : vector<8x384xf32>
    %cst_38 = arith.constant 0.000000e+00 : f32
    %52 = vector.broadcast %cst_38 : f32 to vector<8x384xf32>
    %53 = arith.maximumf %51, %52 : vector<8x384xf32>
    %54 = vector.broadcast %4 : vector<1x384xf32> to vector<8x384xf32>
    %55 = arith.mulf %53, %54 : vector<8x384xf32>
    %c19_i32_39 = arith.constant 19 : i32
    %56 = tpu.dynamic_rotate %55 by %c19_i32_39 dim 1 : vector<8x384xf32>, i32 -> vector<8x384xf32>
    %c0_40 = arith.constant 0 : index
    %c0_41 = arith.constant 0 : index
    %c0_42 = arith.constant 0 : index
    %57 = vector.load %arg5[%c0_40, %c0_41, %c0_42] : memref<9x8x8xf32, #tpu.memory_space<vmem>>, vector<1x8x8xf32>
    %58 = vector.shape_cast %57 : vector<1x8x8xf32> to vector<8x8xf32>
    %cst_43 = arith.constant dense<0.000000e+00> : vector<8x384xf32>
    %59 = tpu.matmul %58, %56, %cst_43 {dimension_numbers = #tpu.dot_dimension_numbers<[1], [0], [0], [1], [0, 0, 1, 1], [], []>} : vector<8x8xf32>, vector<8x384xf32>, vector<8x384xf32> -> vector<8x384xf32>
    %c18_i32_44 = arith.constant 18 : i32
    %60 = tpu.dynamic_rotate %55 by %c18_i32_44 dim 1 : vector<8x384xf32>, i32 -> vector<8x384xf32>
    %c1_45 = arith.constant 1 : index
    %c0_46 = arith.constant 0 : index
    %c0_47 = arith.constant 0 : index
    %61 = vector.load %arg5[%c1_45, %c0_46, %c0_47] : memref<9x8x8xf32, #tpu.memory_space<vmem>>, vector<1x8x8xf32>
    %62 = vector.shape_cast %61 : vector<1x8x8xf32> to vector<8x8xf32>
    %cst_48 = arith.constant dense<0.000000e+00> : vector<8x384xf32>
    %63 = tpu.matmul %62, %60, %cst_48 {dimension_numbers = #tpu.dot_dimension_numbers<[1], [0], [0], [1], [0, 0, 1, 1], [], []>} : vector<8x8xf32>, vector<8x384xf32>, vector<8x384xf32> -> vector<8x384xf32>
    %64 = arith.addf %59, %63 : vector<8x384xf32>
    %c17_i32_49 = arith.constant 17 : i32
    %65 = tpu.dynamic_rotate %55 by %c17_i32_49 dim 1 : vector<8x384xf32>, i32 -> vector<8x384xf32>
    %c2_50 = arith.constant 2 : index
    %c0_51 = arith.constant 0 : index
    %c0_52 = arith.constant 0 : index
    %66 = vector.load %arg5[%c2_50, %c0_51, %c0_52] : memref<9x8x8xf32, #tpu.memory_space<vmem>>, vector<1x8x8xf32>
    %67 = vector.shape_cast %66 : vector<1x8x8xf32> to vector<8x8xf32>
    %cst_53 = arith.constant dense<0.000000e+00> : vector<8x384xf32>
    %68 = tpu.matmul %67, %65, %cst_53 {dimension_numbers = #tpu.dot_dimension_numbers<[1], [0], [0], [1], [0, 0, 1, 1], [], []>} : vector<8x8xf32>, vector<8x384xf32>, vector<8x384xf32> -> vector<8x384xf32>
    %69 = arith.addf %64, %68 : vector<8x384xf32>
    %c1_i32_54 = arith.constant 1 : i32
    %70 = tpu.dynamic_rotate %55 by %c1_i32_54 dim 1 : vector<8x384xf32>, i32 -> vector<8x384xf32>
    %c3_55 = arith.constant 3 : index
    %c0_56 = arith.constant 0 : index
    %c0_57 = arith.constant 0 : index
    %71 = vector.load %arg5[%c3_55, %c0_56, %c0_57] : memref<9x8x8xf32, #tpu.memory_space<vmem>>, vector<1x8x8xf32>
    %72 = vector.shape_cast %71 : vector<1x8x8xf32> to vector<8x8xf32>
    %cst_58 = arith.constant dense<0.000000e+00> : vector<8x384xf32>
    %73 = tpu.matmul %72, %70, %cst_58 {dimension_numbers = #tpu.dot_dimension_numbers<[1], [0], [0], [1], [0, 0, 1, 1], [], []>} : vector<8x8xf32>, vector<8x384xf32>, vector<8x384xf32> -> vector<8x384xf32>
    %74 = arith.addf %69, %73 : vector<8x384xf32>
    %c4_59 = arith.constant 4 : index
    %c0_60 = arith.constant 0 : index
    %c0_61 = arith.constant 0 : index
    %75 = vector.load %arg5[%c4_59, %c0_60, %c0_61] : memref<9x8x8xf32, #tpu.memory_space<vmem>>, vector<1x8x8xf32>
    %76 = vector.shape_cast %75 : vector<1x8x8xf32> to vector<8x8xf32>
    %cst_62 = arith.constant dense<0.000000e+00> : vector<8x384xf32>
    %77 = tpu.matmul %76, %55, %cst_62 {dimension_numbers = #tpu.dot_dimension_numbers<[1], [0], [0], [1], [0, 0, 1, 1], [], []>} : vector<8x8xf32>, vector<8x384xf32>, vector<8x384xf32> -> vector<8x384xf32>
    %78 = arith.addf %74, %77 : vector<8x384xf32>
    %c383_i32_63 = arith.constant 383 : i32
    %79 = tpu.dynamic_rotate %55 by %c383_i32_63 dim 1 : vector<8x384xf32>, i32 -> vector<8x384xf32>
    %c5_64 = arith.constant 5 : index
    %c0_65 = arith.constant 0 : index
    %c0_66 = arith.constant 0 : index
    %80 = vector.load %arg5[%c5_64, %c0_65, %c0_66] : memref<9x8x8xf32, #tpu.memory_space<vmem>>, vector<1x8x8xf32>
    %81 = vector.shape_cast %80 : vector<1x8x8xf32> to vector<8x8xf32>
    %cst_67 = arith.constant dense<0.000000e+00> : vector<8x384xf32>
    %82 = tpu.matmul %81, %79, %cst_67 {dimension_numbers = #tpu.dot_dimension_numbers<[1], [0], [0], [1], [0, 0, 1, 1], [], []>} : vector<8x8xf32>, vector<8x384xf32>, vector<8x384xf32> -> vector<8x384xf32>
    %83 = arith.addf %78, %82 : vector<8x384xf32>
    %c367_i32_68 = arith.constant 367 : i32
    %84 = tpu.dynamic_rotate %55 by %c367_i32_68 dim 1 : vector<8x384xf32>, i32 -> vector<8x384xf32>
    %c6_69 = arith.constant 6 : index
    %c0_70 = arith.constant 0 : index
    %c0_71 = arith.constant 0 : index
    %85 = vector.load %arg5[%c6_69, %c0_70, %c0_71] : memref<9x8x8xf32, #tpu.memory_space<vmem>>, vector<1x8x8xf32>
    %86 = vector.shape_cast %85 : vector<1x8x8xf32> to vector<8x8xf32>
    %cst_72 = arith.constant dense<0.000000e+00> : vector<8x384xf32>
    %87 = tpu.matmul %86, %84, %cst_72 {dimension_numbers = #tpu.dot_dimension_numbers<[1], [0], [0], [1], [0, 0, 1, 1], [], []>} : vector<8x8xf32>, vector<8x384xf32>, vector<8x384xf32> -> vector<8x384xf32>
    %88 = arith.addf %83, %87 : vector<8x384xf32>
    %c366_i32_73 = arith.constant 366 : i32
    %89 = tpu.dynamic_rotate %55 by %c366_i32_73 dim 1 : vector<8x384xf32>, i32 -> vector<8x384xf32>
    %c7_74 = arith.constant 7 : index
    %c0_75 = arith.constant 0 : index
    %c0_76 = arith.constant 0 : index
    %90 = vector.load %arg5[%c7_74, %c0_75, %c0_76] : memref<9x8x8xf32, #tpu.memory_space<vmem>>, vector<1x8x8xf32>
    %91 = vector.shape_cast %90 : vector<1x8x8xf32> to vector<8x8xf32>
    %cst_77 = arith.constant dense<0.000000e+00> : vector<8x384xf32>
    %92 = tpu.matmul %91, %89, %cst_77 {dimension_numbers = #tpu.dot_dimension_numbers<[1], [0], [0], [1], [0, 0, 1, 1], [], []>} : vector<8x8xf32>, vector<8x384xf32>, vector<8x384xf32> -> vector<8x384xf32>
    %93 = arith.addf %88, %92 : vector<8x384xf32>
    %c365_i32_78 = arith.constant 365 : i32
    %94 = tpu.dynamic_rotate %55 by %c365_i32_78 dim 1 : vector<8x384xf32>, i32 -> vector<8x384xf32>
    %c8_79 = arith.constant 8 : index
    %c0_80 = arith.constant 0 : index
    %c0_81 = arith.constant 0 : index
    %95 = vector.load %arg5[%c8_79, %c0_80, %c0_81] : memref<9x8x8xf32, #tpu.memory_space<vmem>>, vector<1x8x8xf32>
    %96 = vector.shape_cast %95 : vector<1x8x8xf32> to vector<8x8xf32>
    %cst_82 = arith.constant dense<0.000000e+00> : vector<8x384xf32>
    %97 = tpu.matmul %96, %94, %cst_82 {dimension_numbers = #tpu.dot_dimension_numbers<[1], [0], [0], [1], [0, 0, 1, 1], [], []>} : vector<8x8xf32>, vector<8x384xf32>, vector<8x384xf32> -> vector<8x384xf32>
    %98 = arith.addf %93, %97 : vector<8x384xf32>
    %c0_83 = arith.constant 0 : index
    %c0_84 = arith.constant 0 : index
    %99 = vector.load %arg6[%c0_83, %c0_84] : memref<8x1xf32, #tpu.memory_space<vmem>>, vector<8x1xf32>
    %100 = vector.broadcast %99 : vector<8x1xf32> to vector<8x384xf32>
    %101 = arith.addf %98, %100 : vector<8x384xf32>
    %102 = arith.addf %101, %1 : vector<8x384xf32>
    %cst_85 = arith.constant 0.000000e+00 : f32
    %103 = vector.broadcast %cst_85 : f32 to vector<8x384xf32>
    %104 = arith.maximumf %102, %103 : vector<8x384xf32>
    %105 = vector.broadcast %4 : vector<1x384xf32> to vector<8x384xf32>
    %106 = arith.mulf %104, %105 : vector<8x384xf32>
    %c11_i32 = arith.constant 11 : i32
    %107 = tpu.dynamic_rotate %3 by %c11_i32 dim 1 : vector<8x128xf32>, i32 -> vector<8x128xf32>
    %c0_86 = arith.constant 0 : index
    %c0_87 = arith.constant 0 : index
    %c0_88 = arith.constant 0 : index
    %108 = vector.load %arg7[%c0_86, %c0_87, %c0_88] : memref<9x8x8xf32, #tpu.memory_space<vmem>>, vector<1x8x8xf32>
    %109 = vector.shape_cast %108 : vector<1x8x8xf32> to vector<8x8xf32>
    %cst_89 = arith.constant dense<0.000000e+00> : vector<8x128xf32>
    %110 = tpu.matmul %109, %107, %cst_89 {dimension_numbers = #tpu.dot_dimension_numbers<[1], [0], [0], [1], [0, 0, 1, 1], [], []>} : vector<8x8xf32>, vector<8x128xf32>, vector<8x128xf32> -> vector<8x128xf32>
    %c10_i32 = arith.constant 10 : i32
    %111 = tpu.dynamic_rotate %3 by %c10_i32 dim 1 : vector<8x128xf32>, i32 -> vector<8x128xf32>
    %c1_90 = arith.constant 1 : index
    %c0_91 = arith.constant 0 : index
    %c0_92 = arith.constant 0 : index
    %112 = vector.load %arg7[%c1_90, %c0_91, %c0_92] : memref<9x8x8xf32, #tpu.memory_space<vmem>>, vector<1x8x8xf32>
    %113 = vector.shape_cast %112 : vector<1x8x8xf32> to vector<8x8xf32>
    %cst_93 = arith.constant dense<0.000000e+00> : vector<8x128xf32>
    %114 = tpu.matmul %113, %111, %cst_93 {dimension_numbers = #tpu.dot_dimension_numbers<[1], [0], [0], [1], [0, 0, 1, 1], [], []>} : vector<8x8xf32>, vector<8x128xf32>, vector<8x128xf32> -> vector<8x128xf32>
    %115 = arith.addf %110, %114 : vector<8x128xf32>
    %c9_i32 = arith.constant 9 : i32
    %116 = tpu.dynamic_rotate %3 by %c9_i32 dim 1 : vector<8x128xf32>, i32 -> vector<8x128xf32>
    %c2_94 = arith.constant 2 : index
    %c0_95 = arith.constant 0 : index
    %c0_96 = arith.constant 0 : index
    %117 = vector.load %arg7[%c2_94, %c0_95, %c0_96] : memref<9x8x8xf32, #tpu.memory_space<vmem>>, vector<1x8x8xf32>
    %118 = vector.shape_cast %117 : vector<1x8x8xf32> to vector<8x8xf32>
    %cst_97 = arith.constant dense<0.000000e+00> : vector<8x128xf32>
    %119 = tpu.matmul %118, %116, %cst_97 {dimension_numbers = #tpu.dot_dimension_numbers<[1], [0], [0], [1], [0, 0, 1, 1], [], []>} : vector<8x8xf32>, vector<8x128xf32>, vector<8x128xf32> -> vector<8x128xf32>
    %120 = arith.addf %115, %119 : vector<8x128xf32>
    %c1_i32_98 = arith.constant 1 : i32
    %121 = tpu.dynamic_rotate %3 by %c1_i32_98 dim 1 : vector<8x128xf32>, i32 -> vector<8x128xf32>
    %c3_99 = arith.constant 3 : index
    %c0_100 = arith.constant 0 : index
    %c0_101 = arith.constant 0 : index
    %122 = vector.load %arg7[%c3_99, %c0_100, %c0_101] : memref<9x8x8xf32, #tpu.memory_space<vmem>>, vector<1x8x8xf32>
    %123 = vector.shape_cast %122 : vector<1x8x8xf32> to vector<8x8xf32>
    %cst_102 = arith.constant dense<0.000000e+00> : vector<8x128xf32>
    %124 = tpu.matmul %123, %121, %cst_102 {dimension_numbers = #tpu.dot_dimension_numbers<[1], [0], [0], [1], [0, 0, 1, 1], [], []>} : vector<8x8xf32>, vector<8x128xf32>, vector<8x128xf32> -> vector<8x128xf32>
    %125 = arith.addf %120, %124 : vector<8x128xf32>
    %c4_103 = arith.constant 4 : index
    %c0_104 = arith.constant 0 : index
    %c0_105 = arith.constant 0 : index
    %126 = vector.load %arg7[%c4_103, %c0_104, %c0_105] : memref<9x8x8xf32, #tpu.memory_space<vmem>>, vector<1x8x8xf32>
    %127 = vector.shape_cast %126 : vector<1x8x8xf32> to vector<8x8xf32>
    %cst_106 = arith.constant dense<0.000000e+00> : vector<8x128xf32>
    %128 = tpu.matmul %127, %3, %cst_106 {dimension_numbers = #tpu.dot_dimension_numbers<[1], [0], [0], [1], [0, 0, 1, 1], [], []>} : vector<8x8xf32>, vector<8x128xf32>, vector<8x128xf32> -> vector<8x128xf32>
    %129 = arith.addf %125, %128 : vector<8x128xf32>
    %c127_i32 = arith.constant 127 : i32
    %130 = tpu.dynamic_rotate %3 by %c127_i32 dim 1 : vector<8x128xf32>, i32 -> vector<8x128xf32>
    %c5_107 = arith.constant 5 : index
    %c0_108 = arith.constant 0 : index
    %c0_109 = arith.constant 0 : index
    %131 = vector.load %arg7[%c5_107, %c0_108, %c0_109] : memref<9x8x8xf32, #tpu.memory_space<vmem>>, vector<1x8x8xf32>
    %132 = vector.shape_cast %131 : vector<1x8x8xf32> to vector<8x8xf32>
    %cst_110 = arith.constant dense<0.000000e+00> : vector<8x128xf32>
    %133 = tpu.matmul %132, %130, %cst_110 {dimension_numbers = #tpu.dot_dimension_numbers<[1], [0], [0], [1], [0, 0, 1, 1], [], []>} : vector<8x8xf32>, vector<8x128xf32>, vector<8x128xf32> -> vector<8x128xf32>
    %134 = arith.addf %129, %133 : vector<8x128xf32>
    %c119_i32 = arith.constant 119 : i32
    %135 = tpu.dynamic_rotate %3 by %c119_i32 dim 1 : vector<8x128xf32>, i32 -> vector<8x128xf32>
    %c6_111 = arith.constant 6 : index
    %c0_112 = arith.constant 0 : index
    %c0_113 = arith.constant 0 : index
    %136 = vector.load %arg7[%c6_111, %c0_112, %c0_113] : memref<9x8x8xf32, #tpu.memory_space<vmem>>, vector<1x8x8xf32>
    %137 = vector.shape_cast %136 : vector<1x8x8xf32> to vector<8x8xf32>
    %cst_114 = arith.constant dense<0.000000e+00> : vector<8x128xf32>
    %138 = tpu.matmul %137, %135, %cst_114 {dimension_numbers = #tpu.dot_dimension_numbers<[1], [0], [0], [1], [0, 0, 1, 1], [], []>} : vector<8x8xf32>, vector<8x128xf32>, vector<8x128xf32> -> vector<8x128xf32>
    %139 = arith.addf %134, %138 : vector<8x128xf32>
    %c118_i32 = arith.constant 118 : i32
    %140 = tpu.dynamic_rotate %3 by %c118_i32 dim 1 : vector<8x128xf32>, i32 -> vector<8x128xf32>
    %c7_115 = arith.constant 7 : index
    %c0_116 = arith.constant 0 : index
    %c0_117 = arith.constant 0 : index
    %141 = vector.load %arg7[%c7_115, %c0_116, %c0_117] : memref<9x8x8xf32, #tpu.memory_space<vmem>>, vector<1x8x8xf32>
    %142 = vector.shape_cast %141 : vector<1x8x8xf32> to vector<8x8xf32>
    %cst_118 = arith.constant dense<0.000000e+00> : vector<8x128xf32>
    %143 = tpu.matmul %142, %140, %cst_118 {dimension_numbers = #tpu.dot_dimension_numbers<[1], [0], [0], [1], [0, 0, 1, 1], [], []>} : vector<8x8xf32>, vector<8x128xf32>, vector<8x128xf32> -> vector<8x128xf32>
    %144 = arith.addf %139, %143 : vector<8x128xf32>
    %c117_i32 = arith.constant 117 : i32
    %145 = tpu.dynamic_rotate %3 by %c117_i32 dim 1 : vector<8x128xf32>, i32 -> vector<8x128xf32>
    %c8_119 = arith.constant 8 : index
    %c0_120 = arith.constant 0 : index
    %c0_121 = arith.constant 0 : index
    %146 = vector.load %arg7[%c8_119, %c0_120, %c0_121] : memref<9x8x8xf32, #tpu.memory_space<vmem>>, vector<1x8x8xf32>
    %147 = vector.shape_cast %146 : vector<1x8x8xf32> to vector<8x8xf32>
    %cst_122 = arith.constant dense<0.000000e+00> : vector<8x128xf32>
    %148 = tpu.matmul %147, %145, %cst_122 {dimension_numbers = #tpu.dot_dimension_numbers<[1], [0], [0], [1], [0, 0, 1, 1], [], []>} : vector<8x8xf32>, vector<8x128xf32>, vector<8x128xf32> -> vector<8x128xf32>
    %149 = arith.addf %144, %148 : vector<8x128xf32>
    %c0_123 = arith.constant 0 : index
    %c0_124 = arith.constant 0 : index
    %150 = vector.load %arg8[%c0_123, %c0_124] : memref<8x1xf32, #tpu.memory_space<vmem>>, vector<8x1xf32>
    %151 = vector.broadcast %150 : vector<8x1xf32> to vector<8x128xf32>
    %152 = arith.addf %149, %151 : vector<8x128xf32>
    %cst_125 = arith.constant 0.000000e+00 : f32
    %153 = vector.broadcast %cst_125 : f32 to vector<8x128xf32>
    %154 = arith.maximumf %152, %153 : vector<8x128xf32>
    %155 = vector.broadcast %5 : vector<1x128xf32> to vector<8x128xf32>
    %156 = arith.mulf %154, %155 : vector<8x128xf32>
    %c11_i32_126 = arith.constant 11 : i32
    %157 = tpu.dynamic_rotate %156 by %c11_i32_126 dim 1 : vector<8x128xf32>, i32 -> vector<8x128xf32>
    %c0_127 = arith.constant 0 : index
    %c0_128 = arith.constant 0 : index
    %c0_129 = arith.constant 0 : index
    %158 = vector.load %arg9[%c0_127, %c0_128, %c0_129] : memref<9x8x8xf32, #tpu.memory_space<vmem>>, vector<1x8x8xf32>
    %159 = vector.shape_cast %158 : vector<1x8x8xf32> to vector<8x8xf32>
    %cst_130 = arith.constant dense<0.000000e+00> : vector<8x128xf32>
    %160 = tpu.matmul %159, %157, %cst_130 {dimension_numbers = #tpu.dot_dimension_numbers<[1], [0], [0], [1], [0, 0, 1, 1], [], []>} : vector<8x8xf32>, vector<8x128xf32>, vector<8x128xf32> -> vector<8x128xf32>
    %c10_i32_131 = arith.constant 10 : i32
    %161 = tpu.dynamic_rotate %156 by %c10_i32_131 dim 1 : vector<8x128xf32>, i32 -> vector<8x128xf32>
    %c1_132 = arith.constant 1 : index
    %c0_133 = arith.constant 0 : index
    %c0_134 = arith.constant 0 : index
    %162 = vector.load %arg9[%c1_132, %c0_133, %c0_134] : memref<9x8x8xf32, #tpu.memory_space<vmem>>, vector<1x8x8xf32>
    %163 = vector.shape_cast %162 : vector<1x8x8xf32> to vector<8x8xf32>
    %cst_135 = arith.constant dense<0.000000e+00> : vector<8x128xf32>
    %164 = tpu.matmul %163, %161, %cst_135 {dimension_numbers = #tpu.dot_dimension_numbers<[1], [0], [0], [1], [0, 0, 1, 1], [], []>} : vector<8x8xf32>, vector<8x128xf32>, vector<8x128xf32> -> vector<8x128xf32>
    %165 = arith.addf %160, %164 : vector<8x128xf32>
    %c9_i32_136 = arith.constant 9 : i32
    %166 = tpu.dynamic_rotate %156 by %c9_i32_136 dim 1 : vector<8x128xf32>, i32 -> vector<8x128xf32>
    %c2_137 = arith.constant 2 : index
    %c0_138 = arith.constant 0 : index
    %c0_139 = arith.constant 0 : index
    %167 = vector.load %arg9[%c2_137, %c0_138, %c0_139] : memref<9x8x8xf32, #tpu.memory_space<vmem>>, vector<1x8x8xf32>
    %168 = vector.shape_cast %167 : vector<1x8x8xf32> to vector<8x8xf32>
    %cst_140 = arith.constant dense<0.000000e+00> : vector<8x128xf32>
    %169 = tpu.matmul %168, %166, %cst_140 {dimension_numbers = #tpu.dot_dimension_numbers<[1], [0], [0], [1], [0, 0, 1, 1], [], []>} : vector<8x8xf32>, vector<8x128xf32>, vector<8x128xf32> -> vector<8x128xf32>
    %170 = arith.addf %165, %169 : vector<8x128xf32>
    %c1_i32_141 = arith.constant 1 : i32
    %171 = tpu.dynamic_rotate %156 by %c1_i32_141 dim 1 : vector<8x128xf32>, i32 -> vector<8x128xf32>
    %c3_142 = arith.constant 3 : index
    %c0_143 = arith.constant 0 : index
    %c0_144 = arith.constant 0 : index
    %172 = vector.load %arg9[%c3_142, %c0_143, %c0_144] : memref<9x8x8xf32, #tpu.memory_space<vmem>>, vector<1x8x8xf32>
    %173 = vector.shape_cast %172 : vector<1x8x8xf32> to vector<8x8xf32>
    %cst_145 = arith.constant dense<0.000000e+00> : vector<8x128xf32>
    %174 = tpu.matmul %173, %171, %cst_145 {dimension_numbers = #tpu.dot_dimension_numbers<[1], [0], [0], [1], [0, 0, 1, 1], [], []>} : vector<8x8xf32>, vector<8x128xf32>, vector<8x128xf32> -> vector<8x128xf32>
    %175 = arith.addf %170, %174 : vector<8x128xf32>
    %c4_146 = arith.constant 4 : index
    %c0_147 = arith.constant 0 : index
    %c0_148 = arith.constant 0 : index
    %176 = vector.load %arg9[%c4_146, %c0_147, %c0_148] : memref<9x8x8xf32, #tpu.memory_space<vmem>>, vector<1x8x8xf32>
    %177 = vector.shape_cast %176 : vector<1x8x8xf32> to vector<8x8xf32>
    %cst_149 = arith.constant dense<0.000000e+00> : vector<8x128xf32>
    %178 = tpu.matmul %177, %156, %cst_149 {dimension_numbers = #tpu.dot_dimension_numbers<[1], [0], [0], [1], [0, 0, 1, 1], [], []>} : vector<8x8xf32>, vector<8x128xf32>, vector<8x128xf32> -> vector<8x128xf32>
    %179 = arith.addf %175, %178 : vector<8x128xf32>
    %c127_i32_150 = arith.constant 127 : i32
    %180 = tpu.dynamic_rotate %156 by %c127_i32_150 dim 1 : vector<8x128xf32>, i32 -> vector<8x128xf32>
    %c5_151 = arith.constant 5 : index
    %c0_152 = arith.constant 0 : index
    %c0_153 = arith.constant 0 : index
    %181 = vector.load %arg9[%c5_151, %c0_152, %c0_153] : memref<9x8x8xf32, #tpu.memory_space<vmem>>, vector<1x8x8xf32>
    %182 = vector.shape_cast %181 : vector<1x8x8xf32> to vector<8x8xf32>
    %cst_154 = arith.constant dense<0.000000e+00> : vector<8x128xf32>
    %183 = tpu.matmul %182, %180, %cst_154 {dimension_numbers = #tpu.dot_dimension_numbers<[1], [0], [0], [1], [0, 0, 1, 1], [], []>} : vector<8x8xf32>, vector<8x128xf32>, vector<8x128xf32> -> vector<8x128xf32>
    %184 = arith.addf %179, %183 : vector<8x128xf32>
    %c119_i32_155 = arith.constant 119 : i32
    %185 = tpu.dynamic_rotate %156 by %c119_i32_155 dim 1 : vector<8x128xf32>, i32 -> vector<8x128xf32>
    %c6_156 = arith.constant 6 : index
    %c0_157 = arith.constant 0 : index
    %c0_158 = arith.constant 0 : index
    %186 = vector.load %arg9[%c6_156, %c0_157, %c0_158] : memref<9x8x8xf32, #tpu.memory_space<vmem>>, vector<1x8x8xf32>
    %187 = vector.shape_cast %186 : vector<1x8x8xf32> to vector<8x8xf32>
    %cst_159 = arith.constant dense<0.000000e+00> : vector<8x128xf32>
    %188 = tpu.matmul %187, %185, %cst_159 {dimension_numbers = #tpu.dot_dimension_numbers<[1], [0], [0], [1], [0, 0, 1, 1], [], []>} : vector<8x8xf32>, vector<8x128xf32>, vector<8x128xf32> -> vector<8x128xf32>
    %189 = arith.addf %184, %188 : vector<8x128xf32>
    %c118_i32_160 = arith.constant 118 : i32
    %190 = tpu.dynamic_rotate %156 by %c118_i32_160 dim 1 : vector<8x128xf32>, i32 -> vector<8x128xf32>
    %c7_161 = arith.constant 7 : index
    %c0_162 = arith.constant 0 : index
    %c0_163 = arith.constant 0 : index
    %191 = vector.load %arg9[%c7_161, %c0_162, %c0_163] : memref<9x8x8xf32, #tpu.memory_space<vmem>>, vector<1x8x8xf32>
    %192 = vector.shape_cast %191 : vector<1x8x8xf32> to vector<8x8xf32>
    %cst_164 = arith.constant dense<0.000000e+00> : vector<8x128xf32>
    %193 = tpu.matmul %192, %190, %cst_164 {dimension_numbers = #tpu.dot_dimension_numbers<[1], [0], [0], [1], [0, 0, 1, 1], [], []>} : vector<8x8xf32>, vector<8x128xf32>, vector<8x128xf32> -> vector<8x128xf32>
    %194 = arith.addf %189, %193 : vector<8x128xf32>
    %c117_i32_165 = arith.constant 117 : i32
    %195 = tpu.dynamic_rotate %156 by %c117_i32_165 dim 1 : vector<8x128xf32>, i32 -> vector<8x128xf32>
    %c8_166 = arith.constant 8 : index
    %c0_167 = arith.constant 0 : index
    %c0_168 = arith.constant 0 : index
    %196 = vector.load %arg9[%c8_166, %c0_167, %c0_168] : memref<9x8x8xf32, #tpu.memory_space<vmem>>, vector<1x8x8xf32>
    %197 = vector.shape_cast %196 : vector<1x8x8xf32> to vector<8x8xf32>
    %cst_169 = arith.constant dense<0.000000e+00> : vector<8x128xf32>
    %198 = tpu.matmul %197, %195, %cst_169 {dimension_numbers = #tpu.dot_dimension_numbers<[1], [0], [0], [1], [0, 0, 1, 1], [], []>} : vector<8x8xf32>, vector<8x128xf32>, vector<8x128xf32> -> vector<8x128xf32>
    %199 = arith.addf %194, %198 : vector<8x128xf32>
    %c0_170 = arith.constant 0 : index
    %c0_171 = arith.constant 0 : index
    %200 = vector.load %arg10[%c0_170, %c0_171] : memref<8x1xf32, #tpu.memory_space<vmem>>, vector<8x1xf32>
    %201 = vector.broadcast %200 : vector<8x1xf32> to vector<8x128xf32>
    %202 = arith.addf %199, %201 : vector<8x128xf32>
    %203 = arith.addf %202, %3 : vector<8x128xf32>
    %cst_172 = arith.constant 0.000000e+00 : f32
    %204 = vector.broadcast %cst_172 : f32 to vector<8x128xf32>
    %205 = arith.maximumf %203, %204 : vector<8x128xf32>
    %206 = vector.broadcast %5 : vector<1x128xf32> to vector<8x128xf32>
    %207 = arith.mulf %205, %206 : vector<8x128xf32>
    %c0_173 = arith.constant 0 : index
    %c0_174 = arith.constant 0 : index
    %208 = vector.load %arg11[%c0_173, %c0_174] : memref<8x8xf32, #tpu.memory_space<vmem>>, vector<8x8xf32>
    %cst_175 = arith.constant dense<0.000000e+00> : vector<8x128xf32>
    %209 = tpu.matmul %208, %207, %cst_175 {dimension_numbers = #tpu.dot_dimension_numbers<[1], [0], [0], [1], [0, 0, 1, 1], [], []>} : vector<8x8xf32>, vector<8x128xf32>, vector<8x128xf32> -> vector<8x128xf32>
    %c0_176 = arith.constant 0 : index
    %c0_177 = arith.constant 0 : index
    %210 = vector.load %arg12[%c0_176, %c0_177] : memref<8x1xf32, #tpu.memory_space<vmem>>, vector<8x1xf32>
    %211 = vector.broadcast %210 : vector<8x1xf32> to vector<8x128xf32>
    %212 = arith.addf %209, %211 : vector<8x128xf32>
    %c0_178 = arith.constant 0 : index
    %c0_179 = arith.constant 0 : index
    %213 = vector.load %arg15[%c0_178, %c0_179] : memref<128x384xf32, #tpu.memory_space<vmem>>, vector<128x384xf32>
    %cst_180 = arith.constant dense<0.000000e+00> : vector<8x384xf32>
    %214 = tpu.matmul %212, %213, %cst_180 {dimension_numbers = #tpu.dot_dimension_numbers<[1], [0], [0], [1], [0, 0, 1, 1], [], []>} : vector<8x128xf32>, vector<128x384xf32>, vector<8x384xf32> -> vector<8x384xf32>
    %215 = arith.addf %106, %214 : vector<8x384xf32>
    %cst_181 = arith.constant 0.000000e+00 : f32
    %216 = vector.broadcast %cst_181 : f32 to vector<8x384xf32>
    %217 = arith.maximumf %215, %216 : vector<8x384xf32>
    %c0_182 = arith.constant 0 : index
    %c0_183 = arith.constant 0 : index
    %c0_184 = arith.constant 0 : index
    %218 = vector.load %arg19[%c0_182, %c0_183, %c0_184] : memref<1x8x384xf32, #tpu.memory_space<vmem>>, vector<1x8x384xf32>
    %219 = vector.shape_cast %218 : vector<1x8x384xf32> to vector<8x384xf32>
    %220 = vector.shape_cast %217 : vector<8x384xf32> to vector<1x8x384xf32>
    tpu.vector_store %arg19[%c0_182, %c0_183, %c0_184], %220 {strides = array<i32>} : memref<1x8x384xf32, #tpu.memory_space<vmem>>, vector<1x8x384xf32>,
    %c19_i32_185 = arith.constant 19 : i32
    %221 = tpu.dynamic_rotate %106 by %c19_i32_185 dim 1 : vector<8x384xf32>, i32 -> vector<8x384xf32>
    %c0_186 = arith.constant 0 : index
    %c0_187 = arith.constant 0 : index
    %c0_188 = arith.constant 0 : index
    %222 = vector.load %arg13[%c0_186, %c0_187, %c0_188] : memref<9x8x8xf32, #tpu.memory_space<vmem>>, vector<1x8x8xf32>
    %223 = vector.shape_cast %222 : vector<1x8x8xf32> to vector<8x8xf32>
    %cst_189 = arith.constant dense<0.000000e+00> : vector<8x384xf32>
    %224 = tpu.matmul %223, %221, %cst_189 {dimension_numbers = #tpu.dot_dimension_numbers<[1], [0], [0], [1], [0, 0, 1, 1], [], []>} : vector<8x8xf32>, vector<8x384xf32>, vector<8x384xf32> -> vector<8x384xf32>
    %c18_i32_190 = arith.constant 18 : i32
    %225 = tpu.dynamic_rotate %106 by %c18_i32_190 dim 1 : vector<8x384xf32>, i32 -> vector<8x384xf32>
    %c1_191 = arith.constant 1 : index
    %c0_192 = arith.constant 0 : index
    %c0_193 = arith.constant 0 : index
    %226 = vector.load %arg13[%c1_191, %c0_192, %c0_193] : memref<9x8x8xf32, #tpu.memory_space<vmem>>, vector<1x8x8xf32>
    %227 = vector.shape_cast %226 : vector<1x8x8xf32> to vector<8x8xf32>
    %cst_194 = arith.constant dense<0.000000e+00> : vector<8x384xf32>
    %228 = tpu.matmul %227, %225, %cst_194 {dimension_numbers = #tpu.dot_dimension_numbers<[1], [0], [0], [1], [0, 0, 1, 1], [], []>} : vector<8x8xf32>, vector<8x384xf32>, vector<8x384xf32> -> vector<8x384xf32>
    %229 = arith.addf %224, %228 : vector<8x384xf32>
    %c17_i32_195 = arith.constant 17 : i32
    %230 = tpu.dynamic_rotate %106 by %c17_i32_195 dim 1 : vector<8x384xf32>, i32 -> vector<8x384xf32>
    %c2_196 = arith.constant 2 : index
    %c0_197 = arith.constant 0 : index
    %c0_198 = arith.constant 0 : index
    %231 = vector.load %arg13[%c2_196, %c0_197, %c0_198] : memref<9x8x8xf32, #tpu.memory_space<vmem>>, vector<1x8x8xf32>
    %232 = vector.shape_cast %231 : vector<1x8x8xf32> to vector<8x8xf32>
    %cst_199 = arith.constant dense<0.000000e+00> : vector<8x384xf32>
    %233 = tpu.matmul %232, %230, %cst_199 {dimension_numbers = #tpu.dot_dimension_numbers<[1], [0], [0], [1], [0, 0, 1, 1], [], []>} : vector<8x8xf32>, vector<8x384xf32>, vector<8x384xf32> -> vector<8x384xf32>
    %234 = arith.addf %229, %233 : vector<8x384xf32>
    %c1_i32_200 = arith.constant 1 : i32
    %235 = tpu.dynamic_rotate %106 by %c1_i32_200 dim 1 : vector<8x384xf32>, i32 -> vector<8x384xf32>
    %c3_201 = arith.constant 3 : index
    %c0_202 = arith.constant 0 : index
    %c0_203 = arith.constant 0 : index
    %236 = vector.load %arg13[%c3_201, %c0_202, %c0_203] : memref<9x8x8xf32, #tpu.memory_space<vmem>>, vector<1x8x8xf32>
    %237 = vector.shape_cast %236 : vector<1x8x8xf32> to vector<8x8xf32>
    %cst_204 = arith.constant dense<0.000000e+00> : vector<8x384xf32>
    %238 = tpu.matmul %237, %235, %cst_204 {dimension_numbers = #tpu.dot_dimension_numbers<[1], [0], [0], [1], [0, 0, 1, 1], [], []>} : vector<8x8xf32>, vector<8x384xf32>, vector<8x384xf32> -> vector<8x384xf32>
    %239 = arith.addf %234, %238 : vector<8x384xf32>
    %c4_205 = arith.constant 4 : index
    %c0_206 = arith.constant 0 : index
    %c0_207 = arith.constant 0 : index
    %240 = vector.load %arg13[%c4_205, %c0_206, %c0_207] : memref<9x8x8xf32, #tpu.memory_space<vmem>>, vector<1x8x8xf32>
    %241 = vector.shape_cast %240 : vector<1x8x8xf32> to vector<8x8xf32>
    %cst_208 = arith.constant dense<0.000000e+00> : vector<8x384xf32>
    %242 = tpu.matmul %241, %106, %cst_208 {dimension_numbers = #tpu.dot_dimension_numbers<[1], [0], [0], [1], [0, 0, 1, 1], [], []>} : vector<8x8xf32>, vector<8x384xf32>, vector<8x384xf32> -> vector<8x384xf32>
    %243 = arith.addf %239, %242 : vector<8x384xf32>
    %c383_i32_209 = arith.constant 383 : i32
    %244 = tpu.dynamic_rotate %106 by %c383_i32_209 dim 1 : vector<8x384xf32>, i32 -> vector<8x384xf32>
    %c5_210 = arith.constant 5 : index
    %c0_211 = arith.constant 0 : index
    %c0_212 = arith.constant 0 : index
    %245 = vector.load %arg13[%c5_210, %c0_211, %c0_212] : memref<9x8x8xf32, #tpu.memory_space<vmem>>, vector<1x8x8xf32>
    %246 = vector.shape_cast %245 : vector<1x8x8xf32> to vector<8x8xf32>
    %cst_213 = arith.constant dense<0.000000e+00> : vector<8x384xf32>
    %247 = tpu.matmul %246, %244, %cst_213 {dimension_numbers = #tpu.dot_dimension_numbers<[1], [0], [0], [1], [0, 0, 1, 1], [], []>} : vector<8x8xf32>, vector<8x384xf32>, vector<8x384xf32> -> vector<8x384xf32>
    %248 = arith.addf %243, %247 : vector<8x384xf32>
    %c367_i32_214 = arith.constant 367 : i32
    %249 = tpu.dynamic_rotate %106 by %c367_i32_214 dim 1 : vector<8x384xf32>, i32 -> vector<8x384xf32>
    %c6_215 = arith.constant 6 : index
    %c0_216 = arith.constant 0 : index
    %c0_217 = arith.constant 0 : index
    %250 = vector.load %arg13[%c6_215, %c0_216, %c0_217] : memref<9x8x8xf32, #tpu.memory_space<vmem>>, vector<1x8x8xf32>
    %251 = vector.shape_cast %250 : vector<1x8x8xf32> to vector<8x8xf32>
    %cst_218 = arith.constant dense<0.000000e+00> : vector<8x384xf32>
    %252 = tpu.matmul %251, %249, %cst_218 {dimension_numbers = #tpu.dot_dimension_numbers<[1], [0], [0], [1], [0, 0, 1, 1], [], []>} : vector<8x8xf32>, vector<8x384xf32>, vector<8x384xf32> -> vector<8x384xf32>
    %253 = arith.addf %248, %252 : vector<8x384xf32>
    %c366_i32_219 = arith.constant 366 : i32
    %254 = tpu.dynamic_rotate %106 by %c366_i32_219 dim 1 : vector<8x384xf32>, i32 -> vector<8x384xf32>
    %c7_220 = arith.constant 7 : index
    %c0_221 = arith.constant 0 : index
    %c0_222 = arith.constant 0 : index
    %255 = vector.load %arg13[%c7_220, %c0_221, %c0_222] : memref<9x8x8xf32, #tpu.memory_space<vmem>>, vector<1x8x8xf32>
    %256 = vector.shape_cast %255 : vector<1x8x8xf32> to vector<8x8xf32>
    %cst_223 = arith.constant dense<0.000000e+00> : vector<8x384xf32>
    %257 = tpu.matmul %256, %254, %cst_223 {dimension_numbers = #tpu.dot_dimension_numbers<[1], [0], [0], [1], [0, 0, 1, 1], [], []>} : vector<8x8xf32>, vector<8x384xf32>, vector<8x384xf32> -> vector<8x384xf32>
    %258 = arith.addf %253, %257 : vector<8x384xf32>
    %c365_i32_224 = arith.constant 365 : i32
    %259 = tpu.dynamic_rotate %106 by %c365_i32_224 dim 1 : vector<8x384xf32>, i32 -> vector<8x384xf32>
    %c8_225 = arith.constant 8 : index
    %c0_226 = arith.constant 0 : index
    %c0_227 = arith.constant 0 : index
    %260 = vector.load %arg13[%c8_225, %c0_226, %c0_227] : memref<9x8x8xf32, #tpu.memory_space<vmem>>, vector<1x8x8xf32>
    %261 = vector.shape_cast %260 : vector<1x8x8xf32> to vector<8x8xf32>
    %cst_228 = arith.constant dense<0.000000e+00> : vector<8x384xf32>
    %262 = tpu.matmul %261, %259, %cst_228 {dimension_numbers = #tpu.dot_dimension_numbers<[1], [0], [0], [1], [0, 0, 1, 1], [], []>} : vector<8x8xf32>, vector<8x384xf32>, vector<8x384xf32> -> vector<8x384xf32>
    %263 = arith.addf %258, %262 : vector<8x384xf32>
    %c0_229 = arith.constant 0 : index
    %c0_230 = arith.constant 0 : index
    %264 = vector.load %arg16[%c0_229, %c0_230] : memref<384x128xf32, #tpu.memory_space<vmem>>, vector<384x128xf32>
    %cst_231 = arith.constant dense<0.000000e+00> : vector<8x128xf32>
    %265 = tpu.matmul %263, %264, %cst_231 {dimension_numbers = #tpu.dot_dimension_numbers<[1], [0], [0], [1], [0, 0, 1, 1], [], []>} : vector<8x384xf32>, vector<384x128xf32>, vector<8x128xf32> -> vector<8x128xf32>
    %c0_232 = arith.constant 0 : index
    %c0_233 = arith.constant 0 : index
    %266 = vector.load %arg14[%c0_232, %c0_233] : memref<8x1xf32, #tpu.memory_space<vmem>>, vector<8x1xf32>
    %267 = vector.broadcast %266 : vector<8x1xf32> to vector<8x128xf32>
    %268 = arith.addf %265, %267 : vector<8x128xf32>
    %269 = arith.addf %268, %207 : vector<8x128xf32>
    %cst_234 = arith.constant 0.000000e+00 : f32
    %270 = vector.broadcast %cst_234 : f32 to vector<8x128xf32>
    %271 = arith.maximumf %269, %270 : vector<8x128xf32>
    %c0_235 = arith.constant 0 : index
    %c0_236 = arith.constant 0 : index
    %c0_237 = arith.constant 0 : index
    %272 = vector.load %arg20[%c0_235, %c0_236, %c0_237] : memref<1x8x128xf32, #tpu.memory_space<vmem>>, vector<1x8x128xf32>
    %273 = vector.shape_cast %272 : vector<1x8x128xf32> to vector<8x128xf32>
    %274 = vector.shape_cast %271 : vector<8x128xf32> to vector<1x8x128xf32>
    tpu.vector_store %arg20[%c0_235, %c0_236, %c0_237], %274 {strides = array<i32>} : memref<1x8x128xf32, #tpu.memory_space<vmem>>, vector<1x8x128xf32>,
    return
  }
  func.func @transform_0(%arg0: i32) -> (i32, i32, i32) {
    %c0_i32 = arith.constant 0 : i32
    %c0_i32_0 = arith.constant 0 : i32
    %c0_i32_1 = arith.constant 0 : i32
    return %arg0, %c0_i32, %c0_i32_0 : i32, i32, i32
  }
  func.func @transform_1(%arg0: i32) -> (i32, i32, i32) {
    %c0_i32 = arith.constant 0 : i32
    %c0_i32_0 = arith.constant 0 : i32
    %c0_i32_1 = arith.constant 0 : i32
    return %arg0, %c0_i32, %c0_i32_0 : i32, i32, i32
  }
  func.func @transform_2(%arg0: i32) -> (i32, i32, i32) {
    %c0_i32 = arith.constant 0 : i32
    %c0_i32_0 = arith.constant 0 : i32
    %c0_i32_1 = arith.constant 0 : i32
    %c0_i32_2 = arith.constant 0 : i32
    return %c0_i32, %c0_i32_0, %c0_i32_1 : i32, i32, i32
  }
  func.func @transform_3(%arg0: i32) -> (i32, i32) {
    %c0_i32 = arith.constant 0 : i32
    %c0_i32_0 = arith.constant 0 : i32
    %c0_i32_1 = arith.constant 0 : i32
    return %c0_i32, %c0_i32_0 : i32, i32
  }
  func.func @transform_4(%arg0: i32) -> (i32, i32, i32) {
    %c0_i32 = arith.constant 0 : i32
    %c0_i32_0 = arith.constant 0 : i32
    %c0_i32_1 = arith.constant 0 : i32
    %c0_i32_2 = arith.constant 0 : i32
    return %c0_i32, %c0_i32_0, %c0_i32_1 : i32, i32, i32
  }
  func.func @transform_5(%arg0: i32) -> (i32, i32) {
    %c0_i32 = arith.constant 0 : i32
    %c0_i32_0 = arith.constant 0 : i32
    %c0_i32_1 = arith.constant 0 : i32
    return %c0_i32, %c0_i32_0 : i32, i32
  }
  func.func @transform_6(%arg0: i32) -> (i32, i32, i32) {
    %c0_i32 = arith.constant 0 : i32
    %c0_i32_0 = arith.constant 0 : i32
    %c0_i32_1 = arith.constant 0 : i32
    %c0_i32_2 = arith.constant 0 : i32
    return %c0_i32, %c0_i32_0, %c0_i32_1 : i32, i32, i32
  }
  func.func @transform_7(%arg0: i32) -> (i32, i32) {
    %c0_i32 = arith.constant 0 : i32
    %c0_i32_0 = arith.constant 0 : i32
    %c0_i32_1 = arith.constant 0 : i32
    return %c0_i32, %c0_i32_0 : i32, i32
  }
  func.func @transform_8(%arg0: i32) -> (i32, i32, i32) {
    %c0_i32 = arith.constant 0 : i32
    %c0_i32_0 = arith.constant 0 : i32
    %c0_i32_1 = arith.constant 0 : i32
    %c0_i32_2 = arith.constant 0 : i32
    return %c0_i32, %c0_i32_0, %c0_i32_1 : i32, i32, i32
  }
  func.func @transform_9(%arg0: i32) -> (i32, i32) {
    %c0_i32 = arith.constant 0 : i32
    %c0_i32_0 = arith.constant 0 : i32
    %c0_i32_1 = arith.constant 0 : i32
    return %c0_i32, %c0_i32_0 : i32, i32
  }
  func.func @transform_10(%arg0: i32) -> (i32, i32) {
    %c0_i32 = arith.constant 0 : i32
    %c0_i32_0 = arith.constant 0 : i32
    %c0_i32_1 = arith.constant 0 : i32
    return %c0_i32, %c0_i32_0 : i32, i32
  }
  func.func @transform_11(%arg0: i32) -> (i32, i32) {
    %c0_i32 = arith.constant 0 : i32
    %c0_i32_0 = arith.constant 0 : i32
    %c0_i32_1 = arith.constant 0 : i32
    return %c0_i32, %c0_i32_0 : i32, i32
  }
  func.func @transform_12(%arg0: i32) -> (i32, i32, i32) {
    %c0_i32 = arith.constant 0 : i32
    %c0_i32_0 = arith.constant 0 : i32
    %c0_i32_1 = arith.constant 0 : i32
    %c0_i32_2 = arith.constant 0 : i32
    return %c0_i32, %c0_i32_0, %c0_i32_1 : i32, i32, i32
  }
  func.func @transform_13(%arg0: i32) -> (i32, i32) {
    %c0_i32 = arith.constant 0 : i32
    %c0_i32_0 = arith.constant 0 : i32
    %c0_i32_1 = arith.constant 0 : i32
    return %c0_i32, %c0_i32_0 : i32, i32
  }
  func.func @transform_14(%arg0: i32) -> (i32, i32) {
    %c0_i32 = arith.constant 0 : i32
    %c0_i32_0 = arith.constant 0 : i32
    %c0_i32_1 = arith.constant 0 : i32
    return %c0_i32, %c0_i32_0 : i32, i32
  }
  func.func @transform_15(%arg0: i32) -> (i32, i32) {
    %c0_i32 = arith.constant 0 : i32
    %c0_i32_0 = arith.constant 0 : i32
    %c0_i32_1 = arith.constant 0 : i32
    return %c0_i32, %c0_i32_0 : i32, i32
  }
  func.func @transform_16(%arg0: i32) -> (i32, i32) {
    %c0_i32 = arith.constant 0 : i32
    %c0_i32_0 = arith.constant 0 : i32
    %c0_i32_1 = arith.constant 0 : i32
    return %c0_i32, %c0_i32_0 : i32, i32
  }
  func.func @transform_17(%arg0: i32) -> (i32, i32) {
    %c0_i32 = arith.constant 0 : i32
    %c0_i32_0 = arith.constant 0 : i32
    %c0_i32_1 = arith.constant 0 : i32
    return %c0_i32, %c0_i32_0 : i32, i32
  }
  func.func @transform_18(%arg0: i32) -> (i32, i32, i32) {
    %c0_i32 = arith.constant 0 : i32
    %c0_i32_0 = arith.constant 0 : i32
    %c0_i32_1 = arith.constant 0 : i32
    return %arg0, %c0_i32, %c0_i32_0 : i32, i32, i32
  }
  func.func @transform_19(%arg0: i32) -> (i32, i32, i32) {
    %c0_i32 = arith.constant 0 : i32
    %c0_i32_0 = arith.constant 0 : i32
    %c0_i32_1 = arith.constant 0 : i32
    return %arg0, %c0_i32, %c0_i32_0 : i32, i32, i32
  }
}

</mosaic_0001>

<llo_original>
// kernel: hr_module_forward.1
$region0: #{hr_module_forward.1}
  #allocation0 [shape = 'u32[]', space=smem, size = 0x4, offset = 0x4, fixed_abs, tag = 'smem constant byte address 0x4 - core index']
  #allocation1 [shape = 'u32[72,128]{1,0:T(1,128)}', space=vmem, size = 0x9000, scoped, tag = 'internal scratch']
  %s0 = inlined_call_operand.vmem [shape: f32[2,8,384], index: 0, kind: input, shape index: {}]
  %s1 = inlined_call_operand.vmem [shape: f32[2,8,128], index: 1, kind: input, shape index: {}]
  %s2 = inlined_call_operand.vmem [shape: f32[9,8,8], index: 2, kind: input, shape index: {}]
  %s3 = inlined_call_operand.vmem [shape: f32[8,1], index: 3, kind: input, shape index: {}]
  %s4 = inlined_call_operand.vmem [shape: f32[9,8,8], index: 4, kind: input, shape index: {}]
  %s5 = inlined_call_operand.vmem [shape: f32[8,1], index: 5, kind: input, shape index: {}]
  %s6 = inlined_call_operand.vmem [shape: f32[9,8,8], index: 6, kind: input, shape index: {}]
  %s7 = inlined_call_operand.vmem [shape: f32[8,1], index: 7, kind: input, shape index: {}]
  %s8 = inlined_call_operand.vmem [shape: f32[9,8,8], index: 8, kind: input, shape index: {}]
  %s9 = inlined_call_operand.vmem [shape: f32[8,1], index: 9, kind: input, shape index: {}]
  %s10 = inlined_call_operand.vmem [shape: f32[8,8], index: 10, kind: input, shape index: {}]
  %s11 = inlined_call_operand.vmem [shape: f32[8,1], index: 11, kind: input, shape index: {}]
  %s12 = inlined_call_operand.vmem [shape: f32[9,8,8], index: 12, kind: input, shape index: {}]
  %s13 = inlined_call_operand.vmem [shape: f32[8,1], index: 13, kind: input, shape index: {}]
  %s14 = inlined_call_operand.vmem [shape: f32[128,384], index: 14, kind: input, shape index: {}]
  %s15 = inlined_call_operand.vmem [shape: f32[384,128], index: 15, kind: input, shape index: {}]
  %s16 = inlined_call_operand.vmem [shape: f32[1,384], index: 16, kind: input, shape index: {}]
  %s17 = inlined_call_operand.vmem [shape: f32[1,128], index: 17, kind: input, shape index: {}]
  %s18 = inlined_call_operand.vmem [shape: f32[2,8,384], index: 18, kind: output, shape index: {0}]
  %s19 = inlined_call_operand.vmem [shape: f32[2,8,128], index: 19, kind: output, shape index: {1}]
  %20 = xla_tuple %s18, %s19
  %s21 = sld [smem:[#allocation0]]
  $region113: #{hr_module_forward.1} parent=0
    _
  %s23 = ssub.s32 1, %s21
  %s24 = scalar_select 0, %s23, %s21
  loop: start=0, step=1, limit=4
  $region2: #{hr_module_forward.1} parent=0 // loop_pre_header
    _
  $region3: #{hr_module_forward.1} parent=0 // loop_header
    %s26 = sphi 0, %s30
    %p27 = scmp.ge.s32.totalorder %s26, 4
    %s36 = sphi 0, %s38
    %s39 = sphi 0, %s36
    %s40 = sphi 0, %s39
    %s56 = sphi 0, %s40
    %s62 = sphi 0, %s64
    %s65 = sphi 0, %s62
    %s66 = sphi 0, %s65
    %s82 = sphi 0, %s66
    %s86 = sphi 0, %s86
    %s88 = sphi 0, %s86
    %s89 = sphi 0, %s88
    %s103 = sphi 0, %s89
    %s107 = sphi 0, %s107
    %s109 = sphi 0, %s107
    %s110 = sphi 0, %s109
    %s124 = sphi 0, %s110
    %s128 = sphi 0, %s128
    %s130 = sphi 0, %s128
    %s131 = sphi 0, %s130
    %s145 = sphi 0, %s131
    %s149 = sphi 0, %s149
    %s151 = sphi 0, %s149
    %s152 = sphi 0, %s151
    %s166 = sphi 0, %s152
    %s170 = sphi 0, %s170
    %s172 = sphi 0, %s170
    %s173 = sphi 0, %s172
    %s187 = sphi 0, %s173
    %s191 = sphi 0, %s191
    %s193 = sphi 0, %s191
    %s194 = sphi 0, %s193
    %s208 = sphi 0, %s194
    %s212 = sphi 0, %s212
    %s214 = sphi 0, %s212
    %s215 = sphi 0, %s214
    %s229 = sphi 0, %s215
    %s233 = sphi 0, %s233
    %s235 = sphi 0, %s233
    %s236 = sphi 0, %s235
    %s250 = sphi 0, %s236
    %s254 = sphi 0, %s254
    %s256 = sphi 0, %s254
    %s257 = sphi 0, %s256
    %s271 = sphi 0, %s257
    %s275 = sphi 0, %s275
    %s277 = sphi 0, %s275
    %s278 = sphi 0, %s277
    %s292 = sphi 0, %s278
    %s296 = sphi 0, %s296
    %s298 = sphi 0, %s296
    %s299 = sphi 0, %s298
    %s313 = sphi 0, %s299
    %s317 = sphi 0, %s317
    %s319 = sphi 0, %s317
    %s320 = sphi 0, %s319
    %s334 = sphi 0, %s320
    %s338 = sphi 0, %s338
    %s340 = sphi 0, %s338
    %s341 = sphi 0, %s340
    %s355 = sphi 0, %s341
    %s359 = sphi 0, %s359
    %s361 = sphi 0, %s359
    %s362 = sphi 0, %s361
    %s376 = sphi 0, %s362
    %s380 = sphi 0, %s380
    %s382 = sphi 0, %s380
    %s383 = sphi 0, %s382
    %s397 = sphi 0, %s383
    %s401 = sphi 0, %s401
    %s403 = sphi 0, %s401
    %s404 = sphi 0, %s403
    %s418 = sphi 0, %s404
    %s424 = sphi 0, %s426
    %s427 = sphi 0, %s424
    %s428 = sphi 0, %s427
    %s444 = sphi 0, %s428
    %s450 = sphi 0, %s452
    %s453 = sphi 0, %s450
    %s454 = sphi 0, %s453
    %s470 = sphi 0, %s454
  $region4: #{hr_module_forward.1} parent=0 // loop_header_branch
    %29 = sbr.rel (%p27) target = $region8
  $region5: #{hr_module_forward.1} parent=0 // loop_body
    %s31 = ssub.s32 %s26, 1
    %s32 = ssub.s32 %s26, 2
    %s33 = sadd.s32 %s26, 1
    %s34 = ssub.s32 %s26, %s33
    %p35 = scmp.eq.s32.totalorder %s34, 0
    %s37 = sadd.s32 %s36, 1
    %s38 = scalar_select %p35, %s36, %s37
    %p41 = pneg %p35
    %p42 = scmp.eq.s32.totalorder %s26, 1
    %p43 = por %p41, %p42
    %p44 = scmp.ne.s32.totalorder %s36, %s39
    %p45 = scmp.eq.s32.totalorder %s26, 0
    %p46 = por %p44, %p45
    %p47 = scmp.ne.s32.totalorder %s36, %s39
    %p48 = scmp.eq.s32.totalorder %s31, 1
    %p49 = por %p47, %p48
    %p50 = scmp.ne.s32.totalorder %s39, %s40
    %p51 = scmp.eq.s32.totalorder %s31, 0
    %p52 = por %p50, %p51
    %p53 = scmp.ne.s32.totalorder %s39, %s40
    %p54 = scmp.eq.s32.totalorder %s32, 1
    %p55 = por %p53, %p54
    %p57 = scmp.ne.s32.totalorder %s40, %s56
    %p58 = scmp.eq.s32.totalorder %s32, 0
    %p59 = por %p57, %p58
    %s60 = ssub.s32 %s26, %s33
    %p61 = scmp.eq.s32.totalorder %s60, 0
    %s63 = sadd.s32 %s62, 1
    %s64 = scalar_select %p61, %s62, %s63
    %p67 = pneg %p61
    %p68 = scmp.eq.s32.totalorder %s26, 1
    %p69 = por %p67, %p68
    %p70 = scmp.ne.s32.totalorder %s62, %s65
    %p71 = scmp.eq.s32.totalorder %s26, 0
    %p72 = por %p70, %p71
    %p73 = scmp.ne.s32.totalorder %s62, %s65
    %p74 = scmp.eq.s32.totalorder %s31, 1
    %p75 = por %p73, %p74
    %p76 = scmp.ne.s32.totalorder %s65, %s66
    %p77 = scmp.eq.s32.totalorder %s31, 0
    %p78 = por %p76, %p77
    %p79 = scmp.ne.s32.totalorder %s65, %s66
    %p80 = scmp.eq.s32.totalorder %s32, 1
    %p81 = por %p79, %p80
    %p83 = scmp.ne.s32.totalorder %s66, %s82
    %p84 = scmp.eq.s32.totalorder %s32, 0
    %p85 = por %p83, %p84
    %s87 = sadd.s32 %s86, 1
    %p90 = scmp.eq.s32.totalorder %s26, 1
    %p91 = scmp.ne.s32.totalorder %s86, %s88
    %p92 = scmp.eq.s32.totalorder %s26, 0
    %p93 = por %p91, %p92
    %p94 = scmp.ne.s32.totalorder %s86, %s88
    %p95 = scmp.eq.s32.totalorder %s31, 1
    %p96 = por %p94, %p95
    %p97 = scmp.ne.s32.totalorder %s88, %s89
    %p98 = scmp.eq.s32.totalorder %s31, 0
    %p99 = por %p97, %p98
    %p100 = scmp.ne.s32.totalorder %s88, %s89
    %p101 = scmp.eq.s32.totalorder %s32, 1
    %p102 = por %p100, %p101
    %p104 = scmp.ne.s32.totalorder %s89, %s103
    %p105 = scmp.eq.s32.totalorder %s32, 0
    %p106 = por %p104, %p105
    %s108 = sadd.s32 %s107, 1
    %p111 = scmp.eq.s32.totalorder %s26, 1
    %p112 = scmp.ne.s32.totalorder %s107, %s109
    %p113 = scmp.eq.s32.totalorder %s26, 0
    %p114 = por %p112, %p113
    %p115 = scmp.ne.s32.totalorder %s107, %s109
    %p116 = scmp.eq.s32.totalorder %s31, 1
    %p117 = por %p115, %p116
    %p118 = scmp.ne.s32.totalorder %s109, %s110
    %p119 = scmp.eq.s32.totalorder %s31, 0
    %p120 = por %p118, %p119
    %p121 = scmp.ne.s32.totalorder %s109, %s110
    %p122 = scmp.eq.s32.totalorder %s32, 1
    %p123 = por %p121, %p122
    %p125 = scmp.ne.s32.totalorder %s110, %s124
    %p126 = scmp.eq.s32.totalorder %s32, 0
    %p127 = por %p125, %p126
    %s129 = sadd.s32 %s128, 1
    %p132 = scmp.eq.s32.totalorder %s26, 1
    %p133 = scmp.ne.s32.totalorder %s128, %s130
    %p134 = scmp.eq.s32.totalorder %s26, 0
    %p135 = por %p133, %p134
    %p136 = scmp.ne.s32.totalorder %s128, %s130
    %p137 = scmp.eq.s32.totalorder %s31, 1
    %p138 = por %p136, %p137
    %p139 = scmp.ne.s32.totalorder %s130, %s131
    %p140 = scmp.eq.s32.totalorder %s31, 0
    %p141 = por %p139, %p140
    %p142 = scmp.ne.s32.totalorder %s130, %s131
    %p143 = scmp.eq.s32.totalorder %s32, 1
    %p144 = por %p142, %p143
    %p146 = scmp.ne.s32.totalorder %s131, %s145
    %p147 = scmp.eq.s32.totalorder %s32, 0
    %p148 = por %p146, %p147
    %s150 = sadd.s32 %s149, 1
    %p153 = scmp.eq.s32.totalorder %s26, 1
    %p154 = scmp.ne.s32.totalorder %s149, %s151
    %p155 = scmp.eq.s32.totalorder %s26, 0
    %p156 = por %p154, %p155
    %p157 = scmp.ne.s32.totalorder %s149, %s151
    %p158 = scmp.eq.s32.totalorder %s31, 1
    %p159 = por %p157, %p158
    %p160 = scmp.ne.s32.totalorder %s151, %s152
    %p161 = scmp.eq.s32.totalorder %s31, 0
    %p162 = por %p160, %p161
    %p163 = scmp.ne.s32.totalorder %s151, %s152
    %p164 = scmp.eq.s32.totalorder %s32, 1
    %p165 = por %p163, %p164
    %p167 = scmp.ne.s32.totalorder %s152, %s166
    %p168 = scmp.eq.s32.totalorder %s32, 0
    %p169 = por %p167, %p168
    %s171 = sadd.s32 %s170, 1
    %p174 = scmp.eq.s32.totalorder %s26, 1
    %p175 = scmp.ne.s32.totalorder %s170, %s172
    %p176 = scmp.eq.s32.totalorder %s26, 0
    %p177 = por %p175, %p176
    %p178 = scmp.ne.s32.totalorder %s170, %s172
    %p179 = scmp.eq.s32.totalorder %s31, 1
    %p180 = por %p178, %p179
    %p181 = scmp.ne.s32.totalorder %s172, %s173
    %p182 = scmp.eq.s32.totalorder %s31, 0
    %p183 = por %p181, %p182
    %p184 = scmp.ne.s32.totalorder %s172, %s173
    %p185 = scmp.eq.s32.totalorder %s32, 1
    %p186 = por %p184, %p185
    %p188 = scmp.ne.s32.totalorder %s173, %s187
    %p189 = scmp.eq.s32.totalorder %s32, 0
    %p190 = por %p188, %p189
    %s192 = sadd.s32 %s191, 1
    %p195 = scmp.eq.s32.totalorder %s26, 1
    %p196 = scmp.ne.s32.totalorder %s191, %s193
    %p197 = scmp.eq.s32.totalorder %s26, 0
    %p198 = por %p196, %p197
    %p199 = scmp.ne.s32.totalorder %s191, %s193
    %p200 = scmp.eq.s32.totalorder %s31, 1
    %p201 = por %p199, %p200
    %p202 = scmp.ne.s32.totalorder %s193, %s194
    %p203 = scmp.eq.s32.totalorder %s31, 0
    %p204 = por %p202, %p203
    %p205 = scmp.ne.s32.totalorder %s193, %s194
    %p206 = scmp.eq.s32.totalorder %s32, 1
    %p207 = por %p205, %p206
    %p209 = scmp.ne.s32.totalorder %s194, %s208
    %p210 = scmp.eq.s32.totalorder %s32, 0
    %p211 = por %p209, %p210
    %s213 = sadd.s32 %s212, 1
    %p216 = scmp.eq.s32.totalorder %s26, 1
    %p217 = scmp.ne.s32.totalorder %s212, %s214
    %p218 = scmp.eq.s32.totalorder %s26, 0
    %p219 = por %p217, %p218
    %p220 = scmp.ne.s32.totalorder %s212, %s214
    %p221 = scmp.eq.s32.totalorder %s31, 1
    %p222 = por %p220, %p221
    %p223 = scmp.ne.s32.totalorder %s214, %s215
    %p224 = scmp.eq.s32.totalorder %s31, 0
    %p225 = por %p223, %p224
    %p226 = scmp.ne.s32.totalorder %s214, %s215
    %p227 = scmp.eq.s32.totalorder %s32, 1
    %p228 = por %p226, %p227
    %p230 = scmp.ne.s32.totalorder %s215, %s229
    %p231 = scmp.eq.s32.totalorder %s32, 0
    %p232 = por %p230, %p231
    %s234 = sadd.s32 %s233, 1
    %p237 = scmp.eq.s32.totalorder %s26, 1
    %p238 = scmp.ne.s32.totalorder %s233, %s235
    %p239 = scmp.eq.s32.totalorder %s26, 0
    %p240 = por %p238, %p239
    %p241 = scmp.ne.s32.totalorder %s233, %s235
    %p242 = scmp.eq.s32.totalorder %s31, 1
    %p243 = por %p241, %p242
    %p244 = scmp.ne.s32.totalorder %s235, %s236
    %p245 = scmp.eq.s32.totalorder %s31, 0
    %p246 = por %p244, %p245
    %p247 = scmp.ne.s32.totalorder %s235, %s236
    %p248 = scmp.eq.s32.totalorder %s32, 1
    %p249 = por %p247, %p248
    %p251 = scmp.ne.s32.totalorder %s236, %s250
    %p252 = scmp.eq.s32.totalorder %s32, 0
    %p253 = por %p251, %p252
    %s255 = sadd.s32 %s254, 1
    %p258 = scmp.eq.s32.totalorder %s26, 1
    %p259 = scmp.ne.s32.totalorder %s254, %s256
    %p260 = scmp.eq.s32.totalorder %s26, 0
    %p261 = por %p259, %p260
    %p262 = scmp.ne.s32.totalorder %s254, %s256
    %p263 = scmp.eq.s32.totalorder %s31, 1
    %p264 = por %p262, %p263
    %p265 = scmp.ne.s32.totalorder %s256, %s257
    %p266 = scmp.eq.s32.totalorder %s31, 0
    %p267 = por %p265, %p266
    %p268 = scmp.ne.s32.totalorder %s256, %s257
    %p269 = scmp.eq.s32.totalorder %s32, 1
    %p270 = por %p268, %p269
    %p272 = scmp.ne.s32.totalorder %s257, %s271
    %p273 = scmp.eq.s32.totalorder %s32, 0
    %p274 = por %p272, %p273
    %s276 = sadd.s32 %s275, 1
    %p279 = scmp.eq.s32.totalorder %s26, 1
    %p280 = scmp.ne.s32.totalorder %s275, %s277
    %p281 = scmp.eq.s32.totalorder %s26, 0
    %p282 = por %p280, %p281
    %p283 = scmp.ne.s32.totalorder %s275, %s277
    %p284 = scmp.eq.s32.totalorder %s31, 1
    %p285 = por %p283, %p284
    %p286 = scmp.ne.s32.totalorder %s277, %s278
    %p287 = scmp.eq.s32.totalorder %s31, 0
    %p288 = por %p286, %p287
    %p289 = scmp.ne.s32.totalorder %s277, %s278
    %p290 = scmp.eq.s32.totalorder %s32, 1
    %p291 = por %p289, %p290
    %p293 = scmp.ne.s32.totalorder %s278, %s292
    %p294 = scmp.eq.s32.totalorder %s32, 0
    %p295 = por %p293, %p294
    %s297 = sadd.s32 %s296, 1
    %p300 = scmp.eq.s32.totalorder %s26, 1
    %p301 = scmp.ne.s32.totalorder %s296, %s298
    %p302 = scmp.eq.s32.totalorder %s26, 0
    %p303 = por %p301, %p302
    %p304 = scmp.ne.s32.totalorder %s296, %s298
    %p305 = scmp.eq.s32.totalorder %s31, 1
    %p306 = por %p304, %p305
    %p307 = scmp.ne.s32.totalorder %s298, %s299
    %p308 = scmp.eq.s32.totalorder %s31, 0
    %p309 = por %p307, %p308
    %p310 = scmp.ne.s32.totalorder %s298, %s299
    %p311 = scmp.eq.s32.totalorder %s32, 1
    %p312 = por %p310, %p311
    %p314 = scmp.ne.s32.totalorder %s299, %s313
    %p315 = scmp.eq.s32.totalorder %s32, 0
    %p316 = por %p314, %p315
    %s318 = sadd.s32 %s317, 1
    %p321 = scmp.eq.s32.totalorder %s26, 1
    %p322 = scmp.ne.s32.totalorder %s317, %s319
    %p323 = scmp.eq.s32.totalorder %s26, 0
    %p324 = por %p322, %p323
    %p325 = scmp.ne.s32.totalorder %s317, %s319
    %p326 = scmp.eq.s32.totalorder %s31, 1
    %p327 = por %p325, %p326
    %p328 = scmp.ne.s32.totalorder %s319, %s320
    %p329 = scmp.eq.s32.totalorder %s31, 0
    %p330 = por %p328, %p329
    %p331 = scmp.ne.s32.totalorder %s319, %s320
    %p332 = scmp.eq.s32.totalorder %s32, 1
    %p333 = por %p331, %p332
    %p335 = scmp.ne.s32.totalorder %s320, %s334
    %p336 = scmp.eq.s32.totalorder %s32, 0
    %p337 = por %p335, %p336
    %s339 = sadd.s32 %s338, 1
    %p342 = scmp.eq.s32.totalorder %s26, 1
    %p343 = scmp.ne.s32.totalorder %s338, %s340
    %p344 = scmp.eq.s32.totalorder %s26, 0
    %p345 = por %p343, %p344
    %p346 = scmp.ne.s32.totalorder %s338, %s340
    %p347 = scmp.eq.s32.totalorder %s31, 1
    %p348 = por %p346, %p347
    %p349 = scmp.ne.s32.totalorder %s340, %s341
    %p350 = scmp.eq.s32.totalorder %s31, 0
    %p351 = por %p349, %p350
    %p352 = scmp.ne.s32.totalorder %s340, %s341
    %p353 = scmp.eq.s32.totalorder %s32, 1
    %p354 = por %p352, %p353
    %p356 = scmp.ne.s32.totalorder %s341, %s355
    %p357 = scmp.eq.s32.totalorder %s32, 0
    %p358 = por %p356, %p357
    %s360 = sadd.s32 %s359, 1
    %p363 = scmp.eq.s32.totalorder %s26, 1
    %p364 = scmp.ne.s32.totalorder %s359, %s361
    %p365 = scmp.eq.s32.totalorder %s26, 0
    %p366 = por %p364, %p365
    %p367 = scmp.ne.s32.totalorder %s359, %s361
    %p368 = scmp.eq.s32.totalorder %s31, 1
    %p369 = por %p367, %p368
    %p370 = scmp.ne.s32.totalorder %s361, %s362
    %p371 = scmp.eq.s32.totalorder %s31, 0
    %p372 = por %p370, %p371
    %p373 = scmp.ne.s32.totalorder %s361, %s362
    %p374 = scmp.eq.s32.totalorder %s32, 1
    %p375 = por %p373, %p374
    %p377 = scmp.ne.s32.totalorder %s362, %s376
    %p378 = scmp.eq.s32.totalorder %s32, 0
    %p379 = por %p377, %p378
    %s381 = sadd.s32 %s380, 1
    %p384 = scmp.eq.s32.totalorder %s26, 1
    %p385 = scmp.ne.s32.totalorder %s380, %s382
    %p386 = scmp.eq.s32.totalorder %s26, 0
    %p387 = por %p385, %p386
    %p388 = scmp.ne.s32.totalorder %s380, %s382
    %p389 = scmp.eq.s32.totalorder %s31, 1
    %p390 = por %p388, %p389
    %p391 = scmp.ne.s32.totalorder %s382, %s383
    %p392 = scmp.eq.s32.totalorder %s31, 0
    %p393 = por %p391, %p392
    %p394 = scmp.ne.s32.totalorder %s382, %s383
    %p395 = scmp.eq.s32.totalorder %s32, 1
    %p396 = por %p394, %p395
    %p398 = scmp.ne.s32.totalorder %s383, %s397
    %p399 = scmp.eq.s32.totalorder %s32, 0
    %p400 = por %p398, %p399
    %s402 = sadd.s32 %s401, 1
    %p405 = scmp.eq.s32.totalorder %s26, 1
    %p406 = scmp.ne.s32.totalorder %s401, %s403
    %p407 = scmp.eq.s32.totalorder %s26, 0
    %p408 = por %p406, %p407
    %p409 = scmp.ne.s32.totalorder %s401, %s403
    %p410 = scmp.eq.s32.totalorder %s31, 1
    %p411 = por %p409, %p410
    %p412 = scmp.ne.s32.totalorder %s403, %s404
    %p413 = scmp.eq.s32.totalorder %s31, 0
    %p414 = por %p412, %p413
    %p415 = scmp.ne.s32.totalorder %s403, %s404
    %p416 = scmp.eq.s32.totalorder %s32, 1
    %p417 = por %p415, %p416
    %p419 = scmp.ne.s32.totalorder %s404, %s418
    %p420 = scmp.eq.s32.totalorder %s32, 0
    %p421 = por %p419, %p420
    %s422 = ssub.s32 %s26, %s33
    %p423 = scmp.eq.s32.totalorder %s422, 0
    %s425 = sadd.s32 %s424, 1
    %s426 = scalar_select %p423, %s424, %s425
    %p429 = pneg %p423
    %p430 = scmp.eq.s32.totalorder %s26, 1
    %p431 = por %p429, %p430
    %p432 = scmp.ne.s32.totalorder %s424, %s427
    %p433 = scmp.eq.s32.totalorder %s26, 0
    %p434 = por %p432, %p433
    %p435 = scmp.ne.s32.totalorder %s424, %s427
    %p436 = scmp.eq.s32.totalorder %s31, 1
    %p437 = por %p435, %p436
    %p438 = scmp.ne.s32.totalorder %s427, %s428
    %p439 = scmp.eq.s32.totalorder %s31, 0
    %p440 = por %p438, %p439
    %p441 = scmp.ne.s32.totalorder %s427, %s428
    %p442 = scmp.eq.s32.totalorder %s32, 1
    %p443 = por %p441, %p442
    %p445 = scmp.ne.s32.totalorder %s428, %s444
    %p446 = scmp.eq.s32.totalorder %s32, 0
    %p447 = por %p445, %p446
    %s448 = ssub.s32 %s26, %s33
    %p449 = scmp.eq.s32.totalorder %s448, 0
    %s451 = sadd.s32 %s450, 1
    %s452 = scalar_select %p449, %s450, %s451
    %p455 = pneg %p449
    %p456 = scmp.eq.s32.totalorder %s26, 1
    %p457 = por %p455, %p456
    %p458 = scmp.ne.s32.totalorder %s450, %s453
    %p459 = scmp.eq.s32.totalorder %s26, 0
    %p460 = por %p458, %p459
    %p461 = scmp.ne.s32.totalorder %s450, %s453
    %p462 = scmp.eq.s32.totalorder %s31, 1
    %p463 = por %p461, %p462
    %p464 = scmp.ne.s32.totalorder %s453, %s454
    %p465 = scmp.eq.s32.totalorder %s31, 0
    %p466 = por %p464, %p465
    %p467 = scmp.ne.s32.totalorder %s453, %s454
    %p468 = scmp.eq.s32.totalorder %s32, 1
    %p469 = por %p467, %p468
    %p471 = scmp.ne.s32.totalorder %s454, %s470
    %p472 = scmp.eq.s32.totalorder %s32, 0
    %p473 = por %p471, %p472
    %p474 = scmp.le.s32.totalorder 1, %s26
    %p475 = scmp.lt.s32.totalorder %s26, 3
    %p476 = pnand %p474, %p475
    %p477 = pneg %p476
    // Predicated region
    $region9: #{hr_module_forward.1} parent=5 // pred_check
      _
    $region10: #{hr_module_forward.1} parent=5 // pred_check_branch
      %479 = sbr.rel (%p476) target = $region12
    $region11: #{hr_module_forward.1} parent=5 // pred_region
      %s480 = ssub.s32 %s26, 1
      // Predicated region
      $region13: #{hr_module_forward.1} parent=11 // pred_check
        %p481 = pneg %p99
      $region14: #{hr_module_forward.1} parent=11 // pred_check_branch
        %483 = sbr.rel (%p481) target = $region16
      $region15: #{hr_module_forward.1} parent=11 // pred_region
        _
      $region16: #{hr_module_forward.1} parent=11 // pred_fallthru
        _
      // Predicated region
      $region17: #{hr_module_forward.1} parent=11 // pred_check
        %p484 = pneg %p120
      $region18: #{hr_module_forward.1} parent=11 // pred_check_branch
        %486 = sbr.rel (%p484) target = $region20
      $region19: #{hr_module_forward.1} parent=11 // pred_region
        _
      $region20: #{hr_module_forward.1} parent=11 // pred_fallthru
        _
      // Predicated region
      $region21: #{hr_module_forward.1} parent=11 // pred_check
        %p487 = pneg %p141
      $region22: #{hr_module_forward.1} parent=11 // pred_check_branch
        %489 = sbr.rel (%p487) target = $region24
      $region23: #{hr_module_forward.1} parent=11 // pred_region
        _
      $region24: #{hr_module_forward.1} parent=11 // pred_fallthru
        _
      // Predicated region
      $region25: #{hr_module_forward.1} parent=11 // pred_check
        %p490 = pneg %p162
      $region26: #{hr_module_forward.1} parent=11 // pred_check_branch
        %492 = sbr.rel (%p490) target = $region28
      $region27: #{hr_module_forward.1} parent=11 // pred_region
        _
      $region28: #{hr_module_forward.1} parent=11 // pred_fallthru
        _
      // Predicated region
      $region29: #{hr_module_forward.1} parent=11 // pred_check
        %p493 = pneg %p183
      $region30: #{hr_module_forward.1} parent=11 // pred_check_branch
        %495 = sbr.rel (%p493) target = $region32
      $region31: #{hr_module_forward.1} parent=11 // pred_region
        _
      $region32: #{hr_module_forward.1} parent=11 // pred_fallthru
        _
      // Predicated region
      $region33: #{hr_module_forward.1} parent=11 // pred_check
        %p496 = pneg %p204
      $region34: #{hr_module_forward.1} parent=11 // pred_check_branch
        %498 = sbr.rel (%p496) target = $region36
      $region35: #{hr_module_forward.1} parent=11 // pred_region
        _
      $region36: #{hr_module_forward.1} parent=11 // pred_fallthru
        _
      // Predicated region
      $region37: #{hr_module_forward.1} parent=11 // pred_check
        %p499 = pneg %p225
      $region38: #{hr_module_forward.1} parent=11 // pred_check_branch
        %501 = sbr.rel (%p499) target = $region40
      $region39: #{hr_module_forward.1} parent=11 // pred_region
        _
      $region40: #{hr_module_forward.1} parent=11 // pred_fallthru
        _
      // Predicated region
      $region41: #{hr_module_forward.1} parent=11 // pred_check
        %p502 = pneg %p246
      $region42: #{hr_module_forward.1} parent=11 // pred_check_branch
        %504 = sbr.rel (%p502) target = $region44
      $region43: #{hr_module_forward.1} parent=11 // pred_region
        _
      $region44: #{hr_module_forward.1} parent=11 // pred_fallthru
        _
      // Predicated region
      $region45: #{hr_module_forward.1} parent=11 // pred_check
        %p505 = pneg %p267
      $region46: #{hr_module_forward.1} parent=11 // pred_check_branch
        %507 = sbr.rel (%p505) target = $region48
      $region47: #{hr_module_forward.1} parent=11 // pred_region
        _
      $region48: #{hr_module_forward.1} parent=11 // pred_fallthru
        _
      // Predicated region
      $region49: #{hr_module_forward.1} parent=11 // pred_check
        %p508 = pneg %p288
      $region50: #{hr_module_forward.1} parent=11 // pred_check_branch
        %510 = sbr.rel (%p508) target = $region52
      $region51: #{hr_module_forward.1} parent=11 // pred_region
        _
      $region52: #{hr_module_forward.1} parent=11 // pred_fallthru
        _
      // Predicated region
      $region53: #{hr_module_forward.1} parent=11 // pred_check
        %p511 = pneg %p309
      $region54: #{hr_module_forward.1} parent=11 // pred_check_branch
        %513 = sbr.rel (%p511) target = $region56
      $region55: #{hr_module_forward.1} parent=11 // pred_region
        _
      $region56: #{hr_module_forward.1} parent=11 // pred_fallthru
        _
      // Predicated region
      $region57: #{hr_module_forward.1} parent=11 // pred_check
        %p514 = pneg %p330
      $region58: #{hr_module_forward.1} parent=11 // pred_check_branch
        %516 = sbr.rel (%p514) target = $region60
      $region59: #{hr_module_forward.1} parent=11 // pred_region
        _
      $region60: #{hr_module_forward.1} parent=11 // pred_fallthru
        _
      // Predicated region
      $region61: #{hr_module_forward.1} parent=11 // pred_check
        %p517 = pneg %p351
      $region62: #{hr_module_forward.1} parent=11 // pred_check_branch
        %519 = sbr.rel (%p517) target = $region64
      $region63: #{hr_module_forward.1} parent=11 // pred_region
        _
      $region64: #{hr_module_forward.1} parent=11 // pred_fallthru
        _
      // Predicated region
      $region65: #{hr_module_forward.1} parent=11 // pred_check
        %p520 = pneg %p372
      $region66: #{hr_module_forward.1} parent=11 // pred_check_branch
        %522 = sbr.rel (%p520) target = $region68
      $region67: #{hr_module_forward.1} parent=11 // pred_region
        _
      $region68: #{hr_module_forward.1} parent=11 // pred_fallthru
        _
      // Predicated region
      $region69: #{hr_module_forward.1} parent=11 // pred_check
        %p523 = pneg %p393
      $region70: #{hr_module_forward.1} parent=11 // pred_check_branch
        %525 = sbr.rel (%p523) target = $region72
      $region71: #{hr_module_forward.1} parent=11 // pred_region
        _
      $region72: #{hr_module_forward.1} parent=11 // pred_fallthru
        _
      // Predicated region
      $region73: #{hr_module_forward.1} parent=11 // pred_check
        %p526 = pneg %p414
      $region74: #{hr_module_forward.1} parent=11 // pred_check_branch
        %528 = sbr.rel (%p526) target = $region76
      $region75: #{hr_module_forward.1} parent=11 // pred_region
        _
      $region76: #{hr_module_forward.1} parent=11 // pred_fallthru
        _
    $region12: #{hr_module_forward.1} parent=5 // pred_fallthru
      _
    %p529 = scmp.lt.s32.totalorder %s26, 2
    // Predicated region
    $region77: #{hr_module_forward.1} parent=5 // pred_check
      %p530 = pneg %p529
    $region78: #{hr_module_forward.1} parent=5 // pred_check_branch
      %532 = sbr.rel (%p530) target = $region80
    $region79: #{hr_module_forward.1} parent=5 // pred_region
      // Predicated region
      $region81: #{hr_module_forward.1} parent=79 // pred_check
        %p533 = pneg %p46
      $region82: #{hr_module_forward.1} parent=79 // pred_check_branch
        %535 = sbr.rel (%p533) target = $region84
      $region83: #{hr_module_forward.1} parent=79 // pred_region
        %p536 = scmp.lt.s32.totalorder %s26, 1
        %s537 = scalar_select %p536, %s26, 1
        %s538 = smul.addr %s537, 3
        %s539 = smul.addr %s538, 8
        %s540 = scalar_lea.vmem %s0, %s539
      $region84: #{hr_module_forward.1} parent=79 // pred_fallthru
        _
      // Predicated region
      $region85: #{hr_module_forward.1} parent=79 // pred_check
        %p541 = pneg %p72
      $region86: #{hr_module_forward.1} parent=79 // pred_check_branch
        %543 = sbr.rel (%p541) target = $region88
      $region87: #{hr_module_forward.1} parent=79 // pred_region
        %p544 = scmp.lt.s32.totalorder %s26, 1
        %s545 = scalar_select %p544, %s26, 1
        %s546 = smul.addr %s545, 8
        %s547 = scalar_lea.vmem %s1, %s546
      $region88: #{hr_module_forward.1} parent=79 // pred_fallthru
        _
    $region80: #{hr_module_forward.1} parent=5 // pred_fallthru
      _
    %p548 = scmp.le.s32.totalorder 1, %s26
    %p549 = scmp.lt.s32.totalorder %s26, 3
    %p550 = pnand %p548, %p549
    %p551 = pneg %p550
    // Predicated region
    $region89: #{hr_module_forward.1} parent=5 // pred_check
      _
    $region90: #{hr_module_forward.1} parent=5 // pred_check_branch
      %553 = sbr.rel (%p550) target = $region92
    $region91: #{hr_module_forward.1} parent=5 // pred_region
      %s554 = ssub.s32 %s26, 1
      %p555 = scmp.lt.s32.totalorder %s31, 1
      %s556 = scalar_select %p555, %s31, 1
      %s557 = smul.addr %s556, 3
      %s558 = smul.addr %s557, 8
      %s559 = scalar_lea.vmem %s0, %s558
      %p560 = pneg %p52
      %p561 = pneg %p49
      %p562 = scmp.lt.s32.totalorder %s31, 1
      %s563 = scalar_select %p562, %s31, 1
      %s564 = smul.addr %s563, 8
      %s565 = scalar_lea.vmem %s1, %s564
      %p566 = pneg %p78
      %p567 = pneg %p75
      %p568 = pneg %p99
      %p569 = pneg %p96
      %p570 = pneg %p120
      %p571 = pneg %p117
      %p572 = pneg %p141
      %p573 = pneg %p138
      %p574 = pneg %p162
      %p575 = pneg %p159
      %p576 = pneg %p183
      %p577 = pneg %p180
      %p578 = pneg %p204
      %p579 = pneg %p201
      %p580 = pneg %p225
      %p581 = pneg %p222
      %p582 = pneg %p246
      %p583 = pneg %p243
      %p584 = pneg %p267
      %p585 = pneg %p264
      %p586 = pneg %p288
      %p587 = pneg %p285
      %p588 = pneg %p309
      %p589 = pneg %p306
      %p590 = pneg %p330
      %p591 = pneg %p327
      %p592 = pneg %p351
      %p593 = pneg %p348
      %p594 = pneg %p372
      %p595 = pneg %p369
      %p596 = pneg %p393
      %p597 = pneg %p390
      %p598 = pneg %p414
      %p599 = pneg %p411
      %p600 = pneg %p440
      %p601 = pneg %p437
      %p602 = scmp.lt.s32.totalorder %s31, 1
      %s603 = scalar_select %p602, %s31, 1
      %s604 = smul.addr %s603, 3
      %s605 = smul.addr %s604, 8
      %s606 = scalar_lea.vmem %s18, %s605
      %p607 = pneg %p466
      %p608 = pneg %p463
      %p609 = scmp.lt.s32.totalorder %s31, 1
      %s610 = scalar_select %p609, %s31, 1
      %s611 = smul.addr %s610, 8
      %s612 = scalar_lea.vmem %s19, %s611
      %p613 = scmp.lt.s32.totalorder %s31, 1
      %s614 = scalar_select %p613, %s31, 1
      %s615 = smul.addr %s614, 3
      %s616 = smul.addr %s615, 8
      %s617 = scalar_lea.vmem %s0, %s616
      %p618 = scmp.lt.s32.totalorder %s31, 1
      %s619 = scalar_select %p618, %s31, 1
      %s620 = smul.addr %s619, 8
      %s621 = scalar_lea.vmem %s1, %s620
      %p622 = scmp.lt.s32.totalorder %s31, 1
      %s623 = scalar_select %p622, %s31, 1
      %s624 = smul.addr %s623, 3
      %s625 = smul.addr %s624, 8
      %s626 = scalar_lea.vmem %s18, %s625
      %p627 = scmp.lt.s32.totalorder %s31, 1
      %s628 = scalar_select %p627, %s31, 1
      %s629 = smul.addr %s628, 8
      %s630 = scalar_lea.vmem %s19, %s629
      %v631 = vld [vmem:[%s617] sm:$0xff]
      %v632 = vld [vmem:[%s617 + $0x8] sm:$0xff]
      %v633 = vld [vmem:[%s617 + $0x10] sm:$0xff]
      %v634 = vld [vmem:[%s621] sm:$0xff]
      %v635 = vld [vmem:[%s16] sm:$0x7]
      %v636 = vld [vmem:[%s17] sm:$0x1]
      %637 = vrot.lane.b32.xlu0 %v631, 19
      %v638 = vpop.permute.xlu0 %637
      %639 = vrot.lane.b32.xlu0 %v632, 19
      %v640 = vpop.permute.xlu0 %639
      %641 = vrot.lane.b32.xlu0 %v633, 19
      %v642 = vpop.permute.xlu0 %641
      %v643 = vlaneseq
      %v644 = vand.u32 %v643, 127
      %vm645 = vcmp.lt.s32.totalorder %v644, 19
      %v646 = vsel %vm645, %v640, %v642
      %v647 = vsel %vm645, %v638, %v640
      %v648 = vsel %vm645, %v642, %v638
      %v649 = vld [vmem:[%s2] sm:$0xff]
      %650 = vrot.lane.b32.xlu0 %v631, 18
      %v651 = vpop.permute.xlu0 %650
      %652 = vrot.lane.b32.xlu0 %v632, 18
      %v653 = vpop.permute.xlu0 %652
      %654 = vrot.lane.b32.xlu0 %v633, 18
      %v655 = vpop.permute.xlu0 %654
      %vm656 = vcmp.lt.s32.totalorder %v644, 18
      %v657 = vsel %vm656, %v653, %v655
      %v658 = vsel %vm656, %v651, %v653
      %v659 = vsel %vm656, %v655, %v651
      %s660 = scalar_lea.vmem %s2, 8
      %v661 = vld [vmem:[%s660] sm:$0xff]
      %vm662 = vcmask 64512
      %v664 = vsel %vm662, %v661, 0
      %666 = vmatpush.msra.mxu0 0.0
      %667 = vmatpush.msra.mxu0 0.0
      %668 = vmatpush.msra.mxu0 0.0
      %669 = vmatpush.msra.mxu0 0.0
      %670 = vmatpush.msra.mxu0 0.0
      %671 = vmatpush.msra.mxu0 0.0
      %672 = vmatpush.msra.mxu0 0.0
      %673 = vmatpush.msra.mxu0 0.0
      %674 = vmatpush.msra.mxu0 0.0
      %675 = vmatpush.msra.mxu0 0.0
      %676 = vmatpush.msra.mxu0 0.0
      %677 = vmatpush.msra.mxu0 0.0
      %678 = vmatpush.msra.mxu0 0.0
      %679 = vmatpush.msra.mxu0 0.0
      %680 = vmatpush.msra.mxu0 0.0
      %681 = vmatpush.msra.mxu0 %v659
      %682 = vmatmul.f32.gmra.mxu0 %v664
      %v683 = vpop.f32.mrf.mxu0
      %v684 = vadd.f32 0.0, %v683
      %685 = vdwg.mxu0
      %686 = vmatpush.msra.mxu0 0.0
      %687 = vmatpush.msra.mxu0 0.0
      %688 = vmatpush.msra.mxu0 0.0
      %689 = vmatpush.msra.mxu0 0.0
      %690 = vmatpush.msra.mxu0 0.0
      %691 = vmatpush.msra.mxu0 0.0
      %692 = vmatpush.msra.mxu0 0.0
      %693 = vmatpush.msra.mxu0 0.0
      %694 = vmatpush.msra.mxu0 0.0
      %695 = vmatpush.msra.mxu0 0.0
      %696 = vmatpush.msra.mxu0 0.0
      %697 = vmatpush.msra.mxu0 0.0
      %698 = vmatpush.msra.mxu0 0.0
      %699 = vmatpush.msra.mxu0 0.0
      %700 = vmatpush.msra.mxu0 0.0
      %701 = vmatpush.msra.mxu0 %v658
      %702 = vmatmul.f32.gmra.mxu0 %v664
      %v703 = vpop.f32.mrf.mxu0
      %v704 = vadd.f32 0.0, %v703
      %705 = vdwg.mxu0
      %706 = vmatpush.msra.mxu0 0.0
      %707 = vmatpush.msra.mxu0 0.0
      %708 = vmatpush.msra.mxu0 0.0
      %709 = vmatpush.msra.mxu0 0.0
      %710 = vmatpush.msra.mxu0 0.0
      %711 = vmatpush.msra.mxu0 0.0
      %712 = vmatpush.msra.mxu0 0.0
      %713 = vmatpush.msra.mxu0 0.0
      %714 = vmatpush.msra.mxu0 0.0
      %715 = vmatpush.msra.mxu0 0.0
      %716 = vmatpush.msra.mxu0 0.0
      %717 = vmatpush.msra.mxu0 0.0
      %718 = vmatpush.msra.mxu0 0.0
      %719 = vmatpush.msra.mxu0 0.0
      %720 = vmatpush.msra.mxu0 0.0
      %721 = vmatpush.msra.mxu0 %v657
      %722 = vmatmul.f32.gmra.mxu0 %v664
      %v723 = vpop.f32.mrf.mxu0
      %v724 = vadd.f32 0.0, %v723
      %725 = vdwg.mxu0
      %v727 = vsel %vm662, %v649, 0
      %729 = vmatpush.msra.mxu0 0.0
      %730 = vmatpush.msra.mxu0 0.0
      %731 = vmatpush.msra.mxu0 0.0
      %732 = vmatpush.msra.mxu0 0.0
      %733 = vmatpush.msra.mxu0 0.0
      %734 = vmatpush.msra.mxu0 0.0
      %735 = vmatpush.msra.mxu0 0.0
      %736 = vmatpush.msra.mxu0 0.0
      %737 = vmatpush.msra.mxu0 0.0
      %738 = vmatpush.msra.mxu0 0.0
      %739 = vmatpush.msra.mxu0 0.0
      %740 = vmatpush.msra.mxu0 0.0
      %741 = vmatpush.msra.mxu0 0.0
      %742 = vmatpush.msra.mxu0 0.0
      %743 = vmatpush.msra.mxu0 0.0
      %744 = vmatpush.msra.mxu0 %v648
      %745 = vmatmul.f32.gmra.mxu0 %v727
      %v746 = vpop.f32.mrf.mxu0
      %v747 = vadd.f32 %v684, %v746
      %748 = vdwg.mxu0
      %749 = vmatpush.msra.mxu0 0.0
      %750 = vmatpush.msra.mxu0 0.0
      %751 = vmatpush.msra.mxu0 0.0
      %752 = vmatpush.msra.mxu0 0.0
      %753 = vmatpush.msra.mxu0 0.0
      %754 = vmatpush.msra.mxu0 0.0
      %755 = vmatpush.msra.mxu0 0.0
      %756 = vmatpush.msra.mxu0 0.0
      %757 = vmatpush.msra.mxu0 0.0
      %758 = vmatpush.msra.mxu0 0.0
      %759 = vmatpush.msra.mxu0 0.0
      %760 = vmatpush.msra.mxu0 0.0
      %761 = vmatpush.msra.mxu0 0.0
      %762 = vmatpush.msra.mxu0 0.0
      %763 = vmatpush.msra.mxu0 0.0
      %764 = vmatpush.msra.mxu0 %v647
      %765 = vmatmul.f32.gmra.mxu0 %v727
      %v766 = vpop.f32.mrf.mxu0
      %v767 = vadd.f32 %v704, %v766
      %768 = vdwg.mxu0
      %769 = vmatpush.msra.mxu0 0.0
      %770 = vmatpush.msra.mxu0 0.0
      %771 = vmatpush.msra.mxu0 0.0
      %772 = vmatpush.msra.mxu0 0.0
      %773 = vmatpush.msra.mxu0 0.0
      %774 = vmatpush.msra.mxu0 0.0
      %775 = vmatpush.msra.mxu0 0.0
      %776 = vmatpush.msra.mxu0 0.0
      %777 = vmatpush.msra.mxu0 0.0
      %778 = vmatpush.msra.mxu0 0.0
      %779 = vmatpush.msra.mxu0 0.0
      %780 = vmatpush.msra.mxu0 0.0
      %781 = vmatpush.msra.mxu0 0.0
      %782 = vmatpush.msra.mxu0 0.0
      %783 = vmatpush.msra.mxu0 0.0
      %784 = vmatpush.msra.mxu0 %v646
      %785 = vmatmul.f32.gmra.mxu0 %v727
      %v786 = vpop.f32.mrf.mxu0
      %v787 = vadd.f32 %v724, %v786
      %788 = vdwg.mxu0
      %789 = vrot.lane.b32.xlu0 %v631, 17
      %v790 = vpop.permute.xlu0 %789
      %791 = vrot.lane.b32.xlu0 %v632, 17
      %v792 = vpop.permute.xlu0 %791
      %793 = vrot.lane.b32.xlu0 %v633, 17
      %v794 = vpop.permute.xlu0 %793
      %vm795 = vcmp.lt.s32.totalorder %v644, 17
      %v796 = vsel %vm795, %v792, %v794
      %v797 = vsel %vm795, %v790, %v792
      %v798 = vsel %vm795, %v794, %v790
      %s799 = scalar_lea.vmem %s2, 16
      %v800 = vld [vmem:[%s799] sm:$0xff]
      %v802 = vsel %vm662, %v800, 0
      %804 = vmatpush.msra.mxu0 0.0
      %805 = vmatpush.msra.mxu0 0.0
      %806 = vmatpush.msra.mxu0 0.0
      %807 = vmatpush.msra.mxu0 0.0
      %808 = vmatpush.msra.mxu0 0.0
      %809 = vmatpush.msra.mxu0 0.0
      %810 = vmatpush.msra.mxu0 0.0
      %811 = vmatpush.msra.mxu0 0.0
      %812 = vmatpush.msra.mxu0 0.0
      %813 = vmatpush.msra.mxu0 0.0
      %814 = vmatpush.msra.mxu0 0.0
      %815 = vmatpush.msra.mxu0 0.0
      %816 = vmatpush.msra.mxu0 0.0
      %817 = vmatpush.msra.mxu0 0.0
      %818 = vmatpush.msra.mxu0 0.0
      %819 = vmatpush.msra.mxu0 %v798
      %820 = vmatmul.f32.gmra.mxu0 %v802
      %v821 = vpop.f32.mrf.mxu0
      %v822 = vadd.f32 0.0, %v821
      %823 = vdwg.mxu0
      %824 = vmatpush.msra.mxu0 0.0
      %825 = vmatpush.msra.mxu0 0.0
      %826 = vmatpush.msra.mxu0 0.0
      %827 = vmatpush.msra.mxu0 0.0
      %828 = vmatpush.msra.mxu0 0.0
      %829 = vmatpush.msra.mxu0 0.0
      %830 = vmatpush.msra.mxu0 0.0
      %831 = vmatpush.msra.mxu0 0.0
      %832 = vmatpush.msra.mxu0 0.0
      %833 = vmatpush.msra.mxu0 0.0
      %834 = vmatpush.msra.mxu0 0.0
      %835 = vmatpush.msra.mxu0 0.0
      %836 = vmatpush.msra.mxu0 0.0
      %837 = vmatpush.msra.mxu0 0.0
      %838 = vmatpush.msra.mxu0 0.0
      %839 = vmatpush.msra.mxu0 %v797
      %840 = vmatmul.f32.gmra.mxu0 %v802
      %v841 = vpop.f32.mrf.mxu0
      %v842 = vadd.f32 0.0, %v841
      %843 = vdwg.mxu0
      %844 = vmatpush.msra.mxu0 0.0
      %845 = vmatpush.msra.mxu0 0.0
      %846 = vmatpush.msra.mxu0 0.0
      %847 = vmatpush.msra.mxu0 0.0
      %848 = vmatpush.msra.mxu0 0.0
      %849 = vmatpush.msra.mxu0 0.0
      %850 = vmatpush.msra.mxu0 0.0
      %851 = vmatpush.msra.mxu0 0.0
      %852 = vmatpush.msra.mxu0 0.0
      %853 = vmatpush.msra.mxu0 0.0
      %854 = vmatpush.msra.mxu0 0.0
      %855 = vmatpush.msra.mxu0 0.0
      %856 = vmatpush.msra.mxu0 0.0
      %857 = vmatpush.msra.mxu0 0.0
      %858 = vmatpush.msra.mxu0 0.0
      %859 = vmatpush.msra.mxu0 %v796
      %860 = vmatmul.f32.gmra.mxu0 %v802
      %v861 = vpop.f32.mrf.mxu0
      %v862 = vadd.f32 0.0, %v861
      %863 = vdwg.mxu0
      %v864 = vadd.f32 %v747, %v822
      %v865 = vadd.f32 %v767, %v842
      %v866 = vadd.f32 %v787, %v862
      %867 = vrot.lane.b32.xlu0 %v631, 1
      %v868 = vpop.permute.xlu0 %867
      %869 = vrot.lane.b32.xlu0 %v632, 1
      %v870 = vpop.permute.xlu0 %869
      %871 = vrot.lane.b32.xlu0 %v633, 1
      %v872 = vpop.permute.xlu0 %871
      %vm873 = vcmp.lt.s32.totalorder %v644, 1
      %v874 = vsel %vm873, %v870, %v872
      %v875 = vsel %vm873, %v868, %v870
      %v876 = vsel %vm873, %v872, %v868
      %s877 = scalar_lea.vmem %s2, 24
      %v878 = vld [vmem:[%s877] sm:$0xff]
      %v880 = vsel %vm662, %v878, 0
      %882 = vmatpush.msra.mxu0 0.0
      %883 = vmatpush.msra.mxu0 0.0
      %884 = vmatpush.msra.mxu0 0.0
      %885 = vmatpush.msra.mxu0 0.0
      %886 = vmatpush.msra.mxu0 0.0
      %887 = vmatpush.msra.mxu0 0.0
      %888 = vmatpush.msra.mxu0 0.0
      %889 = vmatpush.msra.mxu0 0.0
      %890 = vmatpush.msra.mxu0 0.0
      %891 = vmatpush.msra.mxu0 0.0
      %892 = vmatpush.msra.mxu0 0.0
      %893 = vmatpush.msra.mxu0 0.0
      %894 = vmatpush.msra.mxu0 0.0
      %895 = vmatpush.msra.mxu0 0.0
      %896 = vmatpush.msra.mxu0 0.0
      %897 = vmatpush.msra.mxu0 %v876
      %898 = vmatmul.f32.gmra.mxu0 %v880
      %v899 = vpop.f32.mrf.mxu0
      %v900 = vadd.f32 0.0, %v899
      %901 = vdwg.mxu0
      %902 = vmatpush.msra.mxu0 0.0
      %903 = vmatpush.msra.mxu0 0.0
      %904 = vmatpush.msra.mxu0 0.0
      %905 = vmatpush.msra.mxu0 0.0
      %906 = vmatpush.msra.mxu0 0.0
      %907 = vmatpush.msra.mxu0 0.0
      %908 = vmatpush.msra.mxu0 0.0
      %909 = vmatpush.msra.mxu0 0.0
      %910 = vmatpush.msra.mxu0 0.0
      %911 = vmatpush.msra.mxu0 0.0
      %912 = vmatpush.msra.mxu0 0.0
      %913 = vmatpush.msra.mxu0 0.0
      %914 = vmatpush.msra.mxu0 0.0
      %915 = vmatpush.msra.mxu0 0.0
      %916 = vmatpush.msra.mxu0 0.0
      %917 = vmatpush.msra.mxu0 %v875
      %918 = vmatmul.f32.gmra.mxu0 %v880
      %v919 = vpop.f32.mrf.mxu0
      %v920 = vadd.f32 0.0, %v919
      %921 = vdwg.mxu0
      %922 = vmatpush.msra.mxu0 0.0
      %923 = vmatpush.msra.mxu0 0.0
      %924 = vmatpush.msra.mxu0 0.0
      %925 = vmatpush.msra.mxu0 0.0
      %926 = vmatpush.msra.mxu0 0.0
      %927 = vmatpush.msra.mxu0 0.0
      %928 = vmatpush.msra.mxu0 0.0
      %929 = vmatpush.msra.mxu0 0.0
      %930 = vmatpush.msra.mxu0 0.0
      %931 = vmatpush.msra.mxu0 0.0
      %932 = vmatpush.msra.mxu0 0.0
      %933 = vmatpush.msra.mxu0 0.0
      %934 = vmatpush.msra.mxu0 0.0
      %935 = vmatpush.msra.mxu0 0.0
      %936 = vmatpush.msra.mxu0 0.0
      %937 = vmatpush.msra.mxu0 %v874
      %938 = vmatmul.f32.gmra.mxu0 %v880
      %v939 = vpop.f32.mrf.mxu0
      %v940 = vadd.f32 0.0, %v939
      %941 = vdwg.mxu0
      %v942 = vadd.f32 %v864, %v900
      %v943 = vadd.f32 %v865, %v920
      %v944 = vadd.f32 %v866, %v940
      %s945 = scalar_lea.vmem %s2, 32
      %v946 = vld [vmem:[%s945] sm:$0xff]
      %v948 = vsel %vm662, %v946, 0
      %950 = vmatpush.msra.mxu0 0.0
      %951 = vmatpush.msra.mxu0 0.0
      %952 = vmatpush.msra.mxu0 0.0
      %953 = vmatpush.msra.mxu0 0.0
      %954 = vmatpush.msra.mxu0 0.0
      %955 = vmatpush.msra.mxu0 0.0
      %956 = vmatpush.msra.mxu0 0.0
      %957 = vmatpush.msra.mxu0 0.0
      %958 = vmatpush.msra.mxu0 0.0
      %959 = vmatpush.msra.mxu0 0.0
      %960 = vmatpush.msra.mxu0 0.0
      %961 = vmatpush.msra.mxu0 0.0
      %962 = vmatpush.msra.mxu0 0.0
      %963 = vmatpush.msra.mxu0 0.0
      %964 = vmatpush.msra.mxu0 0.0
      %965 = vmatpush.msra.mxu0 %v631
      %966 = vmatmul.f32.gmra.mxu0 %v948
      %v967 = vpop.f32.mrf.mxu0
      %v968 = vadd.f32 0.0, %v967
      %969 = vdwg.mxu0
      %970 = vmatpush.msra.mxu0 0.0
      %971 = vmatpush.msra.mxu0 0.0
      %972 = vmatpush.msra.mxu0 0.0
      %973 = vmatpush.msra.mxu0 0.0
      %974 = vmatpush.msra.mxu0 0.0
      %975 = vmatpush.msra.mxu0 0.0
      %976 = vmatpush.msra.mxu0 0.0
      %977 = vmatpush.msra.mxu0 0.0
      %978 = vmatpush.msra.mxu0 0.0
      %979 = vmatpush.msra.mxu0 0.0
      %980 = vmatpush.msra.mxu0 0.0
      %981 = vmatpush.msra.mxu0 0.0
      %982 = vmatpush.msra.mxu0 0.0
      %983 = vmatpush.msra.mxu0 0.0
      %984 = vmatpush.msra.mxu0 0.0
      %985 = vmatpush.msra.mxu0 %v632
      %986 = vmatmul.f32.gmra.mxu0 %v948
      %v987 = vpop.f32.mrf.mxu0
      %v988 = vadd.f32 0.0, %v987
      %989 = vdwg.mxu0
      %990 = vmatpush.msra.mxu0 0.0
      %991 = vmatpush.msra.mxu0 0.0
      %992 = vmatpush.msra.mxu0 0.0
      %993 = vmatpush.msra.mxu0 0.0
      %994 = vmatpush.msra.mxu0 0.0
      %995 = vmatpush.msra.mxu0 0.0
      %996 = vmatpush.msra.mxu0 0.0
      %997 = vmatpush.msra.mxu0 0.0
      %998 = vmatpush.msra.mxu0 0.0
      %999 = vmatpush.msra.mxu0 0.0
      %1000 = vmatpush.msra.mxu0 0.0
      %1001 = vmatpush.msra.mxu0 0.0
      %1002 = vmatpush.msra.mxu0 0.0
      %1003 = vmatpush.msra.mxu0 0.0
      %1004 = vmatpush.msra.mxu0 0.0
      %1005 = vmatpush.msra.mxu0 %v633
      %1006 = vmatmul.f32.gmra.mxu0 %v948
      %v1007 = vpop.f32.mrf.mxu0
      %v1008 = vadd.f32 0.0, %v1007
      %1009 = vdwg.mxu0
      %v1010 = vadd.f32 %v942, %v968
      %v1011 = vadd.f32 %v943, %v988
      %v1012 = vadd.f32 %v944, %v1008
      %1013 = vrot.lane.b32.xlu0 %v631, 127
      %v1014 = vpop.permute.xlu0 %1013
      %1015 = vrot.lane.b32.xlu0 %v632, 127
      %v1016 = vpop.permute.xlu0 %1015
      %1017 = vrot.lane.b32.xlu0 %v633, 127
      %v1018 = vpop.permute.xlu0 %1017
      %vm1019 = vcmp.lt.s32.totalorder %v644, 127
      %v1020 = vsel %vm1019, %v1016, %v1018
      %v1021 = vsel %vm1019, %v1014, %v1016
      %v1022 = vsel %vm1019, %v1018, %v1014
      %s1023 = scalar_lea.vmem %s2, 40
      %v1024 = vld [vmem:[%s1023] sm:$0xff]
      %v1026 = vsel %vm662, %v1024, 0
      %1028 = vmatpush.msra.mxu0 0.0
      %1029 = vmatpush.msra.mxu0 0.0
      %1030 = vmatpush.msra.mxu0 0.0
      %1031 = vmatpush.msra.mxu0 0.0
      %1032 = vmatpush.msra.mxu0 0.0
      %1033 = vmatpush.msra.mxu0 0.0
      %1034 = vmatpush.msra.mxu0 0.0
      %1035 = vmatpush.msra.mxu0 0.0
      %1036 = vmatpush.msra.mxu0 0.0
      %1037 = vmatpush.msra.mxu0 0.0
      %1038 = vmatpush.msra.mxu0 0.0
      %1039 = vmatpush.msra.mxu0 0.0
      %1040 = vmatpush.msra.mxu0 0.0
      %1041 = vmatpush.msra.mxu0 0.0
      %1042 = vmatpush.msra.mxu0 0.0
      %1043 = vmatpush.msra.mxu0 %v1021
      %1044 = vmatmul.f32.gmra.mxu0 %v1026
      %v1045 = vpop.f32.mrf.mxu0
      %v1046 = vadd.f32 0.0, %v1045
      %1047 = vdwg.mxu0
      %1048 = vmatpush.msra.mxu0 0.0
      %1049 = vmatpush.msra.mxu0 0.0
      %1050 = vmatpush.msra.mxu0 0.0
      %1051 = vmatpush.msra.mxu0 0.0
      %1052 = vmatpush.msra.mxu0 0.0
      %1053 = vmatpush.msra.mxu0 0.0
      %1054 = vmatpush.msra.mxu0 0.0
      %1055 = vmatpush.msra.mxu0 0.0
      %1056 = vmatpush.msra.mxu0 0.0
      %1057 = vmatpush.msra.mxu0 0.0
      %1058 = vmatpush.msra.mxu0 0.0
      %1059 = vmatpush.msra.mxu0 0.0
      %1060 = vmatpush.msra.mxu0 0.0
      %1061 = vmatpush.msra.mxu0 0.0
      %1062 = vmatpush.msra.mxu0 0.0
      %1063 = vmatpush.msra.mxu0 %v1020
      %1064 = vmatmul.f32.gmra.mxu0 %v1026
      %v1065 = vpop.f32.mrf.mxu0
      %v1066 = vadd.f32 0.0, %v1065
      %1067 = vdwg.mxu0
      %1068 = vmatpush.msra.mxu0 0.0
      %1069 = vmatpush.msra.mxu0 0.0
      %1070 = vmatpush.msra.mxu0 0.0
      %1071 = vmatpush.msra.mxu0 0.0
      %1072 = vmatpush.msra.mxu0 0.0
      %1073 = vmatpush.msra.mxu0 0.0
      %1074 = vmatpush.msra.mxu0 0.0
      %1075 = vmatpush.msra.mxu0 0.0
      %1076 = vmatpush.msra.mxu0 0.0
      %1077 = vmatpush.msra.mxu0 0.0
      %1078 = vmatpush.msra.mxu0 0.0
      %1079 = vmatpush.msra.mxu0 0.0
      %1080 = vmatpush.msra.mxu0 0.0
      %1081 = vmatpush.msra.mxu0 0.0
      %1082 = vmatpush.msra.mxu0 0.0
      %1083 = vmatpush.msra.mxu0 %v1022
      %1084 = vmatmul.f32.gmra.mxu0 %v1026
      %v1085 = vpop.f32.mrf.mxu0
      %v1086 = vadd.f32 0.0, %v1085
      %1087 = vdwg.mxu0
      %v1088 = vadd.f32 %v1010, %v1046
      %v1089 = vadd.f32 %v1011, %v1066
      %v1090 = vadd.f32 %v1012, %v1086
      %1091 = vrot.lane.b32.xlu0 %v631, 111
      %v1092 = vpop.permute.xlu0 %1091
      %1093 = vrot.lane.b32.xlu0 %v632, 111
      %v1094 = vpop.permute.xlu0 %1093
      %1095 = vrot.lane.b32.xlu0 %v633, 111
      %v1096 = vpop.permute.xlu0 %1095
      %vm1097 = vcmp.lt.s32.totalorder %v644, 111
      %v1098 = vsel %vm1097, %v1094, %v1096
      %v1099 = vsel %vm1097, %v1092, %v1094
      %v1100 = vsel %vm1097, %v1096, %v1092
      %s1101 = scalar_lea.vmem %s2, 48
      %v1102 = vld [vmem:[%s1101] sm:$0xff]
      %v1104 = vsel %vm662, %v1102, 0
      %1106 = vmatpush.msra.mxu0 0.0
      %1107 = vmatpush.msra.mxu0 0.0
      %1108 = vmatpush.msra.mxu0 0.0
      %1109 = vmatpush.msra.mxu0 0.0
      %1110 = vmatpush.msra.mxu0 0.0
      %1111 = vmatpush.msra.mxu0 0.0
      %1112 = vmatpush.msra.mxu0 0.0
      %1113 = vmatpush.msra.mxu0 0.0
      %1114 = vmatpush.msra.mxu0 0.0
      %1115 = vmatpush.msra.mxu0 0.0
      %1116 = vmatpush.msra.mxu0 0.0
      %1117 = vmatpush.msra.mxu0 0.0
      %1118 = vmatpush.msra.mxu0 0.0
      %1119 = vmatpush.msra.mxu0 0.0
      %1120 = vmatpush.msra.mxu0 0.0
      %1121 = vmatpush.msra.mxu0 %v1099
      %1122 = vmatmul.f32.gmra.mxu0 %v1104
      %v1123 = vpop.f32.mrf.mxu0
      %v1124 = vadd.f32 0.0, %v1123
      %1125 = vdwg.mxu0
      %1126 = vmatpush.msra.mxu0 0.0
      %1127 = vmatpush.msra.mxu0 0.0
      %1128 = vmatpush.msra.mxu0 0.0
      %1129 = vmatpush.msra.mxu0 0.0
      %1130 = vmatpush.msra.mxu0 0.0
      %1131 = vmatpush.msra.mxu0 0.0
      %1132 = vmatpush.msra.mxu0 0.0
      %1133 = vmatpush.msra.mxu0 0.0
      %1134 = vmatpush.msra.mxu0 0.0
      %1135 = vmatpush.msra.mxu0 0.0
      %1136 = vmatpush.msra.mxu0 0.0
      %1137 = vmatpush.msra.mxu0 0.0
      %1138 = vmatpush.msra.mxu0 0.0
      %1139 = vmatpush.msra.mxu0 0.0
      %1140 = vmatpush.msra.mxu0 0.0
      %1141 = vmatpush.msra.mxu0 %v1098
      %1142 = vmatmul.f32.gmra.mxu0 %v1104
      %v1143 = vpop.f32.mrf.mxu0
      %v1144 = vadd.f32 0.0, %v1143
      %1145 = vdwg.mxu0
      %1146 = vmatpush.msra.mxu0 0.0
      %1147 = vmatpush.msra.mxu0 0.0
      %1148 = vmatpush.msra.mxu0 0.0
      %1149 = vmatpush.msra.mxu0 0.0
      %1150 = vmatpush.msra.mxu0 0.0
      %1151 = vmatpush.msra.mxu0 0.0
      %1152 = vmatpush.msra.mxu0 0.0
      %1153 = vmatpush.msra.mxu0 0.0
      %1154 = vmatpush.msra.mxu0 0.0
      %1155 = vmatpush.msra.mxu0 0.0
      %1156 = vmatpush.msra.mxu0 0.0
      %1157 = vmatpush.msra.mxu0 0.0
      %1158 = vmatpush.msra.mxu0 0.0
      %1159 = vmatpush.msra.mxu0 0.0
      %1160 = vmatpush.msra.mxu0 0.0
      %1161 = vmatpush.msra.mxu0 %v1100
      %1162 = vmatmul.f32.gmra.mxu0 %v1104
      %v1163 = vpop.f32.mrf.mxu0
      %v1164 = vadd.f32 0.0, %v1163
      %1165 = vdwg.mxu0
      %v1166 = vadd.f32 %v1088, %v1124
      %v1167 = vadd.f32 %v1089, %v1144
      %v1168 = vadd.f32 %v1090, %v1164
      %1169 = vrot.lane.b32.xlu0 %v631, 110
      %v1170 = vpop.permute.xlu0 %1169
      %1171 = vrot.lane.b32.xlu0 %v632, 110
      %v1172 = vpop.permute.xlu0 %1171
      %1173 = vrot.lane.b32.xlu0 %v633, 110
      %v1174 = vpop.permute.xlu0 %1173
      %vm1175 = vcmp.lt.s32.totalorder %v644, 110
      %v1176 = vsel %vm1175, %v1172, %v1174
      %v1177 = vsel %vm1175, %v1170, %v1172
      %v1178 = vsel %vm1175, %v1174, %v1170
      %s1179 = scalar_lea.vmem %s2, 56
      %v1180 = vld [vmem:[%s1179] sm:$0xff]
      %v1182 = vsel %vm662, %v1180, 0
      %1184 = vmatpush.msra.mxu0 0.0
      %1185 = vmatpush.msra.mxu0 0.0
      %1186 = vmatpush.msra.mxu0 0.0
      %1187 = vmatpush.msra.mxu0 0.0
      %1188 = vmatpush.msra.mxu0 0.0
      %1189 = vmatpush.msra.mxu0 0.0
      %1190 = vmatpush.msra.mxu0 0.0
      %1191 = vmatpush.msra.mxu0 0.0
      %1192 = vmatpush.msra.mxu0 0.0
      %1193 = vmatpush.msra.mxu0 0.0
      %1194 = vmatpush.msra.mxu0 0.0
      %1195 = vmatpush.msra.mxu0 0.0
      %1196 = vmatpush.msra.mxu0 0.0
      %1197 = vmatpush.msra.mxu0 0.0
      %1198 = vmatpush.msra.mxu0 0.0
      %1199 = vmatpush.msra.mxu0 %v1177
      %1200 = vmatmul.f32.gmra.mxu0 %v1182
      %v1201 = vpop.f32.mrf.mxu0
      %v1202 = vadd.f32 0.0, %v1201
      %1203 = vdwg.mxu0
      %1204 = vmatpush.msra.mxu0 0.0
      %1205 = vmatpush.msra.mxu0 0.0
      %1206 = vmatpush.msra.mxu0 0.0
      %1207 = vmatpush.msra.mxu0 0.0
      %1208 = vmatpush.msra.mxu0 0.0
      %1209 = vmatpush.msra.mxu0 0.0
      %1210 = vmatpush.msra.mxu0 0.0
      %1211 = vmatpush.msra.mxu0 0.0
      %1212 = vmatpush.msra.mxu0 0.0
      %1213 = vmatpush.msra.mxu0 0.0
      %1214 = vmatpush.msra.mxu0 0.0
      %1215 = vmatpush.msra.mxu0 0.0
      %1216 = vmatpush.msra.mxu0 0.0
      %1217 = vmatpush.msra.mxu0 0.0
      %1218 = vmatpush.msra.mxu0 0.0
      %1219 = vmatpush.msra.mxu0 %v1176
      %1220 = vmatmul.f32.gmra.mxu0 %v1182
      %v1221 = vpop.f32.mrf.mxu0
      %v1222 = vadd.f32 0.0, %v1221
      %1223 = vdwg.mxu0
      %1224 = vmatpush.msra.mxu0 0.0
      %1225 = vmatpush.msra.mxu0 0.0
      %1226 = vmatpush.msra.mxu0 0.0
      %1227 = vmatpush.msra.mxu0 0.0
      %1228 = vmatpush.msra.mxu0 0.0
      %1229 = vmatpush.msra.mxu0 0.0
      %1230 = vmatpush.msra.mxu0 0.0
      %1231 = vmatpush.msra.mxu0 0.0
      %1232 = vmatpush.msra.mxu0 0.0
      %1233 = vmatpush.msra.mxu0 0.0
      %1234 = vmatpush.msra.mxu0 0.0
      %1235 = vmatpush.msra.mxu0 0.0
      %1236 = vmatpush.msra.mxu0 0.0
      %1237 = vmatpush.msra.mxu0 0.0
      %1238 = vmatpush.msra.mxu0 0.0
      %1239 = vmatpush.msra.mxu0 %v1178
      %1240 = vmatmul.f32.gmra.mxu0 %v1182
      %v1241 = vpop.f32.mrf.mxu0
      %v1242 = vadd.f32 0.0, %v1241
      %1243 = vdwg.mxu0
      %v1244 = vadd.f32 %v1166, %v1202
      %v1245 = vadd.f32 %v1167, %v1222
      %v1246 = vadd.f32 %v1168, %v1242
      %1247 = vrot.lane.b32.xlu0 %v631, 109
      %v1248 = vpop.permute.xlu0 %1247
      %1249 = vrot.lane.b32.xlu0 %v632, 109
      %v1250 = vpop.permute.xlu0 %1249
      %1251 = vrot.lane.b32.xlu0 %v633, 109
      %v1252 = vpop.permute.xlu0 %1251
      %vm1253 = vcmp.lt.s32.totalorder %v644, 109
      %v1254 = vsel %vm1253, %v1250, %v1252
      %v1255 = vsel %vm1253, %v1248, %v1250
      %v1256 = vsel %vm1253, %v1252, %v1248
      %s1257 = scalar_lea.vmem %s2, 64
      %v1258 = vld [vmem:[%s1257] sm:$0xff]
      %v1260 = vsel %vm662, %v1258, 0
      %1262 = vmatpush.msra.mxu0 0.0
      %1263 = vmatpush.msra.mxu0 0.0
      %1264 = vmatpush.msra.mxu0 0.0
      %1265 = vmatpush.msra.mxu0 0.0
      %1266 = vmatpush.msra.mxu0 0.0
      %1267 = vmatpush.msra.mxu0 0.0
      %1268 = vmatpush.msra.mxu0 0.0
      %1269 = vmatpush.msra.mxu0 0.0
      %1270 = vmatpush.msra.mxu0 0.0
      %1271 = vmatpush.msra.mxu0 0.0
      %1272 = vmatpush.msra.mxu0 0.0
      %1273 = vmatpush.msra.mxu0 0.0
      %1274 = vmatpush.msra.mxu0 0.0
      %1275 = vmatpush.msra.mxu0 0.0
      %1276 = vmatpush.msra.mxu0 0.0
      %1277 = vmatpush.msra.mxu0 %v1255
      %1278 = vmatmul.f32.gmra.mxu0 %v1260
      %v1279 = vpop.f32.mrf.mxu0
      %v1280 = vadd.f32 0.0, %v1279
      %1281 = vdwg.mxu0
      %1282 = vmatpush.msra.mxu0 0.0
      %1283 = vmatpush.msra.mxu0 0.0
      %1284 = vmatpush.msra.mxu0 0.0
      %1285 = vmatpush.msra.mxu0 0.0
      %1286 = vmatpush.msra.mxu0 0.0
      %1287 = vmatpush.msra.mxu0 0.0
      %1288 = vmatpush.msra.mxu0 0.0
      %1289 = vmatpush.msra.mxu0 0.0
      %1290 = vmatpush.msra.mxu0 0.0
      %1291 = vmatpush.msra.mxu0 0.0
      %1292 = vmatpush.msra.mxu0 0.0
      %1293 = vmatpush.msra.mxu0 0.0
      %1294 = vmatpush.msra.mxu0 0.0
      %1295 = vmatpush.msra.mxu0 0.0
      %1296 = vmatpush.msra.mxu0 0.0
      %1297 = vmatpush.msra.mxu0 %v1254
      %1298 = vmatmul.f32.gmra.mxu0 %v1260
      %v1299 = vpop.f32.mrf.mxu0
      %v1300 = vadd.f32 0.0, %v1299
      %1301 = vdwg.mxu0
      %1302 = vmatpush.msra.mxu0 0.0
      %1303 = vmatpush.msra.mxu0 0.0
      %1304 = vmatpush.msra.mxu0 0.0
      %1305 = vmatpush.msra.mxu0 0.0
      %1306 = vmatpush.msra.mxu0 0.0
      %1307 = vmatpush.msra.mxu0 0.0
      %1308 = vmatpush.msra.mxu0 0.0
      %1309 = vmatpush.msra.mxu0 0.0
      %1310 = vmatpush.msra.mxu0 0.0
      %1311 = vmatpush.msra.mxu0 0.0
      %1312 = vmatpush.msra.mxu0 0.0
      %1313 = vmatpush.msra.mxu0 0.0
      %1314 = vmatpush.msra.mxu0 0.0
      %1315 = vmatpush.msra.mxu0 0.0
      %1316 = vmatpush.msra.mxu0 0.0
      %1317 = vmatpush.msra.mxu0 %v1256
      %1318 = vmatmul.f32.gmra.mxu0 %v1260
      %v1319 = vpop.f32.mrf.mxu0
      %v1320 = vadd.f32 0.0, %v1319
      %1321 = vdwg.mxu0
      %v1322 = vadd.f32 %v1244, %v1280
      %v1323 = vadd.f32 %v1245, %v1300
      %v1324 = vadd.f32 %v1246, %v1320
      %v1325 = vld [vmem:[%s3] sm:$0xff]
      %1327 = vset.pattern.permute.xlu0 0
      %1328 = vperm.xlu0 %1327, %v1325
      %v1329 = vpop.permute.xlu0 %1328
      %v1331 = vadd.f32 %v1322, %v1329
      %v1332 = vadd.f32 %v1323, %v1329
      %v1333 = vadd.f32 %v1324, %v1329
      %v1334 = vmax.f32 %v1331, 0.0
      %v1335 = vmax.f32 %v1332, 0.0
      %v1336 = vmax.f32 %v1333, 0.0
      %v1338 = vperm.slane %v635, 0
      %v1339 = vperm.slane %v635, 1
      %v1340 = vperm.slane %v635, 2
      %v1344 = vmul.f32 %v1334, %v1338
      %v1345 = vmul.f32 %v1335, %v1339
      %v1346 = vmul.f32 %v1336, %v1340
      %1347 = vrot.lane.b32.xlu0 %v1344, 19
      %v1348 = vpop.permute.xlu0 %1347
      %1349 = vrot.lane.b32.xlu0 %v1345, 19
      %v1350 = vpop.permute.xlu0 %1349
      %1351 = vrot.lane.b32.xlu0 %v1346, 19
      %v1352 = vpop.permute.xlu0 %1351
      %v1353 = vsel %vm645, %v1350, %v1352
      %v1354 = vsel %vm645, %v1348, %v1350
      %v1355 = vsel %vm645, %v1352, %v1348
      %v1356 = vld [vmem:[%s4] sm:$0xff]
      %1357 = vrot.lane.b32.xlu0 %v1344, 18
      %v1358 = vpop.permute.xlu0 %1357
      %1359 = vrot.lane.b32.xlu0 %v1345, 18
      %v1360 = vpop.permute.xlu0 %1359
      %1361 = vrot.lane.b32.xlu0 %v1346, 18
      %v1362 = vpop.permute.xlu0 %1361
      %v1363 = vsel %vm656, %v1360, %v1362
      %v1364 = vsel %vm656, %v1358, %v1360
      %v1365 = vsel %vm656, %v1362, %v1358
      %s1366 = scalar_lea.vmem %s4, 8
      %v1367 = vld [vmem:[%s1366] sm:$0xff]
      %v1369 = vsel %vm662, %v1367, 0
      %1371 = vmatpush.msra.mxu0 0.0
      %1372 = vmatpush.msra.mxu0 0.0
      %1373 = vmatpush.msra.mxu0 0.0
      %1374 = vmatpush.msra.mxu0 0.0
      %1375 = vmatpush.msra.mxu0 0.0
      %1376 = vmatpush.msra.mxu0 0.0
      %1377 = vmatpush.msra.mxu0 0.0
      %1378 = vmatpush.msra.mxu0 0.0
      %1379 = vmatpush.msra.mxu0 0.0
      %1380 = vmatpush.msra.mxu0 0.0
      %1381 = vmatpush.msra.mxu0 0.0
      %1382 = vmatpush.msra.mxu0 0.0
      %1383 = vmatpush.msra.mxu0 0.0
      %1384 = vmatpush.msra.mxu0 0.0
      %1385 = vmatpush.msra.mxu0 0.0
      %1386 = vmatpush.msra.mxu0 %v1365
      %1387 = vmatmul.f32.gmra.mxu0 %v1369
      %v1388 = vpop.f32.mrf.mxu0
      %v1389 = vadd.f32 0.0, %v1388
      %1390 = vdwg.mxu0
      %1391 = vmatpush.msra.mxu0 0.0
      %1392 = vmatpush.msra.mxu0 0.0
      %1393 = vmatpush.msra.mxu0 0.0
      %1394 = vmatpush.msra.mxu0 0.0
      %1395 = vmatpush.msra.mxu0 0.0
      %1396 = vmatpush.msra.mxu0 0.0
      %1397 = vmatpush.msra.mxu0 0.0
      %1398 = vmatpush.msra.mxu0 0.0
      %1399 = vmatpush.msra.mxu0 0.0
      %1400 = vmatpush.msra.mxu0 0.0
      %1401 = vmatpush.msra.mxu0 0.0
      %1402 = vmatpush.msra.mxu0 0.0
      %1403 = vmatpush.msra.mxu0 0.0
      %1404 = vmatpush.msra.mxu0 0.0
      %1405 = vmatpush.msra.mxu0 0.0
      %1406 = vmatpush.msra.mxu0 %v1364
      %1407 = vmatmul.f32.gmra.mxu0 %v1369
      %v1408 = vpop.f32.mrf.mxu0
      %v1409 = vadd.f32 0.0, %v1408
      %1410 = vdwg.mxu0
      %1411 = vmatpush.msra.mxu0 0.0
      %1412 = vmatpush.msra.mxu0 0.0
      %1413 = vmatpush.msra.mxu0 0.0
      %1414 = vmatpush.msra.mxu0 0.0
      %1415 = vmatpush.msra.mxu0 0.0
      %1416 = vmatpush.msra.mxu0 0.0
      %1417 = vmatpush.msra.mxu0 0.0
      %1418 = vmatpush.msra.mxu0 0.0
      %1419 = vmatpush.msra.mxu0 0.0
      %1420 = vmatpush.msra.mxu0 0.0
      %1421 = vmatpush.msra.mxu0 0.0
      %1422 = vmatpush.msra.mxu0 0.0
      %1423 = vmatpush.msra.mxu0 0.0
      %1424 = vmatpush.msra.mxu0 0.0
      %1425 = vmatpush.msra.mxu0 0.0
      %1426 = vmatpush.msra.mxu0 %v1363
      %1427 = vmatmul.f32.gmra.mxu0 %v1369
      %v1428 = vpop.f32.mrf.mxu0
      %v1429 = vadd.f32 0.0, %v1428
      %1430 = vdwg.mxu0
      %v1432 = vsel %vm662, %v1356, 0
      %1434 = vmatpush.msra.mxu0 0.0
      %1435 = vmatpush.msra.mxu0 0.0
      %1436 = vmatpush.msra.mxu0 0.0
      %1437 = vmatpush.msra.mxu0 0.0
      %1438 = vmatpush.msra.mxu0 0.0
      %1439 = vmatpush.msra.mxu0 0.0
      %1440 = vmatpush.msra.mxu0 0.0
      %1441 = vmatpush.msra.mxu0 0.0
      %1442 = vmatpush.msra.mxu0 0.0
      %1443 = vmatpush.msra.mxu0 0.0
      %1444 = vmatpush.msra.mxu0 0.0
      %1445 = vmatpush.msra.mxu0 0.0
      %1446 = vmatpush.msra.mxu0 0.0
      %1447 = vmatpush.msra.mxu0 0.0
      %1448 = vmatpush.msra.mxu0 0.0
      %1449 = vmatpush.msra.mxu0 %v1355
      %1450 = vmatmul.f32.gmra.mxu0 %v1432
      %v1451 = vpop.f32.mrf.mxu0
      %v1452 = vadd.f32 %v1389, %v1451
      %1453 = vdwg.mxu0
      %1454 = vmatpush.msra.mxu0 0.0
      %1455 = vmatpush.msra.mxu0 0.0
      %1456 = vmatpush.msra.mxu0 0.0
      %1457 = vmatpush.msra.mxu0 0.0
      %1458 = vmatpush.msra.mxu0 0.0
      %1459 = vmatpush.msra.mxu0 0.0
      %1460 = vmatpush.msra.mxu0 0.0
      %1461 = vmatpush.msra.mxu0 0.0
      %1462 = vmatpush.msra.mxu0 0.0
      %1463 = vmatpush.msra.mxu0 0.0
      %1464 = vmatpush.msra.mxu0 0.0
      %1465 = vmatpush.msra.mxu0 0.0
      %1466 = vmatpush.msra.mxu0 0.0
      %1467 = vmatpush.msra.mxu0 0.0
      %1468 = vmatpush.msra.mxu0 0.0
      %1469 = vmatpush.msra.mxu0 %v1354
      %1470 = vmatmul.f32.gmra.mxu0 %v1432
      %v1471 = vpop.f32.mrf.mxu0
      %v1472 = vadd.f32 %v1409, %v1471
      %1473 = vdwg.mxu0
      %1474 = vmatpush.msra.mxu0 0.0
      %1475 = vmatpush.msra.mxu0 0.0
      %1476 = vmatpush.msra.mxu0 0.0
      %1477 = vmatpush.msra.mxu0 0.0
      %1478 = vmatpush.msra.mxu0 0.0
      %1479 = vmatpush.msra.mxu0 0.0
      %1480 = vmatpush.msra.mxu0 0.0
      %1481 = vmatpush.msra.mxu0 0.0
      %1482 = vmatpush.msra.mxu0 0.0
      %1483 = vmatpush.msra.mxu0 0.0
      %1484 = vmatpush.msra.mxu0 0.0
      %1485 = vmatpush.msra.mxu0 0.0
      %1486 = vmatpush.msra.mxu0 0.0
      %1487 = vmatpush.msra.mxu0 0.0
      %1488 = vmatpush.msra.mxu0 0.0
      %1489 = vmatpush.msra.mxu0 %v1353
      %1490 = vmatmul.f32.gmra.mxu0 %v1432
      %v1491 = vpop.f32.mrf.mxu0
      %v1492 = vadd.f32 %v1429, %v1491
      %1493 = vdwg.mxu0
      %1494 = vrot.lane.b32.xlu0 %v1344, 17
      %v1495 = vpop.permute.xlu0 %1494
      %1496 = vrot.lane.b32.xlu0 %v1345, 17
      %v1497 = vpop.permute.xlu0 %1496
      %1498 = vrot.lane.b32.xlu0 %v1346, 17
      %v1499 = vpop.permute.xlu0 %1498
      %v1500 = vsel %vm795, %v1497, %v1499
      %v1501 = vsel %vm795, %v1495, %v1497
      %v1502 = vsel %vm795, %v1499, %v1495
      %s1503 = scalar_lea.vmem %s4, 16
      %v1504 = vld [vmem:[%s1503] sm:$0xff]
      %v1506 = vsel %vm662, %v1504, 0
      %1508 = vmatpush.msra.mxu0 0.0
      %1509 = vmatpush.msra.mxu0 0.0
      %1510 = vmatpush.msra.mxu0 0.0
      %1511 = vmatpush.msra.mxu0 0.0
      %1512 = vmatpush.msra.mxu0 0.0
      %1513 = vmatpush.msra.mxu0 0.0
      %1514 = vmatpush.msra.mxu0 0.0
      %1515 = vmatpush.msra.mxu0 0.0
      %1516 = vmatpush.msra.mxu0 0.0
      %1517 = vmatpush.msra.mxu0 0.0
      %1518 = vmatpush.msra.mxu0 0.0
      %1519 = vmatpush.msra.mxu0 0.0
      %1520 = vmatpush.msra.mxu0 0.0
      %1521 = vmatpush.msra.mxu0 0.0
      %1522 = vmatpush.msra.mxu0 0.0
      %1523 = vmatpush.msra.mxu0 %v1502
      %1524 = vmatmul.f32.gmra.mxu0 %v1506
      %v1525 = vpop.f32.mrf.mxu0
      %v1526 = vadd.f32 0.0, %v1525
      %1527 = vdwg.mxu0
      %1528 = vmatpush.msra.mxu0 0.0
      %1529 = vmatpush.msra.mxu0 0.0
      %1530 = vmatpush.msra.mxu0 0.0
      %1531 = vmatpush.msra.mxu0 0.0
      %1532 = vmatpush.msra.mxu0 0.0
      %1533 = vmatpush.msra.mxu0 0.0
      %1534 = vmatpush.msra.mxu0 0.0
      %1535 = vmatpush.msra.mxu0 0.0
      %1536 = vmatpush.msra.mxu0 0.0
      %1537 = vmatpush.msra.mxu0 0.0
      %1538 = vmatpush.msra.mxu0 0.0
      %1539 = vmatpush.msra.mxu0 0.0
      %1540 = vmatpush.msra.mxu0 0.0
      %1541 = vmatpush.msra.mxu0 0.0
      %1542 = vmatpush.msra.mxu0 0.0
      %1543 = vmatpush.msra.mxu0 %v1501
      %1544 = vmatmul.f32.gmra.mxu0 %v1506
      %v1545 = vpop.f32.mrf.mxu0
      %v1546 = vadd.f32 0.0, %v1545
      %1547 = vdwg.mxu0
      %1548 = vmatpush.msra.mxu0 0.0
      %1549 = vmatpush.msra.mxu0 0.0
      %1550 = vmatpush.msra.mxu0 0.0
      %1551 = vmatpush.msra.mxu0 0.0
      %1552 = vmatpush.msra.mxu0 0.0
      %1553 = vmatpush.msra.mxu0 0.0
      %1554 = vmatpush.msra.mxu0 0.0
      %1555 = vmatpush.msra.mxu0 0.0
      %1556 = vmatpush.msra.mxu0 0.0
      %1557 = vmatpush.msra.mxu0 0.0
      %1558 = vmatpush.msra.mxu0 0.0
      %1559 = vmatpush.msra.mxu0 0.0
      %1560 = vmatpush.msra.mxu0 0.0
      %1561 = vmatpush.msra.mxu0 0.0
      %1562 = vmatpush.msra.mxu0 0.0
      %1563 = vmatpush.msra.mxu0 %v1500
      %1564 = vmatmul.f32.gmra.mxu0 %v1506
      %v1565 = vpop.f32.mrf.mxu0
      %v1566 = vadd.f32 0.0, %v1565
      %1567 = vdwg.mxu0
      %v1568 = vadd.f32 %v1452, %v1526
      %v1569 = vadd.f32 %v1472, %v1546
      %v1570 = vadd.f32 %v1492, %v1566
      %1571 = vrot.lane.b32.xlu0 %v1344, 1
      %v1572 = vpop.permute.xlu0 %1571
      %1573 = vrot.lane.b32.xlu0 %v1345, 1
      %v1574 = vpop.permute.xlu0 %1573
      %1575 = vrot.lane.b32.xlu0 %v1346, 1
      %v1576 = vpop.permute.xlu0 %1575
      %v1577 = vsel %vm873, %v1574, %v1576
      %v1578 = vsel %vm873, %v1572, %v1574
      %v1579 = vsel %vm873, %v1576, %v1572
      %s1580 = scalar_lea.vmem %s4, 24
      %v1581 = vld [vmem:[%s1580] sm:$0xff]
      %v1583 = vsel %vm662, %v1581, 0
      %1585 = vmatpush.msra.mxu0 0.0
      %1586 = vmatpush.msra.mxu0 0.0
      %1587 = vmatpush.msra.mxu0 0.0
      %1588 = vmatpush.msra.mxu0 0.0
      %1589 = vmatpush.msra.mxu0 0.0
      %1590 = vmatpush.msra.mxu0 0.0
      %1591 = vmatpush.msra.mxu0 0.0
      %1592 = vmatpush.msra.mxu0 0.0
      %1593 = vmatpush.msra.mxu0 0.0
      %1594 = vmatpush.msra.mxu0 0.0
      %1595 = vmatpush.msra.mxu0 0.0
      %1596 = vmatpush.msra.mxu0 0.0
      %1597 = vmatpush.msra.mxu0 0.0
      %1598 = vmatpush.msra.mxu0 0.0
      %1599 = vmatpush.msra.mxu0 0.0
      %1600 = vmatpush.msra.mxu0 %v1579
      %1601 = vmatmul.f32.gmra.mxu0 %v1583
      %v1602 = vpop.f32.mrf.mxu0
      %v1603 = vadd.f32 0.0, %v1602
      %1604 = vdwg.mxu0
      %1605 = vmatpush.msra.mxu0 0.0
      %1606 = vmatpush.msra.mxu0 0.0
      %1607 = vmatpush.msra.mxu0 0.0
      %1608 = vmatpush.msra.mxu0 0.0
      %1609 = vmatpush.msra.mxu0 0.0
      %1610 = vmatpush.msra.mxu0 0.0
      %1611 = vmatpush.msra.mxu0 0.0
      %1612 = vmatpush.msra.mxu0 0.0
      %1613 = vmatpush.msra.mxu0 0.0
      %1614 = vmatpush.msra.mxu0 0.0
      %1615 = vmatpush.msra.mxu0 0.0
      %1616 = vmatpush.msra.mxu0 0.0
      %1617 = vmatpush.msra.mxu0 0.0
      %1618 = vmatpush.msra.mxu0 0.0
      %1619 = vmatpush.msra.mxu0 0.0
      %1620 = vmatpush.msra.mxu0 %v1578
      %1621 = vmatmul.f32.gmra.mxu0 %v1583
      %v1622 = vpop.f32.mrf.mxu0
      %v1623 = vadd.f32 0.0, %v1622
      %1624 = vdwg.mxu0
      %1625 = vmatpush.msra.mxu0 0.0
      %1626 = vmatpush.msra.mxu0 0.0
      %1627 = vmatpush.msra.mxu0 0.0
      %1628 = vmatpush.msra.mxu0 0.0
      %1629 = vmatpush.msra.mxu0 0.0
      %1630 = vmatpush.msra.mxu0 0.0
      %1631 = vmatpush.msra.mxu0 0.0
      %1632 = vmatpush.msra.mxu0 0.0
      %1633 = vmatpush.msra.mxu0 0.0
      %1634 = vmatpush.msra.mxu0 0.0
      %1635 = vmatpush.msra.mxu0 0.0
      %1636 = vmatpush.msra.mxu0 0.0
      %1637 = vmatpush.msra.mxu0 0.0
      %1638 = vmatpush.msra.mxu0 0.0
      %1639 = vmatpush.msra.mxu0 0.0
      %1640 = vmatpush.msra.mxu0 %v1577
      %1641 = vmatmul.f32.gmra.mxu0 %v1583
      %v1642 = vpop.f32.mrf.mxu0
      %v1643 = vadd.f32 0.0, %v1642
      %1644 = vdwg.mxu0
      %v1645 = vadd.f32 %v1568, %v1603
      %v1646 = vadd.f32 %v1569, %v1623
      %v1647 = vadd.f32 %v1570, %v1643
      %s1648 = scalar_lea.vmem %s4, 32
      %v1649 = vld [vmem:[%s1648] sm:$0xff]
      %v1651 = vsel %vm662, %v1649, 0
      %1653 = vmatpush.msra.mxu0 0.0
      %1654 = vmatpush.msra.mxu0 0.0
      %1655 = vmatpush.msra.mxu0 0.0
      %1656 = vmatpush.msra.mxu0 0.0
      %1657 = vmatpush.msra.mxu0 0.0
      %1658 = vmatpush.msra.mxu0 0.0
      %1659 = vmatpush.msra.mxu0 0.0
      %1660 = vmatpush.msra.mxu0 0.0
      %1661 = vmatpush.msra.mxu0 0.0
      %1662 = vmatpush.msra.mxu0 0.0
      %1663 = vmatpush.msra.mxu0 0.0
      %1664 = vmatpush.msra.mxu0 0.0
      %1665 = vmatpush.msra.mxu0 0.0
      %1666 = vmatpush.msra.mxu0 0.0
      %1667 = vmatpush.msra.mxu0 0.0
      %1668 = vmatpush.msra.mxu0 %v1344
      %1669 = vmatmul.f32.gmra.mxu0 %v1651
      %v1670 = vpop.f32.mrf.mxu0
      %v1671 = vadd.f32 0.0, %v1670
      %1672 = vdwg.mxu0
      %1673 = vmatpush.msra.mxu0 0.0
      %1674 = vmatpush.msra.mxu0 0.0
      %1675 = vmatpush.msra.mxu0 0.0
      %1676 = vmatpush.msra.mxu0 0.0
      %1677 = vmatpush.msra.mxu0 0.0
      %1678 = vmatpush.msra.mxu0 0.0
      %1679 = vmatpush.msra.mxu0 0.0
      %1680 = vmatpush.msra.mxu0 0.0
      %1681 = vmatpush.msra.mxu0 0.0
      %1682 = vmatpush.msra.mxu0 0.0
      %1683 = vmatpush.msra.mxu0 0.0
      %1684 = vmatpush.msra.mxu0 0.0
      %1685 = vmatpush.msra.mxu0 0.0
      %1686 = vmatpush.msra.mxu0 0.0
      %1687 = vmatpush.msra.mxu0 0.0
      %1688 = vmatpush.msra.mxu0 %v1345
      %1689 = vmatmul.f32.gmra.mxu0 %v1651
      %v1690 = vpop.f32.mrf.mxu0
      %v1691 = vadd.f32 0.0, %v1690
      %1692 = vdwg.mxu0
      %1693 = vmatpush.msra.mxu0 0.0
      %1694 = vmatpush.msra.mxu0 0.0
      %1695 = vmatpush.msra.mxu0 0.0
      %1696 = vmatpush.msra.mxu0 0.0
      %1697 = vmatpush.msra.mxu0 0.0
      %1698 = vmatpush.msra.mxu0 0.0
      %1699 = vmatpush.msra.mxu0 0.0
      %1700 = vmatpush.msra.mxu0 0.0
      %1701 = vmatpush.msra.mxu0 0.0
      %1702 = vmatpush.msra.mxu0 0.0
      %1703 = vmatpush.msra.mxu0 0.0
      %1704 = vmatpush.msra.mxu0 0.0
      %1705 = vmatpush.msra.mxu0 0.0
      %1706 = vmatpush.msra.mxu0 0.0
      %1707 = vmatpush.msra.mxu0 0.0
      %1708 = vmatpush.msra.mxu0 %v1346
      %1709 = vmatmul.f32.gmra.mxu0 %v1651
      %v1710 = vpop.f32.mrf.mxu0
      %v1711 = vadd.f32 0.0, %v1710
      %1712 = vdwg.mxu0
      %v1713 = vadd.f32 %v1645, %v1671
      %v1714 = vadd.f32 %v1646, %v1691
      %v1715 = vadd.f32 %v1647, %v1711
      %1716 = vrot.lane.b32.xlu0 %v1344, 127
      %v1717 = vpop.permute.xlu0 %1716
      %1718 = vrot.lane.b32.xlu0 %v1345, 127
      %v1719 = vpop.permute.xlu0 %1718
      %1720 = vrot.lane.b32.xlu0 %v1346, 127
      %v1721 = vpop.permute.xlu0 %1720
      %v1722 = vsel %vm1019, %v1719, %v1721
      %v1723 = vsel %vm1019, %v1717, %v1719
      %v1724 = vsel %vm1019, %v1721, %v1717
      %s1725 = scalar_lea.vmem %s4, 40
      %v1726 = vld [vmem:[%s1725] sm:$0xff]
      %v1728 = vsel %vm662, %v1726, 0
      %1730 = vmatpush.msra.mxu0 0.0
      %1731 = vmatpush.msra.mxu0 0.0
      %1732 = vmatpush.msra.mxu0 0.0
      %1733 = vmatpush.msra.mxu0 0.0
      %1734 = vmatpush.msra.mxu0 0.0
      %1735 = vmatpush.msra.mxu0 0.0
      %1736 = vmatpush.msra.mxu0 0.0
      %1737 = vmatpush.msra.mxu0 0.0
      %1738 = vmatpush.msra.mxu0 0.0
      %1739 = vmatpush.msra.mxu0 0.0
      %1740 = vmatpush.msra.mxu0 0.0
      %1741 = vmatpush.msra.mxu0 0.0
      %1742 = vmatpush.msra.mxu0 0.0
      %1743 = vmatpush.msra.mxu0 0.0
      %1744 = vmatpush.msra.mxu0 0.0
      %1745 = vmatpush.msra.mxu0 %v1723
      %1746 = vmatmul.f32.gmra.mxu0 %v1728
      %v1747 = vpop.f32.mrf.mxu0
      %v1748 = vadd.f32 0.0, %v1747
      %1749 = vdwg.mxu0
      %1750 = vmatpush.msra.mxu0 0.0
      %1751 = vmatpush.msra.mxu0 0.0
      %1752 = vmatpush.msra.mxu0 0.0
      %1753 = vmatpush.msra.mxu0 0.0
      %1754 = vmatpush.msra.mxu0 0.0
      %1755 = vmatpush.msra.mxu0 0.0
      %1756 = vmatpush.msra.mxu0 0.0
      %1757 = vmatpush.msra.mxu0 0.0
      %1758 = vmatpush.msra.mxu0 0.0
      %1759 = vmatpush.msra.mxu0 0.0
      %1760 = vmatpush.msra.mxu0 0.0
      %1761 = vmatpush.msra.mxu0 0.0
      %1762 = vmatpush.msra.mxu0 0.0
      %1763 = vmatpush.msra.mxu0 0.0
      %1764 = vmatpush.msra.mxu0 0.0
      %1765 = vmatpush.msra.mxu0 %v1722
      %1766 = vmatmul.f32.gmra.mxu0 %v1728
      %v1767 = vpop.f32.mrf.mxu0
      %v1768 = vadd.f32 0.0, %v1767
      %1769 = vdwg.mxu0
      %1770 = vmatpush.msra.mxu0 0.0
      %1771 = vmatpush.msra.mxu0 0.0
      %1772 = vmatpush.msra.mxu0 0.0
      %1773 = vmatpush.msra.mxu0 0.0
      %1774 = vmatpush.msra.mxu0 0.0
      %1775 = vmatpush.msra.mxu0 0.0
      %1776 = vmatpush.msra.mxu0 0.0
      %1777 = vmatpush.msra.mxu0 0.0
      %1778 = vmatpush.msra.mxu0 0.0
      %1779 = vmatpush.msra.mxu0 0.0
      %1780 = vmatpush.msra.mxu0 0.0
      %1781 = vmatpush.msra.mxu0 0.0
      %1782 = vmatpush.msra.mxu0 0.0
      %1783 = vmatpush.msra.mxu0 0.0
      %1784 = vmatpush.msra.mxu0 0.0
      %1785 = vmatpush.msra.mxu0 %v1724
      %1786 = vmatmul.f32.gmra.mxu0 %v1728
      %v1787 = vpop.f32.mrf.mxu0
      %v1788 = vadd.f32 0.0, %v1787
      %1789 = vdwg.mxu0
      %v1790 = vadd.f32 %v1713, %v1748
      %v1791 = vadd.f32 %v1714, %v1768
      %v1792 = vadd.f32 %v1715, %v1788
      %1793 = vrot.lane.b32.xlu0 %v1344, 111
      %v1794 = vpop.permute.xlu0 %1793
      %1795 = vrot.lane.b32.xlu0 %v1345, 111
      %v1796 = vpop.permute.xlu0 %1795
      %1797 = vrot.lane.b32.xlu0 %v1346, 111
      %v1798 = vpop.permute.xlu0 %1797
      %v1799 = vsel %vm1097, %v1796, %v1798
      %v1800 = vsel %vm1097, %v1794, %v1796
      %v1801 = vsel %vm1097, %v1798, %v1794
      %s1802 = scalar_lea.vmem %s4, 48
      %v1803 = vld [vmem:[%s1802] sm:$0xff]
      %v1805 = vsel %vm662, %v1803, 0
      %1807 = vmatpush.msra.mxu0 0.0
      %1808 = vmatpush.msra.mxu0 0.0
      %1809 = vmatpush.msra.mxu0 0.0
      %1810 = vmatpush.msra.mxu0 0.0
      %1811 = vmatpush.msra.mxu0 0.0
      %1812 = vmatpush.msra.mxu0 0.0
      %1813 = vmatpush.msra.mxu0 0.0
      %1814 = vmatpush.msra.mxu0 0.0
      %1815 = vmatpush.msra.mxu0 0.0
      %1816 = vmatpush.msra.mxu0 0.0
      %1817 = vmatpush.msra.mxu0 0.0
      %1818 = vmatpush.msra.mxu0 0.0
      %1819 = vmatpush.msra.mxu0 0.0
      %1820 = vmatpush.msra.mxu0 0.0
      %1821 = vmatpush.msra.mxu0 0.0
      %1822 = vmatpush.msra.mxu0 %v1800
      %1823 = vmatmul.f32.gmra.mxu0 %v1805
      %v1824 = vpop.f32.mrf.mxu0
      %v1825 = vadd.f32 0.0, %v1824
      %1826 = vdwg.mxu0
      %1827 = vmatpush.msra.mxu0 0.0
      %1828 = vmatpush.msra.mxu0 0.0
      %1829 = vmatpush.msra.mxu0 0.0
      %1830 = vmatpush.msra.mxu0 0.0
      %1831 = vmatpush.msra.mxu0 0.0
      %1832 = vmatpush.msra.mxu0 0.0
      %1833 = vmatpush.msra.mxu0 0.0
      %1834 = vmatpush.msra.mxu0 0.0
      %1835 = vmatpush.msra.mxu0 0.0
      %1836 = vmatpush.msra.mxu0 0.0
      %1837 = vmatpush.msra.mxu0 0.0
      %1838 = vmatpush.msra.mxu0 0.0
      %1839 = vmatpush.msra.mxu0 0.0
      %1840 = vmatpush.msra.mxu0 0.0
      %1841 = vmatpush.msra.mxu0 0.0
      %1842 = vmatpush.msra.mxu0 %v1799
      %1843 = vmatmul.f32.gmra.mxu0 %v1805
      %v1844 = vpop.f32.mrf.mxu0
      %v1845 = vadd.f32 0.0, %v1844
      %1846 = vdwg.mxu0
      %1847 = vmatpush.msra.mxu0 0.0
      %1848 = vmatpush.msra.mxu0 0.0
      %1849 = vmatpush.msra.mxu0 0.0
      %1850 = vmatpush.msra.mxu0 0.0
      %1851 = vmatpush.msra.mxu0 0.0
      %1852 = vmatpush.msra.mxu0 0.0
      %1853 = vmatpush.msra.mxu0 0.0
      %1854 = vmatpush.msra.mxu0 0.0
      %1855 = vmatpush.msra.mxu0 0.0
      %1856 = vmatpush.msra.mxu0 0.0
      %1857 = vmatpush.msra.mxu0 0.0
      %1858 = vmatpush.msra.mxu0 0.0
      %1859 = vmatpush.msra.mxu0 0.0
      %1860 = vmatpush.msra.mxu0 0.0
      %1861 = vmatpush.msra.mxu0 0.0
      %1862 = vmatpush.msra.mxu0 %v1801
      %1863 = vmatmul.f32.gmra.mxu0 %v1805
      %v1864 = vpop.f32.mrf.mxu0
      %v1865 = vadd.f32 0.0, %v1864
      %1866 = vdwg.mxu0
      %v1867 = vadd.f32 %v1790, %v1825
      %v1868 = vadd.f32 %v1791, %v1845
      %v1869 = vadd.f32 %v1792, %v1865
      %1870 = vrot.lane.b32.xlu0 %v1344, 110
      %v1871 = vpop.permute.xlu0 %1870
      %1872 = vrot.lane.b32.xlu0 %v1345, 110
      %v1873 = vpop.permute.xlu0 %1872
      %1874 = vrot.lane.b32.xlu0 %v1346, 110
      %v1875 = vpop.permute.xlu0 %1874
      %v1876 = vsel %vm1175, %v1873, %v1875
      %v1877 = vsel %vm1175, %v1871, %v1873
      %v1878 = vsel %vm1175, %v1875, %v1871
      %s1879 = scalar_lea.vmem %s4, 56
      %v1880 = vld [vmem:[%s1879] sm:$0xff]
      %v1882 = vsel %vm662, %v1880, 0
      %1884 = vmatpush.msra.mxu0 0.0
      %1885 = vmatpush.msra.mxu0 0.0
      %1886 = vmatpush.msra.mxu0 0.0
      %1887 = vmatpush.msra.mxu0 0.0
      %1888 = vmatpush.msra.mxu0 0.0
      %1889 = vmatpush.msra.mxu0 0.0
      %1890 = vmatpush.msra.mxu0 0.0
      %1891 = vmatpush.msra.mxu0 0.0
      %1892 = vmatpush.msra.mxu0 0.0
      %1893 = vmatpush.msra.mxu0 0.0
      %1894 = vmatpush.msra.mxu0 0.0
      %1895 = vmatpush.msra.mxu0 0.0
      %1896 = vmatpush.msra.mxu0 0.0
      %1897 = vmatpush.msra.mxu0 0.0
      %1898 = vmatpush.msra.mxu0 0.0
      %1899 = vmatpush.msra.mxu0 %v1877
      %1900 = vmatmul.f32.gmra.mxu0 %v1882
      %v1901 = vpop.f32.mrf.mxu0
      %v1902 = vadd.f32 0.0, %v1901
      %1903 = vdwg.mxu0
      %1904 = vmatpush.msra.mxu0 0.0
      %1905 = vmatpush.msra.mxu0 0.0
      %1906 = vmatpush.msra.mxu0 0.0
      %1907 = vmatpush.msra.mxu0 0.0
      %1908 = vmatpush.msra.mxu0 0.0
      %1909 = vmatpush.msra.mxu0 0.0
      %1910 = vmatpush.msra.mxu0 0.0
      %1911 = vmatpush.msra.mxu0 0.0
      %1912 = vmatpush.msra.mxu0 0.0
      %1913 = vmatpush.msra.mxu0 0.0
      %1914 = vmatpush.msra.mxu0 0.0
      %1915 = vmatpush.msra.mxu0 0.0
      %1916 = vmatpush.msra.mxu0 0.0
      %1917 = vmatpush.msra.mxu0 0.0
      %1918 = vmatpush.msra.mxu0 0.0
      %1919 = vmatpush.msra.mxu0 %v1876
      %1920 = vmatmul.f32.gmra.mxu0 %v1882
      %v1921 = vpop.f32.mrf.mxu0
      %v1922 = vadd.f32 0.0, %v1921
      %1923 = vdwg.mxu0
      %1924 = vmatpush.msra.mxu0 0.0
      %1925 = vmatpush.msra.mxu0 0.0
      %1926 = vmatpush.msra.mxu0 0.0
      %1927 = vmatpush.msra.mxu0 0.0
      %1928 = vmatpush.msra.mxu0 0.0
      %1929 = vmatpush.msra.mxu0 0.0
      %1930 = vmatpush.msra.mxu0 0.0
      %1931 = vmatpush.msra.mxu0 0.0
      %1932 = vmatpush.msra.mxu0 0.0
      %1933 = vmatpush.msra.mxu0 0.0
      %1934 = vmatpush.msra.mxu0 0.0
      %1935 = vmatpush.msra.mxu0 0.0
      %1936 = vmatpush.msra.mxu0 0.0
      %1937 = vmatpush.msra.mxu0 0.0
      %1938 = vmatpush.msra.mxu0 0.0
      %1939 = vmatpush.msra.mxu0 %v1878
      %1940 = vmatmul.f32.gmra.mxu0 %v1882
      %v1941 = vpop.f32.mrf.mxu0
      %v1942 = vadd.f32 0.0, %v1941
      %1943 = vdwg.mxu0
      %v1944 = vadd.f32 %v1867, %v1902
      %v1945 = vadd.f32 %v1868, %v1922
      %v1946 = vadd.f32 %v1869, %v1942
      %1947 = vrot.lane.b32.xlu0 %v1344, 109
      %v1948 = vpop.permute.xlu0 %1947
      %1949 = vrot.lane.b32.xlu0 %v1345, 109
      %v1950 = vpop.permute.xlu0 %1949
      %1951 = vrot.lane.b32.xlu0 %v1346, 109
      %v1952 = vpop.permute.xlu0 %1951
      %v1953 = vsel %vm1253, %v1950, %v1952
      %v1954 = vsel %vm1253, %v1948, %v1950
      %v1955 = vsel %vm1253, %v1952, %v1948
      %s1956 = scalar_lea.vmem %s4, 64
      %v1957 = vld [vmem:[%s1956] sm:$0xff]
      %v1959 = vsel %vm662, %v1957, 0
      %1961 = vmatpush.msra.mxu0 0.0
      %1962 = vmatpush.msra.mxu0 0.0
      %1963 = vmatpush.msra.mxu0 0.0
      %1964 = vmatpush.msra.mxu0 0.0
      %1965 = vmatpush.msra.mxu0 0.0
      %1966 = vmatpush.msra.mxu0 0.0
      %1967 = vmatpush.msra.mxu0 0.0
      %1968 = vmatpush.msra.mxu0 0.0
      %1969 = vmatpush.msra.mxu0 0.0
      %1970 = vmatpush.msra.mxu0 0.0
      %1971 = vmatpush.msra.mxu0 0.0
      %1972 = vmatpush.msra.mxu0 0.0
      %1973 = vmatpush.msra.mxu0 0.0
      %1974 = vmatpush.msra.mxu0 0.0
      %1975 = vmatpush.msra.mxu0 0.0
      %1976 = vmatpush.msra.mxu0 %v1954
      %1977 = vmatmul.f32.gmra.mxu0 %v1959
      %v1978 = vpop.f32.mrf.mxu0
      %v1979 = vadd.f32 0.0, %v1978
      %1980 = vdwg.mxu0
      %1981 = vmatpush.msra.mxu0 0.0
      %1982 = vmatpush.msra.mxu0 0.0
      %1983 = vmatpush.msra.mxu0 0.0
      %1984 = vmatpush.msra.mxu0 0.0
      %1985 = vmatpush.msra.mxu0 0.0
      %1986 = vmatpush.msra.mxu0 0.0
      %1987 = vmatpush.msra.mxu0 0.0
      %1988 = vmatpush.msra.mxu0 0.0
      %1989 = vmatpush.msra.mxu0 0.0
      %1990 = vmatpush.msra.mxu0 0.0
      %1991 = vmatpush.msra.mxu0 0.0
      %1992 = vmatpush.msra.mxu0 0.0
      %1993 = vmatpush.msra.mxu0 0.0
      %1994 = vmatpush.msra.mxu0 0.0
      %1995 = vmatpush.msra.mxu0 0.0
      %1996 = vmatpush.msra.mxu0 %v1953
      %1997 = vmatmul.f32.gmra.mxu0 %v1959
      %v1998 = vpop.f32.mrf.mxu0
      %v1999 = vadd.f32 0.0, %v1998
      %2000 = vdwg.mxu0
      %2001 = vmatpush.msra.mxu0 0.0
      %2002 = vmatpush.msra.mxu0 0.0
      %2003 = vmatpush.msra.mxu0 0.0
      %2004 = vmatpush.msra.mxu0 0.0
      %2005 = vmatpush.msra.mxu0 0.0
      %2006 = vmatpush.msra.mxu0 0.0
      %2007 = vmatpush.msra.mxu0 0.0
      %2008 = vmatpush.msra.mxu0 0.0
      %2009 = vmatpush.msra.mxu0 0.0
      %2010 = vmatpush.msra.mxu0 0.0
      %2011 = vmatpush.msra.mxu0 0.0
      %2012 = vmatpush.msra.mxu0 0.0
      %2013 = vmatpush.msra.mxu0 0.0
      %2014 = vmatpush.msra.mxu0 0.0
      %2015 = vmatpush.msra.mxu0 0.0
      %2016 = vmatpush.msra.mxu0 %v1955
      %2017 = vmatmul.f32.gmra.mxu0 %v1959
      %v2018 = vpop.f32.mrf.mxu0
      %v2019 = vadd.f32 0.0, %v2018
      %2020 = vdwg.mxu0
      %v2021 = vadd.f32 %v1944, %v1979
      %v2022 = vadd.f32 %v1945, %v1999
      %v2023 = vadd.f32 %v1946, %v2019
      %v2024 = vld [vmem:[%s5] sm:$0xff]
      %2026 = vset.pattern.permute.xlu0 0
      %2027 = vperm.xlu0 %2026, %v2024
      %v2028 = vpop.permute.xlu0 %2027
      %v2030 = vadd.f32 %v2021, %v2028
      %v2031 = vadd.f32 %v2022, %v2028
      %v2032 = vadd.f32 %v2023, %v2028
      %v2033 = vadd.f32 %v2030, %v631
      %v2034 = vadd.f32 %v2031, %v632
      %v2035 = vadd.f32 %v2032, %v633
      %v2036 = vmax.f32 %v2033, 0.0
      %v2037 = vmax.f32 %v2034, 0.0
      %v2038 = vmax.f32 %v2035, 0.0
      %v2039 = vmul.f32 %v2036, %v1338
      %v2040 = vmul.f32 %v2037, %v1339
      %v2041 = vmul.f32 %v2038, %v1340
      %2042 = vrot.lane.b32.xlu0 %v634, 11
      %v2043 = vpop.permute.xlu0 %2042
      %v2044 = vld [vmem:[%s6] sm:$0xff]
      %2045 = vrot.lane.b32.xlu0 %v634, 10
      %v2046 = vpop.permute.xlu0 %2045
      %s2047 = scalar_lea.vmem %s6, 8
      %v2048 = vld [vmem:[%s2047] sm:$0xff]
      %v2050 = vsel %vm662, %v2048, 0
      %2052 = vmatpush.msra.mxu0 0.0
      %2053 = vmatpush.msra.mxu0 0.0
      %2054 = vmatpush.msra.mxu0 0.0
      %2055 = vmatpush.msra.mxu0 0.0
      %2056 = vmatpush.msra.mxu0 0.0
      %2057 = vmatpush.msra.mxu0 0.0
      %2058 = vmatpush.msra.mxu0 0.0
      %2059 = vmatpush.msra.mxu0 0.0
      %2060 = vmatpush.msra.mxu0 0.0
      %2061 = vmatpush.msra.mxu0 0.0
      %2062 = vmatpush.msra.mxu0 0.0
      %2063 = vmatpush.msra.mxu0 0.0
      %2064 = vmatpush.msra.mxu0 0.0
      %2065 = vmatpush.msra.mxu0 0.0
      %2066 = vmatpush.msra.mxu0 0.0
      %2067 = vmatpush.msra.mxu0 %v2046
      %2068 = vmatmul.f32.gmra.mxu0 %v2050
      %v2069 = vpop.f32.mrf.mxu0
      %v2070 = vadd.f32 0.0, %v2069
      %2071 = vdwg.mxu0
      %v2073 = vsel %vm662, %v2044, 0
      %2075 = vmatpush.msra.mxu0 0.0
      %2076 = vmatpush.msra.mxu0 0.0
      %2077 = vmatpush.msra.mxu0 0.0
      %2078 = vmatpush.msra.mxu0 0.0
      %2079 = vmatpush.msra.mxu0 0.0
      %2080 = vmatpush.msra.mxu0 0.0
      %2081 = vmatpush.msra.mxu0 0.0
      %2082 = vmatpush.msra.mxu0 0.0
      %2083 = vmatpush.msra.mxu0 0.0
      %2084 = vmatpush.msra.mxu0 0.0
      %2085 = vmatpush.msra.mxu0 0.0
      %2086 = vmatpush.msra.mxu0 0.0
      %2087 = vmatpush.msra.mxu0 0.0
      %2088 = vmatpush.msra.mxu0 0.0
      %2089 = vmatpush.msra.mxu0 0.0
      %2090 = vmatpush.msra.mxu0 %v2043
      %2091 = vmatmul.f32.gmra.mxu0 %v2073
      %v2092 = vpop.f32.mrf.mxu0
      %v2093 = vadd.f32 %v2070, %v2092
      %2094 = vdwg.mxu0
      %2095 = vrot.lane.b32.xlu0 %v634, 9
      %v2096 = vpop.permute.xlu0 %2095
      %s2097 = scalar_lea.vmem %s6, 16
      %v2098 = vld [vmem:[%s2097] sm:$0xff]
      %v2100 = vsel %vm662, %v2098, 0
      %2102 = vmatpush.msra.mxu0 0.0
      %2103 = vmatpush.msra.mxu0 0.0
      %2104 = vmatpush.msra.mxu0 0.0
      %2105 = vmatpush.msra.mxu0 0.0
      %2106 = vmatpush.msra.mxu0 0.0
      %2107 = vmatpush.msra.mxu0 0.0
      %2108 = vmatpush.msra.mxu0 0.0
      %2109 = vmatpush.msra.mxu0 0.0
      %2110 = vmatpush.msra.mxu0 0.0
      %2111 = vmatpush.msra.mxu0 0.0
      %2112 = vmatpush.msra.mxu0 0.0
      %2113 = vmatpush.msra.mxu0 0.0
      %2114 = vmatpush.msra.mxu0 0.0
      %2115 = vmatpush.msra.mxu0 0.0
      %2116 = vmatpush.msra.mxu0 0.0
      %2117 = vmatpush.msra.mxu0 %v2096
      %2118 = vmatmul.f32.gmra.mxu0 %v2100
      %v2119 = vpop.f32.mrf.mxu0
      %v2120 = vadd.f32 0.0, %v2119
      %2121 = vdwg.mxu0
      %v2122 = vadd.f32 %v2093, %v2120
      %2123 = vrot.lane.b32.xlu0 %v634, 1
      %v2124 = vpop.permute.xlu0 %2123
      %s2125 = scalar_lea.vmem %s6, 24
      %v2126 = vld [vmem:[%s2125] sm:$0xff]
      %v2128 = vsel %vm662, %v2126, 0
      %2130 = vmatpush.msra.mxu0 0.0
      %2131 = vmatpush.msra.mxu0 0.0
      %2132 = vmatpush.msra.mxu0 0.0
      %2133 = vmatpush.msra.mxu0 0.0
      %2134 = vmatpush.msra.mxu0 0.0
      %2135 = vmatpush.msra.mxu0 0.0
      %2136 = vmatpush.msra.mxu0 0.0
      %2137 = vmatpush.msra.mxu0 0.0
      %2138 = vmatpush.msra.mxu0 0.0
      %2139 = vmatpush.msra.mxu0 0.0
      %2140 = vmatpush.msra.mxu0 0.0
      %2141 = vmatpush.msra.mxu0 0.0
      %2142 = vmatpush.msra.mxu0 0.0
      %2143 = vmatpush.msra.mxu0 0.0
      %2144 = vmatpush.msra.mxu0 0.0
      %2145 = vmatpush.msra.mxu0 %v2124
      %2146 = vmatmul.f32.gmra.mxu0 %v2128
      %v2147 = vpop.f32.mrf.mxu0
      %v2148 = vadd.f32 0.0, %v2147
      %2149 = vdwg.mxu0
      %v2150 = vadd.f32 %v2122, %v2148
      %s2151 = scalar_lea.vmem %s6, 32
      %v2152 = vld [vmem:[%s2151] sm:$0xff]
      %v2154 = vsel %vm662, %v2152, 0
      %2156 = vmatpush.msra.mxu0 0.0
      %2157 = vmatpush.msra.mxu0 0.0
      %2158 = vmatpush.msra.mxu0 0.0
      %2159 = vmatpush.msra.mxu0 0.0
      %2160 = vmatpush.msra.mxu0 0.0
      %2161 = vmatpush.msra.mxu0 0.0
      %2162 = vmatpush.msra.mxu0 0.0
      %2163 = vmatpush.msra.mxu0 0.0
      %2164 = vmatpush.msra.mxu0 0.0
      %2165 = vmatpush.msra.mxu0 0.0
      %2166 = vmatpush.msra.mxu0 0.0
      %2167 = vmatpush.msra.mxu0 0.0
      %2168 = vmatpush.msra.mxu0 0.0
      %2169 = vmatpush.msra.mxu0 0.0
      %2170 = vmatpush.msra.mxu0 0.0
      %2171 = vmatpush.msra.mxu0 %v634
      %2172 = vmatmul.f32.gmra.mxu0 %v2154
      %v2173 = vpop.f32.mrf.mxu0
      %v2174 = vadd.f32 0.0, %v2173
      %2175 = vdwg.mxu0
      %v2176 = vadd.f32 %v2150, %v2174
      %2177 = vrot.lane.b32.xlu0 %v634, 127
      %v2178 = vpop.permute.xlu0 %2177
      %s2179 = scalar_lea.vmem %s6, 40
      %v2180 = vld [vmem:[%s2179] sm:$0xff]
      %v2182 = vsel %vm662, %v2180, 0
      %2184 = vmatpush.msra.mxu0 0.0
      %2185 = vmatpush.msra.mxu0 0.0
      %2186 = vmatpush.msra.mxu0 0.0
      %2187 = vmatpush.msra.mxu0 0.0
      %2188 = vmatpush.msra.mxu0 0.0
      %2189 = vmatpush.msra.mxu0 0.0
      %2190 = vmatpush.msra.mxu0 0.0
      %2191 = vmatpush.msra.mxu0 0.0
      %2192 = vmatpush.msra.mxu0 0.0
      %2193 = vmatpush.msra.mxu0 0.0
      %2194 = vmatpush.msra.mxu0 0.0
      %2195 = vmatpush.msra.mxu0 0.0
      %2196 = vmatpush.msra.mxu0 0.0
      %2197 = vmatpush.msra.mxu0 0.0
      %2198 = vmatpush.msra.mxu0 0.0
      %2199 = vmatpush.msra.mxu0 %v2178
      %2200 = vmatmul.f32.gmra.mxu0 %v2182
      %v2201 = vpop.f32.mrf.mxu0
      %v2202 = vadd.f32 0.0, %v2201
      %2203 = vdwg.mxu0
      %v2204 = vadd.f32 %v2176, %v2202
      %2205 = vrot.lane.b32.xlu0 %v634, 119
      %v2206 = vpop.permute.xlu0 %2205
      %s2207 = scalar_lea.vmem %s6, 48
      %v2208 = vld [vmem:[%s2207] sm:$0xff]
      %v2210 = vsel %vm662, %v2208, 0
      %2212 = vmatpush.msra.mxu0 0.0
      %2213 = vmatpush.msra.mxu0 0.0
      %2214 = vmatpush.msra.mxu0 0.0
      %2215 = vmatpush.msra.mxu0 0.0
      %2216 = vmatpush.msra.mxu0 0.0
      %2217 = vmatpush.msra.mxu0 0.0
      %2218 = vmatpush.msra.mxu0 0.0
      %2219 = vmatpush.msra.mxu0 0.0
      %2220 = vmatpush.msra.mxu0 0.0
      %2221 = vmatpush.msra.mxu0 0.0
      %2222 = vmatpush.msra.mxu0 0.0
      %2223 = vmatpush.msra.mxu0 0.0
      %2224 = vmatpush.msra.mxu0 0.0
      %2225 = vmatpush.msra.mxu0 0.0
      %2226 = vmatpush.msra.mxu0 0.0
      %2227 = vmatpush.msra.mxu0 %v2206
      %2228 = vmatmul.f32.gmra.mxu0 %v2210
      %v2229 = vpop.f32.mrf.mxu0
      %v2230 = vadd.f32 0.0, %v2229
      %2231 = vdwg.mxu0
      %v2232 = vadd.f32 %v2204, %v2230
      %2233 = vrot.lane.b32.xlu0 %v634, 118
      %v2234 = vpop.permute.xlu0 %2233
      %s2235 = scalar_lea.vmem %s6, 56
      %v2236 = vld [vmem:[%s2235] sm:$0xff]
      %v2238 = vsel %vm662, %v2236, 0
      %2240 = vmatpush.msra.mxu0 0.0
      %2241 = vmatpush.msra.mxu0 0.0
      %2242 = vmatpush.msra.mxu0 0.0
      %2243 = vmatpush.msra.mxu0 0.0
      %2244 = vmatpush.msra.mxu0 0.0
      %2245 = vmatpush.msra.mxu0 0.0
      %2246 = vmatpush.msra.mxu0 0.0
      %2247 = vmatpush.msra.mxu0 0.0
      %2248 = vmatpush.msra.mxu0 0.0
      %2249 = vmatpush.msra.mxu0 0.0
      %2250 = vmatpush.msra.mxu0 0.0
      %2251 = vmatpush.msra.mxu0 0.0
      %2252 = vmatpush.msra.mxu0 0.0
      %2253 = vmatpush.msra.mxu0 0.0
      %2254 = vmatpush.msra.mxu0 0.0
      %2255 = vmatpush.msra.mxu0 %v2234
      %2256 = vmatmul.f32.gmra.mxu0 %v2238
      %v2257 = vpop.f32.mrf.mxu0
      %v2258 = vadd.f32 0.0, %v2257
      %2259 = vdwg.mxu0
      %v2260 = vadd.f32 %v2232, %v2258
      %2261 = vrot.lane.b32.xlu0 %v634, 117
      %v2262 = vpop.permute.xlu0 %2261
      %s2263 = scalar_lea.vmem %s6, 64
      %v2264 = vld [vmem:[%s2263] sm:$0xff]
      %v2266 = vsel %vm662, %v2264, 0
      %2268 = vmatpush.msra.mxu0 0.0
      %2269 = vmatpush.msra.mxu0 0.0
      %2270 = vmatpush.msra.mxu0 0.0
      %2271 = vmatpush.msra.mxu0 0.0
      %2272 = vmatpush.msra.mxu0 0.0
      %2273 = vmatpush.msra.mxu0 0.0
      %2274 = vmatpush.msra.mxu0 0.0
      %2275 = vmatpush.msra.mxu0 0.0
      %2276 = vmatpush.msra.mxu0 0.0
      %2277 = vmatpush.msra.mxu0 0.0
      %2278 = vmatpush.msra.mxu0 0.0
      %2279 = vmatpush.msra.mxu0 0.0
      %2280 = vmatpush.msra.mxu0 0.0
      %2281 = vmatpush.msra.mxu0 0.0
      %2282 = vmatpush.msra.mxu0 0.0
      %2283 = vmatpush.msra.mxu0 %v2262
      %2284 = vmatmul.f32.gmra.mxu0 %v2266
      %v2285 = vpop.f32.mrf.mxu0
      %v2286 = vadd.f32 0.0, %v2285
      %2287 = vdwg.mxu0
      %v2288 = vadd.f32 %v2260, %v2286
      %v2289 = vld [vmem:[%s7] sm:$0xff]
      %2291 = vset.pattern.permute.xlu0 0
      %2292 = vperm.xlu0 %2291, %v2289
      %v2293 = vpop.permute.xlu0 %2292
      %v2295 = vadd.f32 %v2288, %v2293
      %v2296 = vmax.f32 %v2295, 0.0
      %v2298 = vperm.slane %v636, 0
      %v2300 = vmul.f32 %v2296, %v2298
      %2301 = vrot.lane.b32.xlu0 %v2300, 11
      %v2302 = vpop.permute.xlu0 %2301
      %v2303 = vld [vmem:[%s8] sm:$0xff]
      %2304 = vrot.lane.b32.xlu0 %v2300, 10
      %v2305 = vpop.permute.xlu0 %2304
      %s2306 = scalar_lea.vmem %s8, 8
      %v2307 = vld [vmem:[%s2306] sm:$0xff]
      %v2309 = vsel %vm662, %v2307, 0
      %2311 = vmatpush.msra.mxu0 0.0
      %2312 = vmatpush.msra.mxu0 0.0
      %2313 = vmatpush.msra.mxu0 0.0
      %2314 = vmatpush.msra.mxu0 0.0
      %2315 = vmatpush.msra.mxu0 0.0
      %2316 = vmatpush.msra.mxu0 0.0
      %2317 = vmatpush.msra.mxu0 0.0
      %2318 = vmatpush.msra.mxu0 0.0
      %2319 = vmatpush.msra.mxu0 0.0
      %2320 = vmatpush.msra.mxu0 0.0
      %2321 = vmatpush.msra.mxu0 0.0
      %2322 = vmatpush.msra.mxu0 0.0
      %2323 = vmatpush.msra.mxu0 0.0
      %2324 = vmatpush.msra.mxu0 0.0
      %2325 = vmatpush.msra.mxu0 0.0
      %2326 = vmatpush.msra.mxu0 %v2305
      %2327 = vmatmul.f32.gmra.mxu0 %v2309
      %v2328 = vpop.f32.mrf.mxu0
      %v2329 = vadd.f32 0.0, %v2328
      %2330 = vdwg.mxu0
      %v2332 = vsel %vm662, %v2303, 0
      %2334 = vmatpush.msra.mxu0 0.0
      %2335 = vmatpush.msra.mxu0 0.0
      %2336 = vmatpush.msra.mxu0 0.0
      %2337 = vmatpush.msra.mxu0 0.0
      %2338 = vmatpush.msra.mxu0 0.0
      %2339 = vmatpush.msra.mxu0 0.0
      %2340 = vmatpush.msra.mxu0 0.0
      %2341 = vmatpush.msra.mxu0 0.0
      %2342 = vmatpush.msra.mxu0 0.0
      %2343 = vmatpush.msra.mxu0 0.0
      %2344 = vmatpush.msra.mxu0 0.0
      %2345 = vmatpush.msra.mxu0 0.0
      %2346 = vmatpush.msra.mxu0 0.0
      %2347 = vmatpush.msra.mxu0 0.0
      %2348 = vmatpush.msra.mxu0 0.0
      %2349 = vmatpush.msra.mxu0 %v2302
      %2350 = vmatmul.f32.gmra.mxu0 %v2332
      %v2351 = vpop.f32.mrf.mxu0
      %v2352 = vadd.f32 %v2329, %v2351
      %2353 = vdwg.mxu0
      %2354 = vrot.lane.b32.xlu0 %v2300, 9
      %v2355 = vpop.permute.xlu0 %2354
      %s2356 = scalar_lea.vmem %s8, 16
      %v2357 = vld [vmem:[%s2356] sm:$0xff]
      %v2359 = vsel %vm662, %v2357, 0
      %2361 = vmatpush.msra.mxu0 0.0
      %2362 = vmatpush.msra.mxu0 0.0
      %2363 = vmatpush.msra.mxu0 0.0
      %2364 = vmatpush.msra.mxu0 0.0
      %2365 = vmatpush.msra.mxu0 0.0
      %2366 = vmatpush.msra.mxu0 0.0
      %2367 = vmatpush.msra.mxu0 0.0
      %2368 = vmatpush.msra.mxu0 0.0
      %2369 = vmatpush.msra.mxu0 0.0
      %2370 = vmatpush.msra.mxu0 0.0
      %2371 = vmatpush.msra.mxu0 0.0
      %2372 = vmatpush.msra.mxu0 0.0
      %2373 = vmatpush.msra.mxu0 0.0
      %2374 = vmatpush.msra.mxu0 0.0
      %2375 = vmatpush.msra.mxu0 0.0
      %2376 = vmatpush.msra.mxu0 %v2355
      %2377 = vmatmul.f32.gmra.mxu0 %v2359
      %v2378 = vpop.f32.mrf.mxu0
      %v2379 = vadd.f32 0.0, %v2378
      %2380 = vdwg.mxu0
      %v2381 = vadd.f32 %v2352, %v2379
      %2382 = vrot.lane.b32.xlu0 %v2300, 1
      %v2383 = vpop.permute.xlu0 %2382
      %s2384 = scalar_lea.vmem %s8, 24
      %v2385 = vld [vmem:[%s2384] sm:$0xff]
      %v2387 = vsel %vm662, %v2385, 0
      %2389 = vmatpush.msra.mxu0 0.0
      %2390 = vmatpush.msra.mxu0 0.0
      %2391 = vmatpush.msra.mxu0 0.0
      %2392 = vmatpush.msra.mxu0 0.0
      %2393 = vmatpush.msra.mxu0 0.0
      %2394 = vmatpush.msra.mxu0 0.0
      %2395 = vmatpush.msra.mxu0 0.0
      %2396 = vmatpush.msra.mxu0 0.0
      %2397 = vmatpush.msra.mxu0 0.0
      %2398 = vmatpush.msra.mxu0 0.0
      %2399 = vmatpush.msra.mxu0 0.0
      %2400 = vmatpush.msra.mxu0 0.0
      %2401 = vmatpush.msra.mxu0 0.0
      %2402 = vmatpush.msra.mxu0 0.0
      %2403 = vmatpush.msra.mxu0 0.0
      %2404 = vmatpush.msra.mxu0 %v2383
      %2405 = vmatmul.f32.gmra.mxu0 %v2387
      %v2406 = vpop.f32.mrf.mxu0
      %v2407 = vadd.f32 0.0, %v2406
      %2408 = vdwg.mxu0
      %v2409 = vadd.f32 %v2381, %v2407
      %s2410 = scalar_lea.vmem %s8, 32
      %v2411 = vld [vmem:[%s2410] sm:$0xff]
      %v2413 = vsel %vm662, %v2411, 0
      %2415 = vmatpush.msra.mxu0 0.0
      %2416 = vmatpush.msra.mxu0 0.0
      %2417 = vmatpush.msra.mxu0 0.0
      %2418 = vmatpush.msra.mxu0 0.0
      %2419 = vmatpush.msra.mxu0 0.0
      %2420 = vmatpush.msra.mxu0 0.0
      %2421 = vmatpush.msra.mxu0 0.0
      %2422 = vmatpush.msra.mxu0 0.0
      %2423 = vmatpush.msra.mxu0 0.0
      %2424 = vmatpush.msra.mxu0 0.0
      %2425 = vmatpush.msra.mxu0 0.0
      %2426 = vmatpush.msra.mxu0 0.0
      %2427 = vmatpush.msra.mxu0 0.0
      %2428 = vmatpush.msra.mxu0 0.0
      %2429 = vmatpush.msra.mxu0 0.0
      %2430 = vmatpush.msra.mxu0 %v2300
      %2431 = vmatmul.f32.gmra.mxu0 %v2413
      %v2432 = vpop.f32.mrf.mxu0
      %v2433 = vadd.f32 0.0, %v2432
      %2434 = vdwg.mxu0
      %v2435 = vadd.f32 %v2409, %v2433
      %2436 = vrot.lane.b32.xlu0 %v2300, 127
      %v2437 = vpop.permute.xlu0 %2436
      %s2438 = scalar_lea.vmem %s8, 40
      %v2439 = vld [vmem:[%s2438] sm:$0xff]
      %v2441 = vsel %vm662, %v2439, 0
      %2443 = vmatpush.msra.mxu0 0.0
      %2444 = vmatpush.msra.mxu0 0.0
      %2445 = vmatpush.msra.mxu0 0.0
      %2446 = vmatpush.msra.mxu0 0.0
      %2447 = vmatpush.msra.mxu0 0.0
      %2448 = vmatpush.msra.mxu0 0.0
      %2449 = vmatpush.msra.mxu0 0.0
      %2450 = vmatpush.msra.mxu0 0.0
      %2451 = vmatpush.msra.mxu0 0.0
      %2452 = vmatpush.msra.mxu0 0.0
      %2453 = vmatpush.msra.mxu0 0.0
      %2454 = vmatpush.msra.mxu0 0.0
      %2455 = vmatpush.msra.mxu0 0.0
      %2456 = vmatpush.msra.mxu0 0.0
      %2457 = vmatpush.msra.mxu0 0.0
      %2458 = vmatpush.msra.mxu0 %v2437
      %2459 = vmatmul.f32.gmra.mxu0 %v2441
      %v2460 = vpop.f32.mrf.mxu0
      %v2461 = vadd.f32 0.0, %v2460
      %2462 = vdwg.mxu0
      %v2463 = vadd.f32 %v2435, %v2461
      %2464 = vrot.lane.b32.xlu0 %v2300, 119
      %v2465 = vpop.permute.xlu0 %2464
      %s2466 = scalar_lea.vmem %s8, 48
      %v2467 = vld [vmem:[%s2466] sm:$0xff]
      %v2469 = vsel %vm662, %v2467, 0
      %2471 = vmatpush.msra.mxu0 0.0
      %2472 = vmatpush.msra.mxu0 0.0
      %2473 = vmatpush.msra.mxu0 0.0
      %2474 = vmatpush.msra.mxu0 0.0
      %2475 = vmatpush.msra.mxu0 0.0
      %2476 = vmatpush.msra.mxu0 0.0
      %2477 = vmatpush.msra.mxu0 0.0
      %2478 = vmatpush.msra.mxu0 0.0
      %2479 = vmatpush.msra.mxu0 0.0
      %2480 = vmatpush.msra.mxu0 0.0
      %2481 = vmatpush.msra.mxu0 0.0
      %2482 = vmatpush.msra.mxu0 0.0
      %2483 = vmatpush.msra.mxu0 0.0
      %2484 = vmatpush.msra.mxu0 0.0
      %2485 = vmatpush.msra.mxu0 0.0
      %2486 = vmatpush.msra.mxu0 %v2465
      %2487 = vmatmul.f32.gmra.mxu0 %v2469
      %v2488 = vpop.f32.mrf.mxu0
      %v2489 = vadd.f32 0.0, %v2488
      %2490 = vdwg.mxu0
      %v2491 = vadd.f32 %v2463, %v2489
      %2492 = vrot.lane.b32.xlu0 %v2300, 118
      %v2493 = vpop.permute.xlu0 %2492
      %s2494 = scalar_lea.vmem %s8, 56
      %v2495 = vld [vmem:[%s2494] sm:$0xff]
      %v2497 = vsel %vm662, %v2495, 0
      %2499 = vmatpush.msra.mxu0 0.0
      %2500 = vmatpush.msra.mxu0 0.0
      %2501 = vmatpush.msra.mxu0 0.0
      %2502 = vmatpush.msra.mxu0 0.0
      %2503 = vmatpush.msra.mxu0 0.0
      %2504 = vmatpush.msra.mxu0 0.0
      %2505 = vmatpush.msra.mxu0 0.0
      %2506 = vmatpush.msra.mxu0 0.0
      %2507 = vmatpush.msra.mxu0 0.0
      %2508 = vmatpush.msra.mxu0 0.0
      %2509 = vmatpush.msra.mxu0 0.0
      %2510 = vmatpush.msra.mxu0 0.0
      %2511 = vmatpush.msra.mxu0 0.0
      %2512 = vmatpush.msra.mxu0 0.0
      %2513 = vmatpush.msra.mxu0 0.0
      %2514 = vmatpush.msra.mxu0 %v2493
      %2515 = vmatmul.f32.gmra.mxu0 %v2497
      %v2516 = vpop.f32.mrf.mxu0
      %v2517 = vadd.f32 0.0, %v2516
      %2518 = vdwg.mxu0
      %v2519 = vadd.f32 %v2491, %v2517
      %2520 = vrot.lane.b32.xlu0 %v2300, 117
      %v2521 = vpop.permute.xlu0 %2520
      %s2522 = scalar_lea.vmem %s8, 64
      %v2523 = vld [vmem:[%s2522] sm:$0xff]
      %v2525 = vsel %vm662, %v2523, 0
      %2527 = vmatpush.msra.mxu0 0.0
      %2528 = vmatpush.msra.mxu0 0.0
      %2529 = vmatpush.msra.mxu0 0.0
      %2530 = vmatpush.msra.mxu0 0.0
      %2531 = vmatpush.msra.mxu0 0.0
      %2532 = vmatpush.msra.mxu0 0.0
      %2533 = vmatpush.msra.mxu0 0.0
      %2534 = vmatpush.msra.mxu0 0.0
      %2535 = vmatpush.msra.mxu0 0.0
      %2536 = vmatpush.msra.mxu0 0.0
      %2537 = vmatpush.msra.mxu0 0.0
      %2538 = vmatpush.msra.mxu0 0.0
      %2539 = vmatpush.msra.mxu0 0.0
      %2540 = vmatpush.msra.mxu0 0.0
      %2541 = vmatpush.msra.mxu0 0.0
      %2542 = vmatpush.msra.mxu0 %v2521
      %2543 = vmatmul.f32.gmra.mxu0 %v2525
      %v2544 = vpop.f32.mrf.mxu0
      %v2545 = vadd.f32 0.0, %v2544
      %2546 = vdwg.mxu0
      %v2547 = vadd.f32 %v2519, %v2545
      %v2548 = vld [vmem:[%s9] sm:$0xff]
      %2550 = vset.pattern.permute.xlu0 0
      %2551 = vperm.xlu0 %2550, %v2548
      %v2552 = vpop.permute.xlu0 %2551
      %v2554 = vadd.f32 %v2547, %v2552
      %v2555 = vadd.f32 %v2554, %v634
      %v2556 = vmax.f32 %v2555, 0.0
      %v2557 = vmul.f32 %v2556, %v2298
      %v2558 = vld [vmem:[%s10] sm:$0xff]
      %v2559 = vld [vmem:[%s11] sm:$0xff]
      %2561 = vset.pattern.permute.xlu0 0
      %2562 = vperm.xlu0 %2561, %v2559
      %v2563 = vpop.permute.xlu0 %2562
      %v2566 = vsel %vm662, %v2558, 0
      %2568 = vmatpush.msra.mxu0 0.0
      %2569 = vmatpush.msra.mxu0 0.0
      %2570 = vmatpush.msra.mxu0 0.0
      %2571 = vmatpush.msra.mxu0 0.0
      %2572 = vmatpush.msra.mxu0 0.0
      %2573 = vmatpush.msra.mxu0 0.0
      %2574 = vmatpush.msra.mxu0 0.0
      %2575 = vmatpush.msra.mxu0 0.0
      %2576 = vmatpush.msra.mxu0 0.0
      %2577 = vmatpush.msra.mxu0 0.0
      %2578 = vmatpush.msra.mxu0 0.0
      %2579 = vmatpush.msra.mxu0 0.0
      %2580 = vmatpush.msra.mxu0 0.0
      %2581 = vmatpush.msra.mxu0 0.0
      %2582 = vmatpush.msra.mxu0 0.0
      %2583 = vmatpush.msra.mxu0 %v2557
      %2584 = vmatmul.f32.gmra.mxu0 %v2566
      %v2585 = vpop.f32.mrf.mxu0
      %v2586 = vadd.f32 %v2563, %v2585
      %2587 = vdwg.mxu0
      %v2588 = vld [vmem:[%s14] sm:$0xff]
      %v2589 = vld [vmem:[%s14 + $0x8] sm:$0xff]
      %v2590 = vld [vmem:[%s14 + $0x10] sm:$0xff]
      %v2591 = vld [vmem:[%s14 + $0x18] sm:$0xff]
      %v2592 = vld [vmem:[%s14 + $0x20] sm:$0xff]
      %v2593 = vld [vmem:[%s14 + $0x28] sm:$0xff]
      %v2594 = vld [vmem:[%s14 + $0x30] sm:$0xff]
      %v2595 = vld [vmem:[%s14 + $0x38] sm:$0xff]
      %v2596 = vld [vmem:[%s14 + $0x40] sm:$0xff]
      %v2597 = vld [vmem:[%s14 + $0x48] sm:$0xff]
      %v2598 = vld [vmem:[%s14 + $0x50] sm:$0xff]
      %v2599 = vld [vmem:[%s14 + $0x58] sm:$0xff]
      %v2600 = vld [vmem:[%s14 + $0x60] sm:$0xff]
      %v2601 = vld [vmem:[%s14 + $0x68] sm:$0xff]
      %v2602 = vld [vmem:[%s14 + $0x70] sm:$0xff]
      %v2603 = vld [vmem:[%s14 + $0x78] sm:$0xff]
      %v2604 = vld [vmem:[%s14 + $0x80] sm:$0xff]
      %v2605 = vld [vmem:[%s14 + $0x88] sm:$0xff]
      %v2606 = vld [vmem:[%s14 + $0x90] sm:$0xff]
      %v2607 = vld [vmem:[%s14 + $0x98] sm:$0xff]
      %v2608 = vld [vmem:[%s14 + $0xa0] sm:$0xff]
      %v2609 = vld [vmem:[%s14 + $0xa8] sm:$0xff]
      %v2610 = vld [vmem:[%s14 + $0xb0] sm:$0xff]
      %v2611 = vld [vmem:[%s14 + $0xb8] sm:$0xff]
      %v2612 = vld [vmem:[%s14 + $0xc0] sm:$0xff]
      %v2613 = vld [vmem:[%s14 + $0xc8] sm:$0xff]
      %v2614 = vld [vmem:[%s14 + $0xd0] sm:$0xff]
      %v2615 = vld [vmem:[%s14 + $0xd8] sm:$0xff]
      %v2616 = vld [vmem:[%s14 + $0xe0] sm:$0xff]
      %v2617 = vld [vmem:[%s14 + $0xe8] sm:$0xff]
      %v2618 = vld [vmem:[%s14 + $0xf0] sm:$0xff]
      %v2619 = vld [vmem:[%s14 + $0xf8] sm:$0xff]
      %v2620 = vld [vmem:[%s14 + $0x100] sm:$0xff]
      %v2621 = vld [vmem:[%s14 + $0x108] sm:$0xff]
      %v2622 = vld [vmem:[%s14 + $0x110] sm:$0xff]
      %v2623 = vld [vmem:[%s14 + $0x118] sm:$0xff]
      %v2624 = vld [vmem:[%s14 + $0x120] sm:$0xff]
      %v2625 = vld [vmem:[%s14 + $0x128] sm:$0xff]
      %v2626 = vld [vmem:[%s14 + $0x130] sm:$0xff]
      %v2627 = vld [vmem:[%s14 + $0x138] sm:$0xff]
      %v2628 = vld [vmem:[%s14 + $0x140] sm:$0xff]
      %v2629 = vld [vmem:[%s14 + $0x148] sm:$0xff]
      %v2630 = vld [vmem:[%s14 + $0x150] sm:$0xff]
      %v2631 = vld [vmem:[%s14 + $0x158] sm:$0xff]
      %v2632 = vld [vmem:[%s14 + $0x160] sm:$0xff]
      %v2633 = vld [vmem:[%s14 + $0x168] sm:$0xff]
      %v2634 = vld [vmem:[%s14 + $0x170] sm:$0xff]
      %v2635 = vld [vmem:[%s14 + $0x178] sm:$0xff]
      %2636 = vmatpush.msra.mxu0 %v2633
      %2637 = vmatpush.msra.mxu0 %v2630
      %2638 = vmatpush.msra.mxu0 %v2627
      %2639 = vmatpush.msra.mxu0 %v2624
      %2640 = vmatpush.msra.mxu0 %v2621
      %2641 = vmatpush.msra.mxu0 %v2618
      %2642 = vmatpush.msra.mxu0 %v2615
      %2643 = vmatpush.msra.mxu0 %v2612
      %2644 = vmatpush.msra.mxu0 %v2609
      %2645 = vmatpush.msra.mxu0 %v2606
      %2646 = vmatpush.msra.mxu0 %v2603
      %2647 = vmatpush.msra.mxu0 %v2600
      %2648 = vmatpush.msra.mxu0 %v2597
      %2649 = vmatpush.msra.mxu0 %v2594
      %2650 = vmatpush.msra.mxu0 %v2591
      %2651 = vmatpush.msra.mxu0 %v2588
      %2652 = vmatmul.f32.gmra.mxu0 %v2586
      %v2653 = vpop.f32.mrf.mxu0
      %v2654 = vadd.f32 0.0, %v2653
      %2655 = vdwg.mxu0
      %2656 = vmatpush.msra.mxu0 %v2634
      %2657 = vmatpush.msra.mxu0 %v2631
      %2658 = vmatpush.msra.mxu0 %v2628
      %2659 = vmatpush.msra.mxu0 %v2625
      %2660 = vmatpush.msra.mxu0 %v2622
      %2661 = vmatpush.msra.mxu0 %v2619
      %2662 = vmatpush.msra.mxu0 %v2616
      %2663 = vmatpush.msra.mxu0 %v2613
      %2664 = vmatpush.msra.mxu0 %v2610
      %2665 = vmatpush.msra.mxu0 %v2607
      %2666 = vmatpush.msra.mxu0 %v2604
      %2667 = vmatpush.msra.mxu0 %v2601
      %2668 = vmatpush.msra.mxu0 %v2598
      %2669 = vmatpush.msra.mxu0 %v2595
      %2670 = vmatpush.msra.mxu0 %v2592
      %2671 = vmatpush.msra.mxu0 %v2589
      %2672 = vmatmul.f32.gmra.mxu0 %v2586
      %v2673 = vpop.f32.mrf.mxu0
      %v2674 = vadd.f32 0.0, %v2673
      %2675 = vdwg.mxu0
      %2676 = vmatpush.msra.mxu0 %v2635
      %2677 = vmatpush.msra.mxu0 %v2632
      %2678 = vmatpush.msra.mxu0 %v2629
      %2679 = vmatpush.msra.mxu0 %v2626
      %2680 = vmatpush.msra.mxu0 %v2623
      %2681 = vmatpush.msra.mxu0 %v2620
      %2682 = vmatpush.msra.mxu0 %v2617
      %2683 = vmatpush.msra.mxu0 %v2614
      %2684 = vmatpush.msra.mxu0 %v2611
      %2685 = vmatpush.msra.mxu0 %v2608
      %2686 = vmatpush.msra.mxu0 %v2605
      %2687 = vmatpush.msra.mxu0 %v2602
      %2688 = vmatpush.msra.mxu0 %v2599
      %2689 = vmatpush.msra.mxu0 %v2596
      %2690 = vmatpush.msra.mxu0 %v2593
      %2691 = vmatpush.msra.mxu0 %v2590
      %2692 = vmatmul.f32.gmra.mxu0 %v2586
      %v2693 = vpop.f32.mrf.mxu0
      %v2694 = vadd.f32 0.0, %v2693
      %2695 = vdwg.mxu0
      %v2696 = vadd.f32 %v2039, %v2654
      %v2697 = vadd.f32 %v2040, %v2674
      %v2698 = vadd.f32 %v2041, %v2694
      %v2699 = vmax.f32 %v2696, 0.0
      %v2700 = vmax.f32 %v2697, 0.0
      %v2701 = vmax.f32 %v2698, 0.0
      %2702 = vst [vmem:[%s626] sm:$0xff] %v2699
      %2703 = vst [vmem:[%s626 + $0x8] sm:$0xff] %v2700
      %2704 = vst [vmem:[%s626 + $0x10] sm:$0xff] %v2701
      %2705 = vrot.lane.b32.xlu0 %v2039, 19
      %v2706 = vpop.permute.xlu0 %2705
      %2707 = vrot.lane.b32.xlu0 %v2040, 19
      %v2708 = vpop.permute.xlu0 %2707
      %2709 = vrot.lane.b32.xlu0 %v2041, 19
      %v2710 = vpop.permute.xlu0 %2709
      %v2711 = vsel %vm645, %v2708, %v2710
      %v2712 = vsel %vm645, %v2706, %v2708
      %v2713 = vsel %vm645, %v2710, %v2706
      %v2714 = vld [vmem:[%s12] sm:$0xff]
      %2715 = vrot.lane.b32.xlu0 %v2039, 18
      %v2716 = vpop.permute.xlu0 %2715
      %2717 = vrot.lane.b32.xlu0 %v2040, 18
      %v2718 = vpop.permute.xlu0 %2717
      %2719 = vrot.lane.b32.xlu0 %v2041, 18
      %v2720 = vpop.permute.xlu0 %2719
      %v2721 = vsel %vm656, %v2718, %v2720
      %v2722 = vsel %vm656, %v2716, %v2718
      %v2723 = vsel %vm656, %v2720, %v2716
      %s2724 = scalar_lea.vmem %s12, 8
      %v2725 = vld [vmem:[%s2724] sm:$0xff]
      %v2727 = vsel %vm662, %v2725, 0
      %2729 = vmatpush.msra.mxu0 0.0
      %2730 = vmatpush.msra.mxu0 0.0
      %2731 = vmatpush.msra.mxu0 0.0
      %2732 = vmatpush.msra.mxu0 0.0
      %2733 = vmatpush.msra.mxu0 0.0
      %2734 = vmatpush.msra.mxu0 0.0
      %2735 = vmatpush.msra.mxu0 0.0
      %2736 = vmatpush.msra.mxu0 0.0
      %2737 = vmatpush.msra.mxu0 0.0
      %2738 = vmatpush.msra.mxu0 0.0
      %2739 = vmatpush.msra.mxu0 0.0
      %2740 = vmatpush.msra.mxu0 0.0
      %2741 = vmatpush.msra.mxu0 0.0
      %2742 = vmatpush.msra.mxu0 0.0
      %2743 = vmatpush.msra.mxu0 0.0
      %2744 = vmatpush.msra.mxu0 %v2723
      %2745 = vmatmul.f32.gmra.mxu0 %v2727
      %v2746 = vpop.f32.mrf.mxu0
      %v2747 = vadd.f32 0.0, %v2746
      %2748 = vdwg.mxu0
      %2749 = vmatpush.msra.mxu0 0.0
      %2750 = vmatpush.msra.mxu0 0.0
      %2751 = vmatpush.msra.mxu0 0.0
      %2752 = vmatpush.msra.mxu0 0.0
      %2753 = vmatpush.msra.mxu0 0.0
      %2754 = vmatpush.msra.mxu0 0.0
      %2755 = vmatpush.msra.mxu0 0.0
      %2756 = vmatpush.msra.mxu0 0.0
      %2757 = vmatpush.msra.mxu0 0.0
      %2758 = vmatpush.msra.mxu0 0.0
      %2759 = vmatpush.msra.mxu0 0.0
      %2760 = vmatpush.msra.mxu0 0.0
      %2761 = vmatpush.msra.mxu0 0.0
      %2762 = vmatpush.msra.mxu0 0.0
      %2763 = vmatpush.msra.mxu0 0.0
      %2764 = vmatpush.msra.mxu0 %v2722
      %2765 = vmatmul.f32.gmra.mxu0 %v2727
      %v2766 = vpop.f32.mrf.mxu0
      %v2767 = vadd.f32 0.0, %v2766
      %2768 = vdwg.mxu0
      %2769 = vmatpush.msra.mxu0 0.0
      %2770 = vmatpush.msra.mxu0 0.0
      %2771 = vmatpush.msra.mxu0 0.0
      %2772 = vmatpush.msra.mxu0 0.0
      %2773 = vmatpush.msra.mxu0 0.0
      %2774 = vmatpush.msra.mxu0 0.0
      %2775 = vmatpush.msra.mxu0 0.0
      %2776 = vmatpush.msra.mxu0 0.0
      %2777 = vmatpush.msra.mxu0 0.0
      %2778 = vmatpush.msra.mxu0 0.0
      %2779 = vmatpush.msra.mxu0 0.0
      %2780 = vmatpush.msra.mxu0 0.0
      %2781 = vmatpush.msra.mxu0 0.0
      %2782 = vmatpush.msra.mxu0 0.0
      %2783 = vmatpush.msra.mxu0 0.0
      %2784 = vmatpush.msra.mxu0 %v2721
      %2785 = vmatmul.f32.gmra.mxu0 %v2727
      %v2786 = vpop.f32.mrf.mxu0
      %v2787 = vadd.f32 0.0, %v2786
      %2788 = vdwg.mxu0
      %v2790 = vsel %vm662, %v2714, 0
      %2792 = vmatpush.msra.mxu0 0.0
      %2793 = vmatpush.msra.mxu0 0.0
      %2794 = vmatpush.msra.mxu0 0.0
      %2795 = vmatpush.msra.mxu0 0.0
      %2796 = vmatpush.msra.mxu0 0.0
      %2797 = vmatpush.msra.mxu0 0.0
      %2798 = vmatpush.msra.mxu0 0.0
      %2799 = vmatpush.msra.mxu0 0.0
      %2800 = vmatpush.msra.mxu0 0.0
      %2801 = vmatpush.msra.mxu0 0.0
      %2802 = vmatpush.msra.mxu0 0.0
      %2803 = vmatpush.msra.mxu0 0.0
      %2804 = vmatpush.msra.mxu0 0.0
      %2805 = vmatpush.msra.mxu0 0.0
      %2806 = vmatpush.msra.mxu0 0.0
      %2807 = vmatpush.msra.mxu0 %v2713
      %2808 = vmatmul.f32.gmra.mxu0 %v2790
      %v2809 = vpop.f32.mrf.mxu0
      %v2810 = vadd.f32 %v2747, %v2809
      %2811 = vdwg.mxu0
      %2812 = vmatpush.msra.mxu0 0.0
      %2813 = vmatpush.msra.mxu0 0.0
      %2814 = vmatpush.msra.mxu0 0.0
      %2815 = vmatpush.msra.mxu0 0.0
      %2816 = vmatpush.msra.mxu0 0.0
      %2817 = vmatpush.msra.mxu0 0.0
      %2818 = vmatpush.msra.mxu0 0.0
      %2819 = vmatpush.msra.mxu0 0.0
      %2820 = vmatpush.msra.mxu0 0.0
      %2821 = vmatpush.msra.mxu0 0.0
      %2822 = vmatpush.msra.mxu0 0.0
      %2823 = vmatpush.msra.mxu0 0.0
      %2824 = vmatpush.msra.mxu0 0.0
      %2825 = vmatpush.msra.mxu0 0.0
      %2826 = vmatpush.msra.mxu0 0.0
      %2827 = vmatpush.msra.mxu0 %v2712
      %2828 = vmatmul.f32.gmra.mxu0 %v2790
      %v2829 = vpop.f32.mrf.mxu0
      %v2830 = vadd.f32 %v2767, %v2829
      %2831 = vdwg.mxu0
      %2832 = vmatpush.msra.mxu0 0.0
      %2833 = vmatpush.msra.mxu0 0.0
      %2834 = vmatpush.msra.mxu0 0.0
      %2835 = vmatpush.msra.mxu0 0.0
      %2836 = vmatpush.msra.mxu0 0.0
      %2837 = vmatpush.msra.mxu0 0.0
      %2838 = vmatpush.msra.mxu0 0.0
      %2839 = vmatpush.msra.mxu0 0.0
      %2840 = vmatpush.msra.mxu0 0.0
      %2841 = vmatpush.msra.mxu0 0.0
      %2842 = vmatpush.msra.mxu0 0.0
      %2843 = vmatpush.msra.mxu0 0.0
      %2844 = vmatpush.msra.mxu0 0.0
      %2845 = vmatpush.msra.mxu0 0.0
      %2846 = vmatpush.msra.mxu0 0.0
      %2847 = vmatpush.msra.mxu0 %v2711
      %2848 = vmatmul.f32.gmra.mxu0 %v2790
      %v2849 = vpop.f32.mrf.mxu0
      %v2850 = vadd.f32 %v2787, %v2849
      %2851 = vdwg.mxu0
      %2852 = vrot.lane.b32.xlu0 %v2039, 17
      %v2853 = vpop.permute.xlu0 %2852
      %2854 = vrot.lane.b32.xlu0 %v2040, 17
      %v2855 = vpop.permute.xlu0 %2854
      %2856 = vrot.lane.b32.xlu0 %v2041, 17
      %v2857 = vpop.permute.xlu0 %2856
      %v2858 = vsel %vm795, %v2855, %v2857
      %v2859 = vsel %vm795, %v2853, %v2855
      %v2860 = vsel %vm795, %v2857, %v2853
      %s2861 = scalar_lea.vmem %s12, 16
      %v2862 = vld [vmem:[%s2861] sm:$0xff]
      %v2864 = vsel %vm662, %v2862, 0
      %2866 = vmatpush.msra.mxu0 0.0
      %2867 = vmatpush.msra.mxu0 0.0
      %2868 = vmatpush.msra.mxu0 0.0
      %2869 = vmatpush.msra.mxu0 0.0
      %2870 = vmatpush.msra.mxu0 0.0
      %2871 = vmatpush.msra.mxu0 0.0
      %2872 = vmatpush.msra.mxu0 0.0
      %2873 = vmatpush.msra.mxu0 0.0
      %2874 = vmatpush.msra.mxu0 0.0
      %2875 = vmatpush.msra.mxu0 0.0
      %2876 = vmatpush.msra.mxu0 0.0
      %2877 = vmatpush.msra.mxu0 0.0
      %2878 = vmatpush.msra.mxu0 0.0
      %2879 = vmatpush.msra.mxu0 0.0
      %2880 = vmatpush.msra.mxu0 0.0
      %2881 = vmatpush.msra.mxu0 %v2860
      %2882 = vmatmul.f32.gmra.mxu0 %v2864
      %v2883 = vpop.f32.mrf.mxu0
      %v2884 = vadd.f32 0.0, %v2883
      %2885 = vdwg.mxu0
      %2886 = vmatpush.msra.mxu0 0.0
      %2887 = vmatpush.msra.mxu0 0.0
      %2888 = vmatpush.msra.mxu0 0.0
      %2889 = vmatpush.msra.mxu0 0.0
      %2890 = vmatpush.msra.mxu0 0.0
      %2891 = vmatpush.msra.mxu0 0.0
      %2892 = vmatpush.msra.mxu0 0.0
      %2893 = vmatpush.msra.mxu0 0.0
      %2894 = vmatpush.msra.mxu0 0.0
      %2895 = vmatpush.msra.mxu0 0.0
      %2896 = vmatpush.msra.mxu0 0.0
      %2897 = vmatpush.msra.mxu0 0.0
      %2898 = vmatpush.msra.mxu0 0.0
      %2899 = vmatpush.msra.mxu0 0.0
      %2900 = vmatpush.msra.mxu0 0.0
      %2901 = vmatpush.msra.mxu0 %v2859
      %2902 = vmatmul.f32.gmra.mxu0 %v2864
      %v2903 = vpop.f32.mrf.mxu0
      %v2904 = vadd.f32 0.0, %v2903
      %2905 = vdwg.mxu0
      %2906 = vmatpush.msra.mxu0 0.0
      %2907 = vmatpush.msra.mxu0 0.0
      %2908 = vmatpush.msra.mxu0 0.0
      %2909 = vmatpush.msra.mxu0 0.0
      %2910 = vmatpush.msra.mxu0 0.0
      %2911 = vmatpush.msra.mxu0 0.0
      %2912 = vmatpush.msra.mxu0 0.0
      %2913 = vmatpush.msra.mxu0 0.0
      %2914 = vmatpush.msra.mxu0 0.0
      %2915 = vmatpush.msra.mxu0 0.0
      %2916 = vmatpush.msra.mxu0 0.0
      %2917 = vmatpush.msra.mxu0 0.0
      %2918 = vmatpush.msra.mxu0 0.0
      %2919 = vmatpush.msra.mxu0 0.0
      %2920 = vmatpush.msra.mxu0 0.0
      %2921 = vmatpush.msra.mxu0 %v2858
      %2922 = vmatmul.f32.gmra.mxu0 %v2864
      %v2923 = vpop.f32.mrf.mxu0
      %v2924 = vadd.f32 0.0, %v2923
      %2925 = vdwg.mxu0
      %v2926 = vadd.f32 %v2810, %v2884
      %v2927 = vadd.f32 %v2830, %v2904
      %v2928 = vadd.f32 %v2850, %v2924
      %2929 = vrot.lane.b32.xlu0 %v2039, 1
      %v2930 = vpop.permute.xlu0 %2929
      %2931 = vrot.lane.b32.xlu0 %v2040, 1
      %v2932 = vpop.permute.xlu0 %2931
      %2933 = vrot.lane.b32.xlu0 %v2041, 1
      %v2934 = vpop.permute.xlu0 %2933
      %v2935 = vsel %vm873, %v2932, %v2934
      %v2936 = vsel %vm873, %v2930, %v2932
      %v2937 = vsel %vm873, %v2934, %v2930
      %s2938 = scalar_lea.vmem %s12, 24
      %v2939 = vld [vmem:[%s2938] sm:$0xff]
      %v2941 = vsel %vm662, %v2939, 0
      %2943 = vmatpush.msra.mxu0 0.0
      %2944 = vmatpush.msra.mxu0 0.0
      %2945 = vmatpush.msra.mxu0 0.0
      %2946 = vmatpush.msra.mxu0 0.0
      %2947 = vmatpush.msra.mxu0 0.0
      %2948 = vmatpush.msra.mxu0 0.0
      %2949 = vmatpush.msra.mxu0 0.0
      %2950 = vmatpush.msra.mxu0 0.0
      %2951 = vmatpush.msra.mxu0 0.0
      %2952 = vmatpush.msra.mxu0 0.0
      %2953 = vmatpush.msra.mxu0 0.0
      %2954 = vmatpush.msra.mxu0 0.0
      %2955 = vmatpush.msra.mxu0 0.0
      %2956 = vmatpush.msra.mxu0 0.0
      %2957 = vmatpush.msra.mxu0 0.0
      %2958 = vmatpush.msra.mxu0 %v2937
      %2959 = vmatmul.f32.gmra.mxu0 %v2941
      %v2960 = vpop.f32.mrf.mxu0
      %v2961 = vadd.f32 0.0, %v2960
      %2962 = vdwg.mxu0
      %2963 = vmatpush.msra.mxu0 0.0
      %2964 = vmatpush.msra.mxu0 0.0
      %2965 = vmatpush.msra.mxu0 0.0
      %2966 = vmatpush.msra.mxu0 0.0
      %2967 = vmatpush.msra.mxu0 0.0
      %2968 = vmatpush.msra.mxu0 0.0
      %2969 = vmatpush.msra.mxu0 0.0
      %2970 = vmatpush.msra.mxu0 0.0
      %2971 = vmatpush.msra.mxu0 0.0
      %2972 = vmatpush.msra.mxu0 0.0
      %2973 = vmatpush.msra.mxu0 0.0
      %2974 = vmatpush.msra.mxu0 0.0
      %2975 = vmatpush.msra.mxu0 0.0
      %2976 = vmatpush.msra.mxu0 0.0
      %2977 = vmatpush.msra.mxu0 0.0
      %2978 = vmatpush.msra.mxu0 %v2936
      %2979 = vmatmul.f32.gmra.mxu0 %v2941
      %v2980 = vpop.f32.mrf.mxu0
      %v2981 = vadd.f32 0.0, %v2980
      %2982 = vdwg.mxu0
      %2983 = vmatpush.msra.mxu0 0.0
      %2984 = vmatpush.msra.mxu0 0.0
      %2985 = vmatpush.msra.mxu0 0.0
      %2986 = vmatpush.msra.mxu0 0.0
      %2987 = vmatpush.msra.mxu0 0.0
      %2988 = vmatpush.msra.mxu0 0.0
      %2989 = vmatpush.msra.mxu0 0.0
      %2990 = vmatpush.msra.mxu0 0.0
      %2991 = vmatpush.msra.mxu0 0.0
      %2992 = vmatpush.msra.mxu0 0.0
      %2993 = vmatpush.msra.mxu0 0.0
      %2994 = vmatpush.msra.mxu0 0.0
      %2995 = vmatpush.msra.mxu0 0.0
      %2996 = vmatpush.msra.mxu0 0.0
      %2997 = vmatpush.msra.mxu0 0.0
      %2998 = vmatpush.msra.mxu0 %v2935
      %2999 = vmatmul.f32.gmra.mxu0 %v2941
      %v3000 = vpop.f32.mrf.mxu0
      %v3001 = vadd.f32 0.0, %v3000
      %3002 = vdwg.mxu0
      %v3003 = vadd.f32 %v2926, %v2961
      %v3004 = vadd.f32 %v2927, %v2981
      %v3005 = vadd.f32 %v2928, %v3001
      %s3006 = scalar_lea.vmem %s12, 32
      %v3007 = vld [vmem:[%s3006] sm:$0xff]
      %v3009 = vsel %vm662, %v3007, 0
      %3011 = vmatpush.msra.mxu0 0.0
      %3012 = vmatpush.msra.mxu0 0.0
      %3013 = vmatpush.msra.mxu0 0.0
      %3014 = vmatpush.msra.mxu0 0.0
      %3015 = vmatpush.msra.mxu0 0.0
      %3016 = vmatpush.msra.mxu0 0.0
      %3017 = vmatpush.msra.mxu0 0.0
      %3018 = vmatpush.msra.mxu0 0.0
      %3019 = vmatpush.msra.mxu0 0.0
      %3020 = vmatpush.msra.mxu0 0.0
      %3021 = vmatpush.msra.mxu0 0.0
      %3022 = vmatpush.msra.mxu0 0.0
      %3023 = vmatpush.msra.mxu0 0.0
      %3024 = vmatpush.msra.mxu0 0.0
      %3025 = vmatpush.msra.mxu0 0.0
      %3026 = vmatpush.msra.mxu0 %v2039
      %3027 = vmatmul.f32.gmra.mxu0 %v3009
      %v3028 = vpop.f32.mrf.mxu0
      %v3029 = vadd.f32 0.0, %v3028
      %3030 = vdwg.mxu0
      %3031 = vmatpush.msra.mxu0 0.0
      %3032 = vmatpush.msra.mxu0 0.0
      %3033 = vmatpush.msra.mxu0 0.0
      %3034 = vmatpush.msra.mxu0 0.0
      %3035 = vmatpush.msra.mxu0 0.0
      %3036 = vmatpush.msra.mxu0 0.0
      %3037 = vmatpush.msra.mxu0 0.0
      %3038 = vmatpush.msra.mxu0 0.0
      %3039 = vmatpush.msra.mxu0 0.0
      %3040 = vmatpush.msra.mxu0 0.0
      %3041 = vmatpush.msra.mxu0 0.0
      %3042 = vmatpush.msra.mxu0 0.0
      %3043 = vmatpush.msra.mxu0 0.0
      %3044 = vmatpush.msra.mxu0 0.0
      %3045 = vmatpush.msra.mxu0 0.0
      %3046 = vmatpush.msra.mxu0 %v2040
      %3047 = vmatmul.f32.gmra.mxu0 %v3009
      %v3048 = vpop.f32.mrf.mxu0
      %v3049 = vadd.f32 0.0, %v3048
      %3050 = vdwg.mxu0
      %3051 = vmatpush.msra.mxu0 0.0
      %3052 = vmatpush.msra.mxu0 0.0
      %3053 = vmatpush.msra.mxu0 0.0
      %3054 = vmatpush.msra.mxu0 0.0
      %3055 = vmatpush.msra.mxu0 0.0
      %3056 = vmatpush.msra.mxu0 0.0
      %3057 = vmatpush.msra.mxu0 0.0
      %3058 = vmatpush.msra.mxu0 0.0
      %3059 = vmatpush.msra.mxu0 0.0
      %3060 = vmatpush.msra.mxu0 0.0
      %3061 = vmatpush.msra.mxu0 0.0
      %3062 = vmatpush.msra.mxu0 0.0
      %3063 = vmatpush.msra.mxu0 0.0
      %3064 = vmatpush.msra.mxu0 0.0
      %3065 = vmatpush.msra.mxu0 0.0
      %3066 = vmatpush.msra.mxu0 %v2041
      %3067 = vmatmul.f32.gmra.mxu0 %v3009
      %v3068 = vpop.f32.mrf.mxu0
      %v3069 = vadd.f32 0.0, %v3068
      %3070 = vdwg.mxu0
      %v3071 = vadd.f32 %v3003, %v3029
      %v3072 = vadd.f32 %v3004, %v3049
      %v3073 = vadd.f32 %v3005, %v3069
      %3074 = vrot.lane.b32.xlu0 %v2039, 127
      %v3075 = vpop.permute.xlu0 %3074
      %3076 = vrot.lane.b32.xlu0 %v2040, 127
      %v3077 = vpop.permute.xlu0 %3076
      %3078 = vrot.lane.b32.xlu0 %v2041, 127
      %v3079 = vpop.permute.xlu0 %3078
      %v3080 = vsel %vm1019, %v3077, %v3079
      %v3081 = vsel %vm1019, %v3075, %v3077
      %v3082 = vsel %vm1019, %v3079, %v3075
      %s3083 = scalar_lea.vmem %s12, 40
      %v3084 = vld [vmem:[%s3083] sm:$0xff]
      %v3086 = vsel %vm662, %v3084, 0
      %3088 = vmatpush.msra.mxu0 0.0
      %3089 = vmatpush.msra.mxu0 0.0
      %3090 = vmatpush.msra.mxu0 0.0
      %3091 = vmatpush.msra.mxu0 0.0
      %3092 = vmatpush.msra.mxu0 0.0
      %3093 = vmatpush.msra.mxu0 0.0
      %3094 = vmatpush.msra.mxu0 0.0
      %3095 = vmatpush.msra.mxu0 0.0
      %3096 = vmatpush.msra.mxu0 0.0
      %3097 = vmatpush.msra.mxu0 0.0
      %3098 = vmatpush.msra.mxu0 0.0
      %3099 = vmatpush.msra.mxu0 0.0
      %3100 = vmatpush.msra.mxu0 0.0
      %3101 = vmatpush.msra.mxu0 0.0
      %3102 = vmatpush.msra.mxu0 0.0
      %3103 = vmatpush.msra.mxu0 %v3081
      %3104 = vmatmul.f32.gmra.mxu0 %v3086
      %v3105 = vpop.f32.mrf.mxu0
      %v3106 = vadd.f32 0.0, %v3105
      %3107 = vdwg.mxu0
      %3108 = vmatpush.msra.mxu0 0.0
      %3109 = vmatpush.msra.mxu0 0.0
      %3110 = vmatpush.msra.mxu0 0.0
      %3111 = vmatpush.msra.mxu0 0.0
      %3112 = vmatpush.msra.mxu0 0.0
      %3113 = vmatpush.msra.mxu0 0.0
      %3114 = vmatpush.msra.mxu0 0.0
      %3115 = vmatpush.msra.mxu0 0.0
      %3116 = vmatpush.msra.mxu0 0.0
      %3117 = vmatpush.msra.mxu0 0.0
      %3118 = vmatpush.msra.mxu0 0.0
      %3119 = vmatpush.msra.mxu0 0.0
      %3120 = vmatpush.msra.mxu0 0.0
      %3121 = vmatpush.msra.mxu0 0.0
      %3122 = vmatpush.msra.mxu0 0.0
      %3123 = vmatpush.msra.mxu0 %v3080
      %3124 = vmatmul.f32.gmra.mxu0 %v3086
      %v3125 = vpop.f32.mrf.mxu0
      %v3126 = vadd.f32 0.0, %v3125
      %3127 = vdwg.mxu0
      %3128 = vmatpush.msra.mxu0 0.0
      %3129 = vmatpush.msra.mxu0 0.0
      %3130 = vmatpush.msra.mxu0 0.0
      %3131 = vmatpush.msra.mxu0 0.0
      %3132 = vmatpush.msra.mxu0 0.0
      %3133 = vmatpush.msra.mxu0 0.0
      %3134 = vmatpush.msra.mxu0 0.0
      %3135 = vmatpush.msra.mxu0 0.0
      %3136 = vmatpush.msra.mxu0 0.0
      %3137 = vmatpush.msra.mxu0 0.0
      %3138 = vmatpush.msra.mxu0 0.0
      %3139 = vmatpush.msra.mxu0 0.0
      %3140 = vmatpush.msra.mxu0 0.0
      %3141 = vmatpush.msra.mxu0 0.0
      %3142 = vmatpush.msra.mxu0 0.0
      %3143 = vmatpush.msra.mxu0 %v3082
      %3144 = vmatmul.f32.gmra.mxu0 %v3086
      %v3145 = vpop.f32.mrf.mxu0
      %v3146 = vadd.f32 0.0, %v3145
      %3147 = vdwg.mxu0
      %v3148 = vadd.f32 %v3071, %v3106
      %v3149 = vadd.f32 %v3072, %v3126
      %v3150 = vadd.f32 %v3073, %v3146
      %3151 = vrot.lane.b32.xlu0 %v2039, 111
      %v3152 = vpop.permute.xlu0 %3151
      %3153 = vrot.lane.b32.xlu0 %v2040, 111
      %v3154 = vpop.permute.xlu0 %3153
      %3155 = vrot.lane.b32.xlu0 %v2041, 111
      %v3156 = vpop.permute.xlu0 %3155
      %v3157 = vsel %vm1097, %v3154, %v3156
      %v3158 = vsel %vm1097, %v3152, %v3154
      %v3159 = vsel %vm1097, %v3156, %v3152
      %s3160 = scalar_lea.vmem %s12, 48
      %v3161 = vld [vmem:[%s3160] sm:$0xff]
      %v3163 = vsel %vm662, %v3161, 0
      %3165 = vmatpush.msra.mxu0 0.0
      %3166 = vmatpush.msra.mxu0 0.0
      %3167 = vmatpush.msra.mxu0 0.0
      %3168 = vmatpush.msra.mxu0 0.0
      %3169 = vmatpush.msra.mxu0 0.0
      %3170 = vmatpush.msra.mxu0 0.0
      %3171 = vmatpush.msra.mxu0 0.0
      %3172 = vmatpush.msra.mxu0 0.0
      %3173 = vmatpush.msra.mxu0 0.0
      %3174 = vmatpush.msra.mxu0 0.0
      %3175 = vmatpush.msra.mxu0 0.0
      %3176 = vmatpush.msra.mxu0 0.0
      %3177 = vmatpush.msra.mxu0 0.0
      %3178 = vmatpush.msra.mxu0 0.0
      %3179 = vmatpush.msra.mxu0 0.0
      %3180 = vmatpush.msra.mxu0 %v3158
      %3181 = vmatmul.f32.gmra.mxu0 %v3163
      %v3182 = vpop.f32.mrf.mxu0
      %v3183 = vadd.f32 0.0, %v3182
      %3184 = vdwg.mxu0
      %3185 = vmatpush.msra.mxu0 0.0
      %3186 = vmatpush.msra.mxu0 0.0
      %3187 = vmatpush.msra.mxu0 0.0
      %3188 = vmatpush.msra.mxu0 0.0
      %3189 = vmatpush.msra.mxu0 0.0
      %3190 = vmatpush.msra.mxu0 0.0
      %3191 = vmatpush.msra.mxu0 0.0
      %3192 = vmatpush.msra.mxu0 0.0
      %3193 = vmatpush.msra.mxu0 0.0
      %3194 = vmatpush.msra.mxu0 0.0
      %3195 = vmatpush.msra.mxu0 0.0
      %3196 = vmatpush.msra.mxu0 0.0
      %3197 = vmatpush.msra.mxu0 0.0
      %3198 = vmatpush.msra.mxu0 0.0
      %3199 = vmatpush.msra.mxu0 0.0
      %3200 = vmatpush.msra.mxu0 %v3157
      %3201 = vmatmul.f32.gmra.mxu0 %v3163
      %v3202 = vpop.f32.mrf.mxu0
      %v3203 = vadd.f32 0.0, %v3202
      %3204 = vdwg.mxu0
      %3205 = vmatpush.msra.mxu0 0.0
      %3206 = vmatpush.msra.mxu0 0.0
      %3207 = vmatpush.msra.mxu0 0.0
      %3208 = vmatpush.msra.mxu0 0.0
      %3209 = vmatpush.msra.mxu0 0.0
      %3210 = vmatpush.msra.mxu0 0.0
      %3211 = vmatpush.msra.mxu0 0.0
      %3212 = vmatpush.msra.mxu0 0.0
      %3213 = vmatpush.msra.mxu0 0.0
      %3214 = vmatpush.msra.mxu0 0.0
      %3215 = vmatpush.msra.mxu0 0.0
      %3216 = vmatpush.msra.mxu0 0.0
      %3217 = vmatpush.msra.mxu0 0.0
      %3218 = vmatpush.msra.mxu0 0.0
      %3219 = vmatpush.msra.mxu0 0.0
      %3220 = vmatpush.msra.mxu0 %v3159
      %3221 = vmatmul.f32.gmra.mxu0 %v3163
      %v3222 = vpop.f32.mrf.mxu0
      %v3223 = vadd.f32 0.0, %v3222
      %3224 = vdwg.mxu0
      %v3225 = vadd.f32 %v3148, %v3183
      %v3226 = vadd.f32 %v3149, %v3203
      %v3227 = vadd.f32 %v3150, %v3223
      %3228 = vrot.lane.b32.xlu0 %v2039, 110
      %v3229 = vpop.permute.xlu0 %3228
      %3230 = vrot.lane.b32.xlu0 %v2040, 110
      %v3231 = vpop.permute.xlu0 %3230
      %3232 = vrot.lane.b32.xlu0 %v2041, 110
      %v3233 = vpop.permute.xlu0 %3232
      %v3234 = vsel %vm1175, %v3231, %v3233
      %v3235 = vsel %vm1175, %v3229, %v3231
      %v3236 = vsel %vm1175, %v3233, %v3229
      %s3237 = scalar_lea.vmem %s12, 56
      %v3238 = vld [vmem:[%s3237] sm:$0xff]
      %v3240 = vsel %vm662, %v3238, 0
      %3242 = vmatpush.msra.mxu0 0.0
      %3243 = vmatpush.msra.mxu0 0.0
      %3244 = vmatpush.msra.mxu0 0.0
      %3245 = vmatpush.msra.mxu0 0.0
      %3246 = vmatpush.msra.mxu0 0.0
      %3247 = vmatpush.msra.mxu0 0.0
      %3248 = vmatpush.msra.mxu0 0.0
      %3249 = vmatpush.msra.mxu0 0.0
      %3250 = vmatpush.msra.mxu0 0.0
      %3251 = vmatpush.msra.mxu0 0.0
      %3252 = vmatpush.msra.mxu0 0.0
      %3253 = vmatpush.msra.mxu0 0.0
      %3254 = vmatpush.msra.mxu0 0.0
      %3255 = vmatpush.msra.mxu0 0.0
      %3256 = vmatpush.msra.mxu0 0.0
      %3257 = vmatpush.msra.mxu0 %v3235
      %3258 = vmatmul.f32.gmra.mxu0 %v3240
      %v3259 = vpop.f32.mrf.mxu0
      %v3260 = vadd.f32 0.0, %v3259
      %3261 = vdwg.mxu0
      %3262 = vmatpush.msra.mxu0 0.0
      %3263 = vmatpush.msra.mxu0 0.0
      %3264 = vmatpush.msra.mxu0 0.0
      %3265 = vmatpush.msra.mxu0 0.0
      %3266 = vmatpush.msra.mxu0 0.0
      %3267 = vmatpush.msra.mxu0 0.0
      %3268 = vmatpush.msra.mxu0 0.0
      %3269 = vmatpush.msra.mxu0 0.0
      %3270 = vmatpush.msra.mxu0 0.0
      %3271 = vmatpush.msra.mxu0 0.0
      %3272 = vmatpush.msra.mxu0 0.0
      %3273 = vmatpush.msra.mxu0 0.0
      %3274 = vmatpush.msra.mxu0 0.0
      %3275 = vmatpush.msra.mxu0 0.0
      %3276 = vmatpush.msra.mxu0 0.0
      %3277 = vmatpush.msra.mxu0 %v3234
      %3278 = vmatmul.f32.gmra.mxu0 %v3240
      %v3279 = vpop.f32.mrf.mxu0
      %v3280 = vadd.f32 0.0, %v3279
      %3281 = vdwg.mxu0
      %3282 = vmatpush.msra.mxu0 0.0
      %3283 = vmatpush.msra.mxu0 0.0
      %3284 = vmatpush.msra.mxu0 0.0
      %3285 = vmatpush.msra.mxu0 0.0
      %3286 = vmatpush.msra.mxu0 0.0
      %3287 = vmatpush.msra.mxu0 0.0
      %3288 = vmatpush.msra.mxu0 0.0
      %3289 = vmatpush.msra.mxu0 0.0
      %3290 = vmatpush.msra.mxu0 0.0
      %3291 = vmatpush.msra.mxu0 0.0
      %3292 = vmatpush.msra.mxu0 0.0
      %3293 = vmatpush.msra.mxu0 0.0
      %3294 = vmatpush.msra.mxu0 0.0
      %3295 = vmatpush.msra.mxu0 0.0
      %3296 = vmatpush.msra.mxu0 0.0
      %3297 = vmatpush.msra.mxu0 %v3236
      %3298 = vmatmul.f32.gmra.mxu0 %v3240
      %v3299 = vpop.f32.mrf.mxu0
      %v3300 = vadd.f32 0.0, %v3299
      %3301 = vdwg.mxu0
      %v3302 = vadd.f32 %v3225, %v3260
      %v3303 = vadd.f32 %v3226, %v3280
      %v3304 = vadd.f32 %v3227, %v3300
      %3305 = vrot.lane.b32.xlu0 %v2039, 109
      %v3306 = vpop.permute.xlu0 %3305
      %3307 = vrot.lane.b32.xlu0 %v2040, 109
      %v3308 = vpop.permute.xlu0 %3307
      %3309 = vrot.lane.b32.xlu0 %v2041, 109
      %v3310 = vpop.permute.xlu0 %3309
      %v3311 = vsel %vm1253, %v3308, %v3310
      %v3312 = vsel %vm1253, %v3306, %v3308
      %v3313 = vsel %vm1253, %v3310, %v3306
      %s3314 = scalar_lea.vmem %s12, 64
      %v3315 = vld [vmem:[%s3314] sm:$0xff]
      %v3317 = vsel %vm662, %v3315, 0
      %3319 = vmatpush.msra.mxu0 0.0
      %3320 = vmatpush.msra.mxu0 0.0
      %3321 = vmatpush.msra.mxu0 0.0
      %3322 = vmatpush.msra.mxu0 0.0
      %3323 = vmatpush.msra.mxu0 0.0
      %3324 = vmatpush.msra.mxu0 0.0
      %3325 = vmatpush.msra.mxu0 0.0
      %3326 = vmatpush.msra.mxu0 0.0
      %3327 = vmatpush.msra.mxu0 0.0
      %3328 = vmatpush.msra.mxu0 0.0
      %3329 = vmatpush.msra.mxu0 0.0
      %3330 = vmatpush.msra.mxu0 0.0
      %3331 = vmatpush.msra.mxu0 0.0
      %3332 = vmatpush.msra.mxu0 0.0
      %3333 = vmatpush.msra.mxu0 0.0
      %3334 = vmatpush.msra.mxu0 %v3312
      %3335 = vmatmul.f32.gmra.mxu0 %v3317
      %v3336 = vpop.f32.mrf.mxu0
      %v3337 = vadd.f32 0.0, %v3336
      %3338 = vdwg.mxu0
      %3339 = vmatpush.msra.mxu0 0.0
      %3340 = vmatpush.msra.mxu0 0.0
      %3341 = vmatpush.msra.mxu0 0.0
      %3342 = vmatpush.msra.mxu0 0.0
      %3343 = vmatpush.msra.mxu0 0.0
      %3344 = vmatpush.msra.mxu0 0.0
      %3345 = vmatpush.msra.mxu0 0.0
      %3346 = vmatpush.msra.mxu0 0.0
      %3347 = vmatpush.msra.mxu0 0.0
      %3348 = vmatpush.msra.mxu0 0.0
      %3349 = vmatpush.msra.mxu0 0.0
      %3350 = vmatpush.msra.mxu0 0.0
      %3351 = vmatpush.msra.mxu0 0.0
      %3352 = vmatpush.msra.mxu0 0.0
      %3353 = vmatpush.msra.mxu0 0.0
      %3354 = vmatpush.msra.mxu0 %v3311
      %3355 = vmatmul.f32.gmra.mxu0 %v3317
      %v3356 = vpop.f32.mrf.mxu0
      %v3357 = vadd.f32 0.0, %v3356
      %3358 = vdwg.mxu0
      %3359 = vmatpush.msra.mxu0 0.0
      %3360 = vmatpush.msra.mxu0 0.0
      %3361 = vmatpush.msra.mxu0 0.0
      %3362 = vmatpush.msra.mxu0 0.0
      %3363 = vmatpush.msra.mxu0 0.0
      %3364 = vmatpush.msra.mxu0 0.0
      %3365 = vmatpush.msra.mxu0 0.0
      %3366 = vmatpush.msra.mxu0 0.0
      %3367 = vmatpush.msra.mxu0 0.0
      %3368 = vmatpush.msra.mxu0 0.0
      %3369 = vmatpush.msra.mxu0 0.0
      %3370 = vmatpush.msra.mxu0 0.0
      %3371 = vmatpush.msra.mxu0 0.0
      %3372 = vmatpush.msra.mxu0 0.0
      %3373 = vmatpush.msra.mxu0 0.0
      %3374 = vmatpush.msra.mxu0 %v3313
      %3375 = vmatmul.f32.gmra.mxu0 %v3317
      %v3376 = vpop.f32.mrf.mxu0
      %v3377 = vadd.f32 0.0, %v3376
      %3378 = vdwg.mxu0
      %v3379 = vadd.f32 %v3302, %v3337
      %v3380 = vadd.f32 %v3303, %v3357
      %v3381 = vadd.f32 %v3304, %v3377
      %v3382 = vld [vmem:[%s15] sm:$0xff]
      %v3383 = vld [vmem:[%s15 + $0x8] sm:$0xff]
      %v3384 = vld [vmem:[%s15 + $0x10] sm:$0xff]
      %v3385 = vld [vmem:[%s15 + $0x18] sm:$0xff]
      %v3386 = vld [vmem:[%s15 + $0x20] sm:$0xff]
      %v3387 = vld [vmem:[%s15 + $0x28] sm:$0xff]
      %v3388 = vld [vmem:[%s15 + $0x30] sm:$0xff]
      %v3389 = vld [vmem:[%s15 + $0x38] sm:$0xff]
      %v3390 = vld [vmem:[%s15 + $0x40] sm:$0xff]
      %v3391 = vld [vmem:[%s15 + $0x48] sm:$0xff]
      %v3392 = vld [vmem:[%s15 + $0x50] sm:$0xff]
      %v3393 = vld [vmem:[%s15 + $0x58] sm:$0xff]
      %v3394 = vld [vmem:[%s15 + $0x60] sm:$0xff]
      %v3395 = vld [vmem:[%s15 + $0x68] sm:$0xff]
      %v3396 = vld [vmem:[%s15 + $0x70] sm:$0xff]
      %v3397 = vld [vmem:[%s15 + $0x78] sm:$0xff]
      %v3398 = vld [vmem:[%s15 + $0x80] sm:$0xff]
      %v3399 = vld [vmem:[%s15 + $0x88] sm:$0xff]
      %v3400 = vld [vmem:[%s15 + $0x90] sm:$0xff]
      %v3401 = vld [vmem:[%s15 + $0x98] sm:$0xff]
      %v3402 = vld [vmem:[%s15 + $0xa0] sm:$0xff]
      %v3403 = vld [vmem:[%s15 + $0xa8] sm:$0xff]
      %v3404 = vld [vmem:[%s15 + $0xb0] sm:$0xff]
      %v3405 = vld [vmem:[%s15 + $0xb8] sm:$0xff]
      %v3406 = vld [vmem:[%s15 + $0xc0] sm:$0xff]
      %v3407 = vld [vmem:[%s15 + $0xc8] sm:$0xff]
      %v3408 = vld [vmem:[%s15 + $0xd0] sm:$0xff]
      %v3409 = vld [vmem:[%s15 + $0xd8] sm:$0xff]
      %v3410 = vld [vmem:[%s15 + $0xe0] sm:$0xff]
      %v3411 = vld [vmem:[%s15 + $0xe8] sm:$0xff]
      %v3412 = vld [vmem:[%s15 + $0xf0] sm:$0xff]
      %v3413 = vld [vmem:[%s15 + $0xf8] sm:$0xff]
      %v3414 = vld [vmem:[%s15 + $0x100] sm:$0xff]
      %v3415 = vld [vmem:[%s15 + $0x108] sm:$0xff]
      %v3416 = vld [vmem:[%s15 + $0x110] sm:$0xff]
      %v3417 = vld [vmem:[%s15 + $0x118] sm:$0xff]
      %v3418 = vld [vmem:[%s15 + $0x120] sm:$0xff]
      %v3419 = vld [vmem:[%s15 + $0x128] sm:$0xff]
      %v3420 = vld [vmem:[%s15 + $0x130] sm:$0xff]
      %v3421 = vld [vmem:[%s15 + $0x138] sm:$0xff]
      %v3422 = vld [vmem:[%s15 + $0x140] sm:$0xff]
      %v3423 = vld [vmem:[%s15 + $0x148] sm:$0xff]
      %v3424 = vld [vmem:[%s15 + $0x150] sm:$0xff]
      %v3425 = vld [vmem:[%s15 + $0x158] sm:$0xff]
      %v3426 = vld [vmem:[%s15 + $0x160] sm:$0xff]
      %v3427 = vld [vmem:[%s15 + $0x168] sm:$0xff]
      %v3428 = vld [vmem:[%s15 + $0x170] sm:$0xff]
      %v3429 = vld [vmem:[%s15 + $0x178] sm:$0xff]
      %v3430 = vld [vmem:[%s13] sm:$0xff]
      %3432 = vset.pattern.permute.xlu0 0
      %3433 = vperm.xlu0 %3432, %v3430
      %v3434 = vpop.permute.xlu0 %3433
      %3436 = vmatpush.msra.mxu0 %v3397
      %3437 = vmatpush.msra.mxu0 %v3396
      %3438 = vmatpush.msra.mxu0 %v3395
      %3439 = vmatpush.msra.mxu0 %v3394
      %3440 = vmatpush.msra.mxu0 %v3393
      %3441 = vmatpush.msra.mxu0 %v3392
      %3442 = vmatpush.msra.mxu0 %v3391
      %3443 = vmatpush.msra.mxu0 %v3390
      %3444 = vmatpush.msra.mxu0 %v3389
      %3445 = vmatpush.msra.mxu0 %v3388
      %3446 = vmatpush.msra.mxu0 %v3387
      %3447 = vmatpush.msra.mxu0 %v3386
      %3448 = vmatpush.msra.mxu0 %v3385
      %3449 = vmatpush.msra.mxu0 %v3384
      %3450 = vmatpush.msra.mxu0 %v3383
      %3451 = vmatpush.msra.mxu0 %v3382
      %3452 = vmatmul.f32.gmra.mxu0 %v3379
      %v3453 = vpop.f32.mrf.mxu0
      %v3454 = vadd.f32 %v3434, %v3453
      %3455 = vdwg.mxu0
      %3456 = vmatpush.msra.mxu0 %v3413
      %3457 = vmatpush.msra.mxu0 %v3412
      %3458 = vmatpush.msra.mxu0 %v3411
      %3459 = vmatpush.msra.mxu0 %v3410
      %3460 = vmatpush.msra.mxu0 %v3409
      %3461 = vmatpush.msra.mxu0 %v3408
      %3462 = vmatpush.msra.mxu0 %v3407
      %3463 = vmatpush.msra.mxu0 %v3406
      %3464 = vmatpush.msra.mxu0 %v3405
      %3465 = vmatpush.msra.mxu0 %v3404
      %3466 = vmatpush.msra.mxu0 %v3403
      %3467 = vmatpush.msra.mxu0 %v3402
      %3468 = vmatpush.msra.mxu0 %v3401
      %3469 = vmatpush.msra.mxu0 %v3400
      %3470 = vmatpush.msra.mxu0 %v3399
      %3471 = vmatpush.msra.mxu0 %v3398
      %3472 = vmatmul.f32.gmra.mxu0 %v3380
      %v3473 = vpop.f32.mrf.mxu0
      %v3474 = vadd.f32 %v3454, %v3473
      %3475 = vdwg.mxu0
      %3476 = vmatpush.msra.mxu0 %v3429
      %3477 = vmatpush.msra.mxu0 %v3428
      %3478 = vmatpush.msra.mxu0 %v3427
      %3479 = vmatpush.msra.mxu0 %v3426
      %3480 = vmatpush.msra.mxu0 %v3425
      %3481 = vmatpush.msra.mxu0 %v3424
      %3482 = vmatpush.msra.mxu0 %v3423
      %3483 = vmatpush.msra.mxu0 %v3422
      %3484 = vmatpush.msra.mxu0 %v3421
      %3485 = vmatpush.msra.mxu0 %v3420
      %3486 = vmatpush.msra.mxu0 %v3419
      %3487 = vmatpush.msra.mxu0 %v3418
      %3488 = vmatpush.msra.mxu0 %v3417
      %3489 = vmatpush.msra.mxu0 %v3416
      %3490 = vmatpush.msra.mxu0 %v3415
      %3491 = vmatpush.msra.mxu0 %v3414
      %3492 = vmatmul.f32.gmra.mxu0 %v3381
      %v3493 = vpop.f32.mrf.mxu0
      %v3494 = vadd.f32 %v3474, %v3493
      %3495 = vdwg.mxu0
      %v3496 = vadd.f32 %v3494, %v2557
      %v3497 = vmax.f32 %v3496, 0.0
      %3498 = vst [vmem:[%s630] sm:$0xff] %v3497
      %p3499 = scmp.lt.s32.totalorder %s31, 1
      %s3500 = scalar_select %p3499, %s31, 1
      %s3501 = smul.addr %s3500, 3
      %s3502 = smul.addr %s3501, 8
      %s3503 = scalar_lea.vmem %s18, %s3502
      %p3504 = scmp.lt.s32.totalorder %s31, 1
      %s3505 = scalar_select %p3504, %s31, 1
      %s3506 = smul.addr %s3505, 8
      %s3507 = scalar_lea.vmem %s19, %s3506
      // Predicated region
      $region93: #{hr_module_forward.1} parent=91 // pred_check
        %p3508 = pneg %p437
      $region94: #{hr_module_forward.1} parent=91 // pred_check_branch
        %3510 = sbr.rel (%p3508) target = $region96
      $region95: #{hr_module_forward.1} parent=91 // pred_region
        _
      $region96: #{hr_module_forward.1} parent=91 // pred_fallthru
        _
      // Predicated region
      $region97: #{hr_module_forward.1} parent=91 // pred_check
        %p3511 = pneg %p463
      $region98: #{hr_module_forward.1} parent=91 // pred_check_branch
        %3513 = sbr.rel (%p3511) target = $region100
      $region99: #{hr_module_forward.1} parent=91 // pred_region
        _
      $region100: #{hr_module_forward.1} parent=91 // pred_fallthru
        _
    $region92: #{hr_module_forward.1} parent=5 // pred_fallthru
      _
    %p3514 = scmp.le.s32.totalorder 2, %s26
    // Predicated region
    $region101: #{hr_module_forward.1} parent=5 // pred_check
      %p3515 = pneg %p3514
    $region102: #{hr_module_forward.1} parent=5 // pred_check_branch
      %3517 = sbr.rel (%p3515) target = $region104
    $region103: #{hr_module_forward.1} parent=5 // pred_region
      %s3518 = ssub.s32 %s26, 2
      // Predicated region
      $region105: #{hr_module_forward.1} parent=103 // pred_check
        %p3519 = pneg %p443
      $region106: #{hr_module_forward.1} parent=103 // pred_check_branch
        %3521 = sbr.rel (%p3519) target = $region108
      $region107: #{hr_module_forward.1} parent=103 // pred_region
        %p3522 = scmp.lt.s32.totalorder %s32, 1
        %s3523 = scalar_select %p3522, %s32, 1
        %s3524 = smul.addr %s3523, 3
        %s3525 = smul.addr %s3524, 8
        %s3526 = scalar_lea.vmem %s18, %s3525
      $region108: #{hr_module_forward.1} parent=103 // pred_fallthru
        _
      // Predicated region
      $region109: #{hr_module_forward.1} parent=103 // pred_check
        %p3527 = pneg %p469
      $region110: #{hr_module_forward.1} parent=103 // pred_check_branch
        %3529 = sbr.rel (%p3527) target = $region112
      $region111: #{hr_module_forward.1} parent=103 // pred_region
        %p3530 = scmp.lt.s32.totalorder %s32, 1
        %s3531 = scalar_select %p3530, %s32, 1
        %s3532 = smul.addr %s3531, 8
        %s3533 = scalar_lea.vmem %s19, %s3532
      $region112: #{hr_module_forward.1} parent=103 // pred_fallthru
        _
    $region104: #{hr_module_forward.1} parent=5 // pred_fallthru
      _
  $region6: #{hr_module_forward.1} parent=0 // loop_footer
    %s30 = sadd.s32 1, %s26
  $region7: #{hr_module_forward.1} parent=0 // loop_footer_branch
    %25 = sbr.rel target = $region3
  $region8: #{hr_module_forward.1} parent=0 // loop_exit
    _

</llo_original>
